<compile_context>
chip_gen: v7x
topology: tpu7x:2x2x1
jax: 0.10.0
libtpu: 0.0.40
codegen_flags: <defaults>
</compile_context>

<pallas_src>
import functools

import jax
import jax.numpy as jnp
from jax import lax
from jax.experimental import pallas as pl
from jax.experimental.pallas import tpu as pltpu


def _round_up(x, m):
    return (x + m - 1) // m * m


def _uncond_block_kernel(geom, has_proj, *refs):
    # Ref layout (proj):     xcol, tproj, mask, w1, w2, ws,       out, hflat
    # Ref layout (identity): xcol, tproj, mask, w1, w2, xs, b2s,  out, hflat
    HWp, Wp, GH, NHF = geom
    if has_proj:
        (xcol_ref, tproj_ref, mask_ref, w1_ref, w2_ref, ws_ref,
         out_ref, hflat_ref) = refs
    else:
        (xcol_ref, tproj_ref, mask_ref, w1_ref, w2_ref, xs_ref, b2s_ref,
         out_ref, hflat_ref) = refs
    Cp = out_ref.shape[-1]

    # im2col slab (bf16) is read once and reused by conv1 and the shortcut.
    xcol = xcol_ref[...]                                    # (HWp, Kp) bf16

    # ---- conv1 (+ b1 folded via ones-column): one bf16 MXU matmul, f32 acc --
    acc = jnp.dot(xcol, w1_ref[...], preferred_element_type=jnp.float32)

    # ReLU, + per-batch time embedding, then zero the Wp-W pad columns (they
    # act as conv2's left/right zero padding in the flat layout).  The mask is
    # a precomputed (HWp, 1) input — single multiply, no iota/mod/select.
    h = (jnp.maximum(acc, 0.0) + tproj_ref[...]) * mask_ref[...]

    # ---- stage bf16 h into the flat padded scratch; aligned stores only -----
    # Guard bands are re-zeroed every step (required for megacore-split grids).
    hflat_ref[0:GH, :] = jnp.zeros((GH, Cp), jnp.bfloat16)
    hflat_ref[GH + HWp:NHF, :] = jnp.zeros((NHF - GH - HWp, Cp), jnp.bfloat16)
    hflat_ref[GH:GH + HWp, :] = h.astype(jnp.bfloat16)

    # ---- shortcut initializes the conv2 accumulator (no zeros pass) ---------
    if has_proj:
        # 1x1 shortcut weight + (b2+bs) folded into ws_ref, applied to the same
        # im2col slab (the center-tap columns of xcol are x itself).
        acc2 = jnp.dot(xcol, ws_ref[...], preferred_element_type=jnp.float32)
    else:
        # Identity shortcut stays exact in f32; b2 added in the same pass.
        acc2 = xs_ref[...] + b2s_ref[...]

    # ---- conv2: 9 contiguous flat-offset taps of the padded h scratch -------
    # TODO(synk): the dx=+-1 tap slices are sublane-misaligned; if bundle dumps
    # show relayout copies, derive them from the dx=0 tap with pltpu.roll.
    taps = [(dy, dx) for dy in (-1, 0, 1) for dx in (-1, 0, 1)]
    for k, (dy, dx) in enumerate(taps):
        s = GH + dy * Wp + dx                               # static slice start
        acc2 = acc2 + jnp.dot(hflat_ref[s:s + HWp, :], w2_ref[k],
                              preferred_element_type=jnp.float32)

    out_ref[...] = jnp.maximum(acc2, 0.0)                   # full-lane store


def uncond_block(x_nhwc, t_emb, params):
    """x_nhwc: (N, H, W, Cin) f32, t_emb: (N, T) f32 -> (N, H, W, Cout) f32."""
    N, H, W, Cin = x_nhwc.shape
    Cout = params["w1"].shape[-1]
    has_proj = "ws" in params

    LANE = 128
    Cp = _round_up(Cout, LANE)               # lane-dense padded channel count
    Wp = W + 2                               # row width incl. 2 zero-pad cols
    HWp = H * Wp
    K0 = 9 * Cin + 1                         # 9 taps * Cin + ones col (b1)
    Kp = _round_up(K0, LANE)                 # lane-dense contraction dim
    ALIGN = 16                               # bf16 sublane-packing alignment
    GH = _round_up(Wp + 1, ALIGN)            # top guard rows of h scratch
    NHF = _round_up(GH + HWp + Wp + 1, ALIGN)

    f32 = jnp.float32

    # ---- wrapper-side im2col for conv1 (one bf16 cast, one HBM copy) --------
    xp = jnp.pad(x_nhwc, ((0, 0), (1, 1), (1, 1), (0, 0)))
    cols = [xp[:, dy:dy + H, dx:dx + W, :] for dy in range(3) for dx in range(3)]
    cols.append(jnp.ones((N, H, W, 1), f32))                 # ones col -> b1
    xcol = jnp.concatenate(cols, axis=-1)                    # (N, H, W, K0)
    xcol = jnp.pad(xcol, ((0, 0), (0, 0), (0, Wp - W), (0, Kp - K0)))
    xcol = xcol.reshape(N, HWp, Kp).astype(jnp.bfloat16)     # (N, HWp, Kp)

    # conv1 weight (+ b1 row) as one (Kp, Cp) bf16 matrix.
    w1 = params["w1"].reshape(9 * Cin, Cout)
    w1 = jnp.concatenate([w1, params["b1"]], axis=0)         # (K0, Cout)
    w1 = jnp.pad(w1, ((0, Kp - K0), (0, Cp - Cout))).astype(jnp.bfloat16)

    # conv2 weights: (9, Cp, Cp) bf16 (zero-padded channels contribute zero).
    w2 = jnp.pad(params["w2"], ((0, 0), (0, 0), (0, Cp - Cout), (0, Cp - Cout)))
    w2 = w2.reshape(9, Cp, Cp).astype(jnp.bfloat16)

    # Hoisted time projection: one batched XLA matmul, lane-padded.
    tproj = t_emb @ params["wt"] + params["bt"]               # (N, Cout) f32
    tproj = jnp.pad(tproj, ((0, 0), (0, Cp - Cout))).reshape(N, 1, Cp)

    # Precomputed pad-column mask (constant index_map input).
    mask = ((jnp.arange(HWp) % Wp) < W).astype(f32).reshape(HWp, 1)

    bias2 = params["b2"] + (params["bs"] if has_proj else 0.0)  # (1, Cout)

    in_specs = [
        pl.BlockSpec((None, HWp, Kp), lambda n: (n, 0, 0)),   # xcol (im2col)
        pl.BlockSpec((None, 1, Cp), lambda n: (n, 0, 0)),     # tproj row
        pl.BlockSpec((HWp, 1), lambda n: (0, 0)),             # pad-col mask
        pl.BlockSpec((Kp, Cp), lambda n: (0, 0)),             # w1 (+b1) bf16
        pl.BlockSpec((9, Cp, Cp), lambda n: (0, 0, 0)),       # w2 bf16
    ]
    inputs = [xcol, tproj, mask, w1, w2]

    if has_proj:
        # 1x1 shortcut weight + (b2+bs) folded into one (Kp, Cp) bf16 matrix
        # that multiplies the same im2col slab (center-tap cols + ones col).
        ws = jnp.zeros((K0, Cout), f32)
        ws = ws.at[4 * Cin:5 * Cin, :].set(params["ws"])      # center tap = x
        ws = ws.at[K0 - 1:K0, :].set(bias2)                   # ones col = bias
        ws = jnp.pad(ws, ((0, Kp - K0), (0, Cp - Cout))).astype(jnp.bfloat16)
        in_specs.append(pl.BlockSpec((Kp, Cp), lambda n: (0, 0)))
        inputs.append(ws)
    else:
        # Identity shortcut: add x directly in f32 (exact); b2 added alongside.
        xs = jnp.pad(x_nhwc, ((0, 0), (0, 0), (0, Wp - W), (0, Cp - Cin)))
        xs = xs.reshape(N, HWp, Cp)
        b2s = jnp.pad(bias2, ((0, 0), (0, Cp - Cout)))
        in_specs += [pl.BlockSpec((None, HWp, Cp), lambda n: (n, 0, 0)),
                     pl.BlockSpec((1, Cp), lambda n: (0, 0))]
        inputs += [xs, b2s]

    geom = (HWp, Wp, GH, NHF)
    grid_spec = pltpu.PrefetchScalarGridSpec(
        num_scalar_prefetch=0,
        grid=(N,),
        in_specs=in_specs,
        out_specs=pl.BlockSpec((None, HWp, Cp), lambda n: (n, 0, 0)),
        scratch_shapes=[pltpu.VMEM((NHF, Cp), jnp.bfloat16)],
    )

    out_flat = pl.pallas_call(
        functools.partial(_uncond_block_kernel, geom, has_proj),
        out_shape=jax.ShapeDtypeStruct((N, HWp, Cp), f32),
        grid_spec=grid_spec,
        compiler_params=pltpu.CompilerParams(
            dimension_semantics=("parallel",),        # N feeds both v7x cores
            vmem_limit_bytes=64 * 1024 * 1024),
    )(*inputs)

    # Drop the 2 pad columns per row and the padded channels (one XLA slice).
    return out_flat.reshape(N, H, Wp, Cp)[:, :, :W, :Cout]


def init_params(key, in_channels, out_channels, time_emb_dim):
    ks = jax.random.split(key, 8)
    scale = 0.1
    p = {
        "w1": scale * jax.random.normal(ks[0], (3, 3, in_channels, out_channels), jnp.float32),
        "b1": scale * jax.random.normal(ks[1], (1, out_channels), jnp.float32),
        "w2": scale * jax.random.normal(ks[2], (3, 3, out_channels, out_channels), jnp.float32),
        "b2": scale * jax.random.normal(ks[3], (1, out_channels), jnp.float32),
        "wt": scale * jax.random.normal(ks[4], (time_emb_dim, out_channels), jnp.float32),
        "bt": scale * jax.random.normal(ks[5], (1, out_channels), jnp.float32),
    }
    if in_channels != out_channels:               # nn.Identity() shortcut otherwise
        p["ws"] = scale * jax.random.normal(ks[6], (in_channels, out_channels), jnp.float32)
        p["bs"] = scale * jax.random.normal(ks[7], (1, out_channels), jnp.float32)
    return p


def ref_forward(x_nhwc, t_emb, p):
    """Pure-JAX NHWC reference matching the PyTorch forward."""
    dn1 = lax.conv_dimension_numbers(x_nhwc.shape, p["w1"].shape,
                                     ("NHWC", "HWIO", "NHWC"))
    h = lax.conv_general_dilated(x_nhwc, p["w1"], (1, 1), "SAME",
                                 dimension_numbers=dn1) + p["b1"]
    h = jax.nn.relu(h)
    t = t_emb @ p["wt"] + p["bt"]
    h = h + t[:, None, None, :]
    dn2 = lax.conv_dimension_numbers(h.shape, p["w2"].shape,
                                     ("NHWC", "HWIO", "NHWC"))
    h = lax.conv_general_dilated(h, p["w2"], (1, 1), "SAME",
                                 dimension_numbers=dn2) + p["b2"]
    if "ws" in p:
        sc = jnp.einsum("nhwc,co->nhwo", x_nhwc, p["ws"]) + p["bs"]
    else:
        sc = x_nhwc
    return jax.nn.relu(h + sc)


if __name__ == "__main__":
    key = jax.random.PRNGKey(0)
    kx, kt, kp = jax.random.split(key, 3)

    # --- Config 1: projection shortcut (Cin != Cout), matches the demo spec --
    N, Cin, Cout, H, W, T = 2, 4, 8, 16, 16, 32
    x_nhwc = jax.random.normal(kx, (N, H, W, Cin), jnp.float32)
    t_emb = jax.random.normal(kt, (N, T), jnp.float32)
    params = init_params(kp, Cin, Cout, T)

    out = jax.block_until_ready(uncond_block(x_nhwc, t_emb, params))
    ref = jax.block_until_ready(ref_forward(x_nhwc, t_emb, params))
    assert out.shape == (N, H, W, Cout)
    err = float(jnp.max(jnp.abs(out - ref)))
    # bf16 MXU feeds -> slightly looser tolerance than pure f32.
    assert jnp.allclose(out, ref, atol=2e-2, rtol=2e-2), err

    # --- Config 2: identity shortcut (Cin == Cout), f32-exact shortcut path --
    Cin2 = Cout2 = 8
    x2 = jax.random.normal(kx, (N, H, W, Cin2), jnp.float32)
    params2 = init_params(kp, Cin2, Cout2, T)
    out2 = jax.block_until_ready(uncond_block(x2, t_emb, params2))
    ref2 = jax.block_until_ready(ref_forward(x2, t_emb, params2))
    assert out2.shape == (N, H, W, Cout2)
    err2 = float(jnp.max(jnp.abs(out2 - ref2)))
    assert jnp.allclose(out2, ref2, atol=2e-2, rtol=2e-2), err2

    print("KERNEL_OK")
</pallas_src>

<mosaic_0001>
module attributes {stable_mosaic.version = 11 : i64} {
  func.func @_uncond_block_kernel(%arg0: i32, %arg1: memref<1x288x128xbf16, #tpu.memory_space<vmem>>, %arg2: memref<1x1x128xf32, #tpu.memory_space<vmem>>, %arg3: memref<288x1xf32, #tpu.memory_space<vmem>>, %arg4: memref<128x128xbf16, #tpu.memory_space<vmem>>, %arg5: memref<9x128x128xbf16, #tpu.memory_space<vmem>>, %arg6: memref<128x128xbf16, #tpu.memory_space<vmem>>, %arg7: memref<1x288x128xf32, #tpu.memory_space<vmem>>, %arg8: memref<352x128xbf16, #tpu.memory_space<vmem>>) attributes {dimension_semantics = [#tpu.dimension_semantics<parallel>], iteration_bounds = array<i64: 2>, scalar_prefetch = 0 : i64, scratch_operands = 1 : i64, tpu.core_type = #tpu.core_type<tc>, window_params = [{transform_indices = @transform_0, window_bounds = array<i64: 1, 288, 128>}, {transform_indices = @transform_1, window_bounds = array<i64: 1, 1, 128>}, {pipeline_mode = #tpu.pipeline_mode<synchronous>, transform_indices = @transform_2, window_bounds = array<i64: 288, 1>}, {pipeline_mode = #tpu.pipeline_mode<synchronous>, transform_indices = @transform_3, window_bounds = array<i64: 128, 128>}, {pipeline_mode = #tpu.pipeline_mode<synchronous>, transform_indices = @transform_4, window_bounds = array<i64: 9, 128, 128>}, {pipeline_mode = #tpu.pipeline_mode<synchronous>, transform_indices = @transform_5, window_bounds = array<i64: 128, 128>}, {transform_indices = @transform_6, window_bounds = array<i64: 1, 288, 128>}]} {
    %c0 = arith.constant 0 : index
    %c0_0 = arith.constant 0 : index
    %c0_1 = arith.constant 0 : index
    %0 = vector.load %arg1[%c0, %c0_0, %c0_1] : memref<1x288x128xbf16, #tpu.memory_space<vmem>>, vector<1x288x128xbf16>
    %1 = vector.shape_cast %0 : vector<1x288x128xbf16> to vector<288x128xbf16>
    %c0_2 = arith.constant 0 : index
    %c0_3 = arith.constant 0 : index
    %2 = vector.load %arg4[%c0_2, %c0_3] : memref<128x128xbf16, #tpu.memory_space<vmem>>, vector<128x128xbf16>
    %cst = arith.constant dense<0.000000e+00> : vector<288x128xf32>
    %3 = tpu.matmul %1, %2, %cst {dimension_numbers = #tpu.dot_dimension_numbers<[1], [0], [0], [1], [0, 0, 1, 1], [], []>} : vector<288x128xbf16>, vector<128x128xbf16>, vector<288x128xf32> -> vector<288x128xf32>
    %cst_4 = arith.constant 0.000000e+00 : f32
    %4 = vector.broadcast %cst_4 : f32 to vector<288x128xf32>
    %5 = arith.maximumf %3, %4 : vector<288x128xf32>
    %c0_5 = arith.constant 0 : index
    %c0_6 = arith.constant 0 : index
    %c0_7 = arith.constant 0 : index
    %6 = vector.load %arg2[%c0_5, %c0_6, %c0_7] : memref<1x1x128xf32, #tpu.memory_space<vmem>>, vector<1x1x128xf32>
    %7 = vector.shape_cast %6 : vector<1x1x128xf32> to vector<1x128xf32>
    %8 = vector.broadcast %7 : vector<1x128xf32> to vector<288x128xf32>
    %9 = arith.addf %5, %8 : vector<288x128xf32>
    %c0_8 = arith.constant 0 : index
    %c0_9 = arith.constant 0 : index
    %10 = vector.load %arg3[%c0_8, %c0_9] : memref<288x1xf32, #tpu.memory_space<vmem>>, vector<288x1xf32>
    %11 = vector.broadcast %10 : vector<288x1xf32> to vector<288x128xf32>
    %12 = arith.mulf %9, %11 : vector<288x128xf32>
    %cst_10 = arith.constant 0.000000e+00 : bf16
    %13 = vector.broadcast %cst_10 : bf16 to vector<32x128xbf16>
    %c0_11 = arith.constant 0 : index
    %c0_12 = arith.constant 0 : index
    %14 = vector.load %arg8[%c0_11, %c0_12] : memref<352x128xbf16, #tpu.memory_space<vmem>>, vector<32x128xbf16>
    tpu.vector_store %arg8[%c0_11, %c0_12], %13 {strides = array<i32>} : memref<352x128xbf16, #tpu.memory_space<vmem>>, vector<32x128xbf16>,
    %cst_13 = arith.constant 0.000000e+00 : bf16
    %15 = vector.broadcast %cst_13 : bf16 to vector<32x128xbf16>
    %c320 = arith.constant 320 : index
    %c0_14 = arith.constant 0 : index
    %16 = vector.load %arg8[%c320, %c0_14] : memref<352x128xbf16, #tpu.memory_space<vmem>>, vector<32x128xbf16>
    tpu.vector_store %arg8[%c320, %c0_14], %15 {strides = array<i32>} : memref<352x128xbf16, #tpu.memory_space<vmem>>, vector<32x128xbf16>,
    %17 = arith.truncf %12 : vector<288x128xf32> to vector<288x128xbf16>
    %c32 = arith.constant 32 : index
    %c0_15 = arith.constant 0 : index
    %18 = vector.load %arg8[%c32, %c0_15] : memref<352x128xbf16, #tpu.memory_space<vmem>>, vector<288x128xbf16>
    tpu.vector_store %arg8[%c32, %c0_15], %17 {strides = array<i32>} : memref<352x128xbf16, #tpu.memory_space<vmem>>, vector<288x128xbf16>,
    %c0_16 = arith.constant 0 : index
    %c0_17 = arith.constant 0 : index
    %19 = vector.load %arg6[%c0_16, %c0_17] : memref<128x128xbf16, #tpu.memory_space<vmem>>, vector<128x128xbf16>
    %cst_18 = arith.constant dense<0.000000e+00> : vector<288x128xf32>
    %20 = tpu.matmul %1, %19, %cst_18 {dimension_numbers = #tpu.dot_dimension_numbers<[1], [0], [0], [1], [0, 0, 1, 1], [], []>} : vector<288x128xbf16>, vector<128x128xbf16>, vector<288x128xf32> -> vector<288x128xf32>
    %c13 = arith.constant 13 : index
    %c0_19 = arith.constant 0 : index
    %21 = vector.load %arg8[%c13, %c0_19] : memref<352x128xbf16, #tpu.memory_space<vmem>>, vector<288x128xbf16>
    %c0_20 = arith.constant 0 : index
    %c0_21 = arith.constant 0 : index
    %c0_22 = arith.constant 0 : index
    %22 = vector.load %arg5[%c0_20, %c0_21, %c0_22] : memref<9x128x128xbf16, #tpu.memory_space<vmem>>, vector<1x128x128xbf16>
    %23 = vector.shape_cast %22 : vector<1x128x128xbf16> to vector<128x128xbf16>
    %cst_23 = arith.constant dense<0.000000e+00> : vector<288x128xf32>
    %24 = tpu.matmul %21, %23, %cst_23 {dimension_numbers = #tpu.dot_dimension_numbers<[1], [0], [0], [1], [0, 0, 1, 1], [], []>} : vector<288x128xbf16>, vector<128x128xbf16>, vector<288x128xf32> -> vector<288x128xf32>
    %25 = arith.addf %20, %24 : vector<288x128xf32>
    %c14 = arith.constant 14 : index
    %c0_24 = arith.constant 0 : index
    %26 = vector.load %arg8[%c14, %c0_24] : memref<352x128xbf16, #tpu.memory_space<vmem>>, vector<288x128xbf16>
    %c1 = arith.constant 1 : index
    %c0_25 = arith.constant 0 : index
    %c0_26 = arith.constant 0 : index
    %27 = vector.load %arg5[%c1, %c0_25, %c0_26] : memref<9x128x128xbf16, #tpu.memory_space<vmem>>, vector<1x128x128xbf16>
    %28 = vector.shape_cast %27 : vector<1x128x128xbf16> to vector<128x128xbf16>
    %cst_27 = arith.constant dense<0.000000e+00> : vector<288x128xf32>
    %29 = tpu.matmul %26, %28, %cst_27 {dimension_numbers = #tpu.dot_dimension_numbers<[1], [0], [0], [1], [0, 0, 1, 1], [], []>} : vector<288x128xbf16>, vector<128x128xbf16>, vector<288x128xf32> -> vector<288x128xf32>
    %30 = arith.addf %25, %29 : vector<288x128xf32>
    %c15 = arith.constant 15 : index
    %c0_28 = arith.constant 0 : index
    %31 = vector.load %arg8[%c15, %c0_28] : memref<352x128xbf16, #tpu.memory_space<vmem>>, vector<288x128xbf16>
    %c2 = arith.constant 2 : index
    %c0_29 = arith.constant 0 : index
    %c0_30 = arith.constant 0 : index
    %32 = vector.load %arg5[%c2, %c0_29, %c0_30] : memref<9x128x128xbf16, #tpu.memory_space<vmem>>, vector<1x128x128xbf16>
    %33 = vector.shape_cast %32 : vector<1x128x128xbf16> to vector<128x128xbf16>
    %cst_31 = arith.constant dense<0.000000e+00> : vector<288x128xf32>
    %34 = tpu.matmul %31, %33, %cst_31 {dimension_numbers = #tpu.dot_dimension_numbers<[1], [0], [0], [1], [0, 0, 1, 1], [], []>} : vector<288x128xbf16>, vector<128x128xbf16>, vector<288x128xf32> -> vector<288x128xf32>
    %35 = arith.addf %30, %34 : vector<288x128xf32>
    %c31 = arith.constant 31 : index
    %c0_32 = arith.constant 0 : index
    %36 = vector.load %arg8[%c31, %c0_32] : memref<352x128xbf16, #tpu.memory_space<vmem>>, vector<288x128xbf16>
    %c3 = arith.constant 3 : index
    %c0_33 = arith.constant 0 : index
    %c0_34 = arith.constant 0 : index
    %37 = vector.load %arg5[%c3, %c0_33, %c0_34] : memref<9x128x128xbf16, #tpu.memory_space<vmem>>, vector<1x128x128xbf16>
    %38 = vector.shape_cast %37 : vector<1x128x128xbf16> to vector<128x128xbf16>
    %cst_35 = arith.constant dense<0.000000e+00> : vector<288x128xf32>
    %39 = tpu.matmul %36, %38, %cst_35 {dimension_numbers = #tpu.dot_dimension_numbers<[1], [0], [0], [1], [0, 0, 1, 1], [], []>} : vector<288x128xbf16>, vector<128x128xbf16>, vector<288x128xf32> -> vector<288x128xf32>
    %40 = arith.addf %35, %39 : vector<288x128xf32>
    %c32_36 = arith.constant 32 : index
    %c0_37 = arith.constant 0 : index
    %41 = vector.load %arg8[%c32_36, %c0_37] : memref<352x128xbf16, #tpu.memory_space<vmem>>, vector<288x128xbf16>
    %c4 = arith.constant 4 : index
    %c0_38 = arith.constant 0 : index
    %c0_39 = arith.constant 0 : index
    %42 = vector.load %arg5[%c4, %c0_38, %c0_39] : memref<9x128x128xbf16, #tpu.memory_space<vmem>>, vector<1x128x128xbf16>
    %43 = vector.shape_cast %42 : vector<1x128x128xbf16> to vector<128x128xbf16>
    %cst_40 = arith.constant dense<0.000000e+00> : vector<288x128xf32>
    %44 = tpu.matmul %41, %43, %cst_40 {dimension_numbers = #tpu.dot_dimension_numbers<[1], [0], [0], [1], [0, 0, 1, 1], [], []>} : vector<288x128xbf16>, vector<128x128xbf16>, vector<288x128xf32> -> vector<288x128xf32>
    %45 = arith.addf %40, %44 : vector<288x128xf32>
    %c33 = arith.constant 33 : index
    %c0_41 = arith.constant 0 : index
    %46 = vector.load %arg8[%c33, %c0_41] : memref<352x128xbf16, #tpu.memory_space<vmem>>, vector<288x128xbf16>
    %c5 = arith.constant 5 : index
    %c0_42 = arith.constant 0 : index
    %c0_43 = arith.constant 0 : index
    %47 = vector.load %arg5[%c5, %c0_42, %c0_43] : memref<9x128x128xbf16, #tpu.memory_space<vmem>>, vector<1x128x128xbf16>
    %48 = vector.shape_cast %47 : vector<1x128x128xbf16> to vector<128x128xbf16>
    %cst_44 = arith.constant dense<0.000000e+00> : vector<288x128xf32>
    %49 = tpu.matmul %46, %48, %cst_44 {dimension_numbers = #tpu.dot_dimension_numbers<[1], [0], [0], [1], [0, 0, 1, 1], [], []>} : vector<288x128xbf16>, vector<128x128xbf16>, vector<288x128xf32> -> vector<288x128xf32>
    %50 = arith.addf %45, %49 : vector<288x128xf32>
    %c49 = arith.constant 49 : index
    %c0_45 = arith.constant 0 : index
    %51 = vector.load %arg8[%c49, %c0_45] : memref<352x128xbf16, #tpu.memory_space<vmem>>, vector<288x128xbf16>
    %c6 = arith.constant 6 : index
    %c0_46 = arith.constant 0 : index
    %c0_47 = arith.constant 0 : index
    %52 = vector.load %arg5[%c6, %c0_46, %c0_47] : memref<9x128x128xbf16, #tpu.memory_space<vmem>>, vector<1x128x128xbf16>
    %53 = vector.shape_cast %52 : vector<1x128x128xbf16> to vector<128x128xbf16>
    %cst_48 = arith.constant dense<0.000000e+00> : vector<288x128xf32>
    %54 = tpu.matmul %51, %53, %cst_48 {dimension_numbers = #tpu.dot_dimension_numbers<[1], [0], [0], [1], [0, 0, 1, 1], [], []>} : vector<288x128xbf16>, vector<128x128xbf16>, vector<288x128xf32> -> vector<288x128xf32>
    %55 = arith.addf %50, %54 : vector<288x128xf32>
    %c50 = arith.constant 50 : index
    %c0_49 = arith.constant 0 : index
    %56 = vector.load %arg8[%c50, %c0_49] : memref<352x128xbf16, #tpu.memory_space<vmem>>, vector<288x128xbf16>
    %c7 = arith.constant 7 : index
    %c0_50 = arith.constant 0 : index
    %c0_51 = arith.constant 0 : index
    %57 = vector.load %arg5[%c7, %c0_50, %c0_51] : memref<9x128x128xbf16, #tpu.memory_space<vmem>>, vector<1x128x128xbf16>
    %58 = vector.shape_cast %57 : vector<1x128x128xbf16> to vector<128x128xbf16>
    %cst_52 = arith.constant dense<0.000000e+00> : vector<288x128xf32>
    %59 = tpu.matmul %56, %58, %cst_52 {dimension_numbers = #tpu.dot_dimension_numbers<[1], [0], [0], [1], [0, 0, 1, 1], [], []>} : vector<288x128xbf16>, vector<128x128xbf16>, vector<288x128xf32> -> vector<288x128xf32>
    %60 = arith.addf %55, %59 : vector<288x128xf32>
    %c51 = arith.constant 51 : index
    %c0_53 = arith.constant 0 : index
    %61 = vector.load %arg8[%c51, %c0_53] : memref<352x128xbf16, #tpu.memory_space<vmem>>, vector<288x128xbf16>
    %c8 = arith.constant 8 : index
    %c0_54 = arith.constant 0 : index
    %c0_55 = arith.constant 0 : index
    %62 = vector.load %arg5[%c8, %c0_54, %c0_55] : memref<9x128x128xbf16, #tpu.memory_space<vmem>>, vector<1x128x128xbf16>
    %63 = vector.shape_cast %62 : vector<1x128x128xbf16> to vector<128x128xbf16>
    %cst_56 = arith.constant dense<0.000000e+00> : vector<288x128xf32>
    %64 = tpu.matmul %61, %63, %cst_56 {dimension_numbers = #tpu.dot_dimension_numbers<[1], [0], [0], [1], [0, 0, 1, 1], [], []>} : vector<288x128xbf16>, vector<128x128xbf16>, vector<288x128xf32> -> vector<288x128xf32>
    %65 = arith.addf %60, %64 : vector<288x128xf32>
    %cst_57 = arith.constant 0.000000e+00 : f32
    %66 = vector.broadcast %cst_57 : f32 to vector<288x128xf32>
    %67 = arith.maximumf %65, %66 : vector<288x128xf32>
    %c0_58 = arith.constant 0 : index
    %c0_59 = arith.constant 0 : index
    %c0_60 = arith.constant 0 : index
    %68 = vector.load %arg7[%c0_58, %c0_59, %c0_60] : memref<1x288x128xf32, #tpu.memory_space<vmem>>, vector<1x288x128xf32>
    %69 = vector.shape_cast %68 : vector<1x288x128xf32> to vector<288x128xf32>
    %70 = vector.shape_cast %67 : vector<288x128xf32> to vector<1x288x128xf32>
    tpu.vector_store %arg7[%c0_58, %c0_59, %c0_60], %70 {strides = array<i32>} : memref<1x288x128xf32, #tpu.memory_space<vmem>>, vector<1x288x128xf32>,
    return
  }
  func.func @transform_0(%arg0: i32) -> (i32, i32, i32) {
    %c0_i32 = arith.constant 0 : i32
    %c0_i32_0 = arith.constant 0 : i32
    %c0_i32_1 = arith.constant 0 : i32
    return %arg0, %c0_i32, %c0_i32_0 : i32, i32, i32
  }
  func.func @transform_1(%arg0: i32) -> (i32, i32, i32) {
    %c0_i32 = arith.constant 0 : i32
    %c0_i32_0 = arith.constant 0 : i32
    %c0_i32_1 = arith.constant 0 : i32
    return %arg0, %c0_i32, %c0_i32_0 : i32, i32, i32
  }
  func.func @transform_2(%arg0: i32) -> (i32, i32) {
    %c0_i32 = arith.constant 0 : i32
    %c0_i32_0 = arith.constant 0 : i32
    %c0_i32_1 = arith.constant 0 : i32
    return %c0_i32, %c0_i32_0 : i32, i32
  }
  func.func @transform_3(%arg0: i32) -> (i32, i32) {
    %c0_i32 = arith.constant 0 : i32
    %c0_i32_0 = arith.constant 0 : i32
    %c0_i32_1 = arith.constant 0 : i32
    return %c0_i32, %c0_i32_0 : i32, i32
  }
  func.func @transform_4(%arg0: i32) -> (i32, i32, i32) {
    %c0_i32 = arith.constant 0 : i32
    %c0_i32_0 = arith.constant 0 : i32
    %c0_i32_1 = arith.constant 0 : i32
    %c0_i32_2 = arith.constant 0 : i32
    return %c0_i32, %c0_i32_0, %c0_i32_1 : i32, i32, i32
  }
  func.func @transform_5(%arg0: i32) -> (i32, i32) {
    %c0_i32 = arith.constant 0 : i32
    %c0_i32_0 = arith.constant 0 : i32
    %c0_i32_1 = arith.constant 0 : i32
    return %c0_i32, %c0_i32_0 : i32, i32
  }
  func.func @transform_6(%arg0: i32) -> (i32, i32, i32) {
    %c0_i32 = arith.constant 0 : i32
    %c0_i32_0 = arith.constant 0 : i32
    %c0_i32_1 = arith.constant 0 : i32
    return %arg0, %c0_i32, %c0_i32_0 : i32, i32, i32
  }
}

</mosaic_0001>

<llo_original>
// kernel: tpu_custom_call.1
$region0: #{tpu_custom_call.1}
  #allocation0 [shape = 'u32[]', space=smem, size = 0x4, offset = 0x4, fixed_abs, tag = 'smem constant byte address 0x4 - core index']
  #allocation1 [shape = 'u32[144,128]{1,0:T(1,128)}', space=vmem, size = 0x12000, scoped, tag = 'internal scratch']
  #allocation2 [shape = 'bf16[352,128]{1,0:T(16,128)(2,1)}', space=vmem, size = 0x16000, scoped, tag = 'scratch operand']
  %s0 = inlined_call_operand.hbm [shape: bf16[2,288,128], index: 0, kind: input, shape index: {}]
  %s1 = inlined_call_operand.hbm [shape: f32[2,1,128], index: 1, kind: input, shape index: {}]
  %s2 = inlined_call_operand.hbm [shape: f32[288,1], index: 2, kind: input, shape index: {}]
  %s3 = inlined_call_operand.hbm [shape: bf16[128,128], index: 3, kind: input, shape index: {}]
  %s4 = inlined_call_operand.hbm [shape: bf16[9,128,128], index: 4, kind: input, shape index: {}]
  %s5 = inlined_call_operand.hbm [shape: bf16[128,128], index: 5, kind: input, shape index: {}]
  %s6 = inlined_call_operand.hbm [shape: f32[2,288,128], index: 6, kind: output, shape index: {}]
  %s7 = sld [smem:[#allocation0]]
  $region81: #{tpu_custom_call.1} parent=0
    _
  %s9 = ssub.s32 1, %s7
  %s10 = scalar_select 0, %s9, %s7
  $region1: #{tpu_custom_call.1} parent=0
    #allocation3 [shape = 'u8[147456]{0}', space=vmem, size = 0x24000, scoped, tag = 'input window, operand 0']
    #allocation4 [shape = 's32[2]{0}', space=sflag, size = 0x8, scoped, tag = 'scoped memory for tpu_custom_call.1']
    #allocation5 [shape = 's32[2]{0}', space=sflag, size = 0x8, scoped, tag = 'scoped memory for tpu_custom_call.1']
    #allocation6 [shape = 'u8[1024]{0}', space=vmem, size = 0x400, scoped, tag = 'input window, operand 1']
    #allocation7 [shape = 's32[2]{0}', space=sflag, size = 0x8, scoped, tag = 'scoped memory for tpu_custom_call.1']
    #allocation8 [shape = 'u8[147456]{0}', space=vmem, size = 0x24000, scoped, tag = 'input window, operand 2, single buffered']
    #allocation9 [shape = 'u8[32768]{0}', space=vmem, size = 0x8000, scoped, tag = 'input window, operand 3, single buffered']
    #allocation10 [shape = 's32[1]{0}', space=sflag, size = 0x4, scoped, tag = 'scoped memory for tpu_custom_call.1']
    #allocation11 [shape = 'u8[294912]{0}', space=vmem, size = 0x48000, scoped, tag = 'input window, operand 4, single buffered']
    #allocation12 [shape = 'u8[32768]{0}', space=vmem, size = 0x8000, scoped, tag = 'input window, operand 5, single buffered']
    #allocation13 [shape = 's32[1]{0}', space=sflag, size = 0x4, scoped, tag = 'scoped memory for tpu_custom_call.1']
    #allocation14 [shape = 'u8[294912]{0}', space=vmem, size = 0x48000, scoped, tag = 'output window, operand 0']
    %11 = vsyncpa [#allocation4], 0
    %s12 = scalar_lea.sflag [#allocation4], 1
    %13 = vsyncpa %s12, 0
    %14 = vsyncpa [#allocation7], 0
    %s15 = scalar_lea.sflag [#allocation7], 1
    %16 = vsyncpa %s15, 0
    %17 = vsyncpa [#allocation10], 0
    %18 = vsyncpa [#allocation13], 0
    %19 = vsyncpa [#allocation5], 0
    %s20 = scalar_lea.sflag [#allocation5], 1
    %21 = vsyncpa %s20, 0
    loop: start=0, step=1, limit=4
    $region2: #{tpu_custom_call.1} parent=1 // loop_pre_header
      _
    $region3: #{tpu_custom_call.1} parent=1 // loop_header
      %s23 = sphi 0, %s27
      %p24 = scmp.ge.s32.totalorder %s23, 4
      %s33 = sphi 0, %s35
      %s36 = sphi 0, %s33
      %s37 = sphi 0, %s36
      %s53 = sphi 0, %s37
      %s59 = sphi 0, %s61
      %s62 = sphi 0, %s59
      %s63 = sphi 0, %s62
      %s79 = sphi 0, %s63
      %s83 = sphi 0, %s83
      %s85 = sphi 0, %s83
      %s86 = sphi 0, %s85
      %s100 = sphi 0, %s86
      %s104 = sphi 0, %s104
      %s106 = sphi 0, %s104
      %s107 = sphi 0, %s106
      %s121 = sphi 0, %s107
      %s125 = sphi 0, %s125
      %s127 = sphi 0, %s125
      %s128 = sphi 0, %s127
      %s142 = sphi 0, %s128
      %s146 = sphi 0, %s146
      %s148 = sphi 0, %s146
      %s149 = sphi 0, %s148
      %s163 = sphi 0, %s149
      %s169 = sphi 0, %s171
      %s172 = sphi 0, %s169
      %s173 = sphi 0, %s172
      %s189 = sphi 0, %s173
    $region4: #{tpu_custom_call.1} parent=1 // loop_header_branch
      %26 = sbr.rel (%p24) target = $region8
    $region5: #{tpu_custom_call.1} parent=1 // loop_body
      %s28 = ssub.s32 %s23, 1
      %s29 = ssub.s32 %s23, 2
      %s30 = sadd.s32 %s23, 1
      %s31 = ssub.s32 %s23, %s30
      %p32 = scmp.eq.s32.totalorder %s31, 0
      %s34 = sadd.s32 %s33, 1
      %s35 = scalar_select %p32, %s33, %s34
      %p38 = pneg %p32
      %p39 = scmp.eq.s32.totalorder %s23, 1
      %p40 = por %p38, %p39
      %p41 = scmp.ne.s32.totalorder %s33, %s36
      %p42 = scmp.eq.s32.totalorder %s23, 0
      %p43 = por %p41, %p42
      %p44 = scmp.ne.s32.totalorder %s33, %s36
      %p45 = scmp.eq.s32.totalorder %s28, 1
      %p46 = por %p44, %p45
      %p47 = scmp.ne.s32.totalorder %s36, %s37
      %p48 = scmp.eq.s32.totalorder %s28, 0
      %p49 = por %p47, %p48
      %p50 = scmp.ne.s32.totalorder %s36, %s37
      %p51 = scmp.eq.s32.totalorder %s29, 1
      %p52 = por %p50, %p51
      %p54 = scmp.ne.s32.totalorder %s37, %s53
      %p55 = scmp.eq.s32.totalorder %s29, 0
      %p56 = por %p54, %p55
      %s57 = ssub.s32 %s23, %s30
      %p58 = scmp.eq.s32.totalorder %s57, 0
      %s60 = sadd.s32 %s59, 1
      %s61 = scalar_select %p58, %s59, %s60
      %p64 = pneg %p58
      %p65 = scmp.eq.s32.totalorder %s23, 1
      %p66 = por %p64, %p65
      %p67 = scmp.ne.s32.totalorder %s59, %s62
      %p68 = scmp.eq.s32.totalorder %s23, 0
      %p69 = por %p67, %p68
      %p70 = scmp.ne.s32.totalorder %s59, %s62
      %p71 = scmp.eq.s32.totalorder %s28, 1
      %p72 = por %p70, %p71
      %p73 = scmp.ne.s32.totalorder %s62, %s63
      %p74 = scmp.eq.s32.totalorder %s28, 0
      %p75 = por %p73, %p74
      %p76 = scmp.ne.s32.totalorder %s62, %s63
      %p77 = scmp.eq.s32.totalorder %s29, 1
      %p78 = por %p76, %p77
      %p80 = scmp.ne.s32.totalorder %s63, %s79
      %p81 = scmp.eq.s32.totalorder %s29, 0
      %p82 = por %p80, %p81
      %s84 = sadd.s32 %s83, 1
      %p87 = scmp.eq.s32.totalorder %s23, 1
      %p88 = scmp.ne.s32.totalorder %s83, %s85
      %p89 = scmp.eq.s32.totalorder %s23, 0
      %p90 = por %p88, %p89
      %p91 = scmp.ne.s32.totalorder %s83, %s85
      %p92 = scmp.eq.s32.totalorder %s28, 1
      %p93 = por %p91, %p92
      %p94 = scmp.ne.s32.totalorder %s85, %s86
      %p95 = scmp.eq.s32.totalorder %s28, 0
      %p96 = por %p94, %p95
      %p97 = scmp.ne.s32.totalorder %s85, %s86
      %p98 = scmp.eq.s32.totalorder %s29, 1
      %p99 = por %p97, %p98
      %p101 = scmp.ne.s32.totalorder %s86, %s100
      %p102 = scmp.eq.s32.totalorder %s29, 0
      %p103 = por %p101, %p102
      %s105 = sadd.s32 %s104, 1
      %p108 = scmp.eq.s32.totalorder %s23, 1
      %p109 = scmp.ne.s32.totalorder %s104, %s106
      %p110 = scmp.eq.s32.totalorder %s23, 0
      %p111 = por %p109, %p110
      %p112 = scmp.ne.s32.totalorder %s104, %s106
      %p113 = scmp.eq.s32.totalorder %s28, 1
      %p114 = por %p112, %p113
      %p115 = scmp.ne.s32.totalorder %s106, %s107
      %p116 = scmp.eq.s32.totalorder %s28, 0
      %p117 = por %p115, %p116
      %p118 = scmp.ne.s32.totalorder %s106, %s107
      %p119 = scmp.eq.s32.totalorder %s29, 1
      %p120 = por %p118, %p119
      %p122 = scmp.ne.s32.totalorder %s107, %s121
      %p123 = scmp.eq.s32.totalorder %s29, 0
      %p124 = por %p122, %p123
      %s126 = sadd.s32 %s125, 1
      %p129 = scmp.eq.s32.totalorder %s23, 1
      %p130 = scmp.ne.s32.totalorder %s125, %s127
      %p131 = scmp.eq.s32.totalorder %s23, 0
      %p132 = por %p130, %p131
      %p133 = scmp.ne.s32.totalorder %s125, %s127
      %p134 = scmp.eq.s32.totalorder %s28, 1
      %p135 = por %p133, %p134
      %p136 = scmp.ne.s32.totalorder %s127, %s128
      %p137 = scmp.eq.s32.totalorder %s28, 0
      %p138 = por %p136, %p137
      %p139 = scmp.ne.s32.totalorder %s127, %s128
      %p140 = scmp.eq.s32.totalorder %s29, 1
      %p141 = por %p139, %p140
      %p143 = scmp.ne.s32.totalorder %s128, %s142
      %p144 = scmp.eq.s32.totalorder %s29, 0
      %p145 = por %p143, %p144
      %s147 = sadd.s32 %s146, 1
      %p150 = scmp.eq.s32.totalorder %s23, 1
      %p151 = scmp.ne.s32.totalorder %s146, %s148
      %p152 = scmp.eq.s32.totalorder %s23, 0
      %p153 = por %p151, %p152
      %p154 = scmp.ne.s32.totalorder %s146, %s148
      %p155 = scmp.eq.s32.totalorder %s28, 1
      %p156 = por %p154, %p155
      %p157 = scmp.ne.s32.totalorder %s148, %s149
      %p158 = scmp.eq.s32.totalorder %s28, 0
      %p159 = por %p157, %p158
      %p160 = scmp.ne.s32.totalorder %s148, %s149
      %p161 = scmp.eq.s32.totalorder %s29, 1
      %p162 = por %p160, %p161
      %p164 = scmp.ne.s32.totalorder %s149, %s163
      %p165 = scmp.eq.s32.totalorder %s29, 0
      %p166 = por %p164, %p165
      %s167 = ssub.s32 %s23, %s30
      %p168 = scmp.eq.s32.totalorder %s167, 0
      %s170 = sadd.s32 %s169, 1
      %s171 = scalar_select %p168, %s169, %s170
      %p174 = pneg %p168
      %p175 = scmp.eq.s32.totalorder %s23, 1
      %p176 = por %p174, %p175
      %p177 = scmp.ne.s32.totalorder %s169, %s172
      %p178 = scmp.eq.s32.totalorder %s23, 0
      %p179 = por %p177, %p178
      %p180 = scmp.ne.s32.totalorder %s169, %s172
      %p181 = scmp.eq.s32.totalorder %s28, 1
      %p182 = por %p180, %p181
      %p183 = scmp.ne.s32.totalorder %s172, %s173
      %p184 = scmp.eq.s32.totalorder %s28, 0
      %p185 = por %p183, %p184
      %p186 = scmp.ne.s32.totalorder %s172, %s173
      %p187 = scmp.eq.s32.totalorder %s29, 1
      %p188 = por %p186, %p187
      %p190 = scmp.ne.s32.totalorder %s173, %s189
      %p191 = scmp.eq.s32.totalorder %s29, 0
      %p192 = por %p190, %p191
      %p193 = scmp.le.s32.totalorder 1, %s23
      %p194 = scmp.lt.s32.totalorder %s23, 3
      %p195 = pnand %p193, %p194
      %p196 = pneg %p195
      // Predicated region
      $region9: #{tpu_custom_call.1} parent=5 // pred_check
        _
      $region10: #{tpu_custom_call.1} parent=5 // pred_check_branch
        %198 = sbr.rel (%p195) target = $region12
      $region11: #{tpu_custom_call.1} parent=5 // pred_region
        %s199 = ssub.s32 %s23, 1
        // Predicated region
        $region13: #{tpu_custom_call.1} parent=11 // pred_check
          %p200 = pneg %p96
        $region14: #{tpu_custom_call.1} parent=11 // pred_check_branch
          %202 = sbr.rel (%p200) target = $region16
        $region15: #{tpu_custom_call.1} parent=11 // pred_region
          %s204 = ssub.s32 4608, 4608
          %205 = vsyncadd [#allocation7], %s204
          %s206 = sshll.u32 [#allocation8], 4
          %s207 = int_to_ptr.vmem [resolvable:$true] %s206
          %212 = dma.hbm_to_vmem [thread:$0]  %s2, 4608, %s207, [#allocation7], 128, 128, 8
        $region16: #{tpu_custom_call.1} parent=11 // pred_fallthru
          _
        // Predicated region
        $region17: #{tpu_custom_call.1} parent=11 // pred_check
          %p213 = pneg %p117
        $region18: #{tpu_custom_call.1} parent=11 // pred_check_branch
          %215 = sbr.rel (%p213) target = $region20
        $region19: #{tpu_custom_call.1} parent=11 // pred_region
          %s217 = ssub.s32 1024, 1024
          %218 = vsyncadd [#allocation10], %s217
          %s219 = sshll.u32 [#allocation9], 4
          %s220 = int_to_ptr.vmem [resolvable:$true] %s219
          %225 = dma.hbm_to_vmem [thread:$0]  %s3, 1024, %s220, [#allocation10], 64, 64, 4
        $region20: #{tpu_custom_call.1} parent=11 // pred_fallthru
          _
        // Predicated region
        $region21: #{tpu_custom_call.1} parent=11 // pred_check
          %p226 = pneg %p138
        $region22: #{tpu_custom_call.1} parent=11 // pred_check_branch
          %228 = sbr.rel (%p226) target = $region24
        $region23: #{tpu_custom_call.1} parent=11 // pred_region
          %s230 = ssub.s32 9216, 9216
          %231 = vsyncadd [#allocation10], %s230
          %s232 = sshll.u32 [#allocation11], 4
          %s233 = int_to_ptr.vmem [resolvable:$true] %s232
          %238 = dma.hbm_to_vmem [thread:$0]  %s4, 9216, %s233, [#allocation10], 64, 64, 4
        $region24: #{tpu_custom_call.1} parent=11 // pred_fallthru
          _
        // Predicated region
        $region25: #{tpu_custom_call.1} parent=11 // pred_check
          %p239 = pneg %p159
        $region26: #{tpu_custom_call.1} parent=11 // pred_check_branch
          %241 = sbr.rel (%p239) target = $region28
        $region27: #{tpu_custom_call.1} parent=11 // pred_region
          %s243 = ssub.s32 1024, 1024
          %244 = vsyncadd [#allocation13], %s243
          %s245 = sshll.u32 [#allocation12], 4
          %s246 = int_to_ptr.vmem [resolvable:$true] %s245
          %251 = dma.hbm_to_vmem [thread:$0]  %s5, 1024, %s246, [#allocation13], 64, 64, 4
        $region28: #{tpu_custom_call.1} parent=11 // pred_fallthru
          _
      $region12: #{tpu_custom_call.1} parent=5 // pred_fallthru
        _
      %p252 = scmp.lt.s32.totalorder %s23, 2
      // Predicated region
      $region29: #{tpu_custom_call.1} parent=5 // pred_check
        %p253 = pneg %p252
      $region30: #{tpu_custom_call.1} parent=5 // pred_check_branch
        %255 = sbr.rel (%p253) target = $region32
      $region31: #{tpu_custom_call.1} parent=5 // pred_region
        // Predicated region
        $region33: #{tpu_custom_call.1} parent=31 // pred_check
          %p256 = pneg %p43
        $region34: #{tpu_custom_call.1} parent=31 // pred_check_branch
          %258 = sbr.rel (%p256) target = $region36
        $region35: #{tpu_custom_call.1} parent=31 // pred_region
          %s259 = sand.u32 %s33, 1
          %s260 = scalar_lea.sflag [#allocation4], %s259
          %s261 = sand.u32 %s33, 1
          %s262 = smul.addr %s261, 144
          %s263 = scalar_lea.vmem [#allocation3], %s262
          %s265 = ssub.s32 2304, 2304
          %266 = vsyncadd %s260, %s265
          %s267 = smul.addr %s23, 36
          %s268 = smul.addr %s267, 64
          %s269 = scalar_lea.hbm %s0, %s268
          %s270 = sshll.u32 %s263, 4
          %s271 = int_to_ptr.vmem [resolvable:$true] %s270
          %276 = dma.hbm_to_vmem [thread:$0]  %s269, 2304, %s271, %s260, 64, 64, 4
        $region36: #{tpu_custom_call.1} parent=31 // pred_fallthru
          _
        // Predicated region
        $region37: #{tpu_custom_call.1} parent=31 // pred_check
          %p277 = pneg %p69
        $region38: #{tpu_custom_call.1} parent=31 // pred_check_branch
          %279 = sbr.rel (%p277) target = $region40
        $region39: #{tpu_custom_call.1} parent=31 // pred_region
          %s280 = sand.u32 %s23, 1
          %s281 = scalar_lea.sflag [#allocation7], %s280
          %s282 = sand.u32 %s59, 1
          %s283 = scalar_lea.vmem [#allocation6], %s282
          %s285 = ssub.s32 16, 16
          %286 = vsyncadd %s281, %s285
          %s287 = smul.addr %s23, 16
          %s288 = scalar_lea.hbm %s1, %s287
          %s290 = sshll.u32 %s283, 4
          %s291 = int_to_ptr.vmem [resolvable:$true] %s290
          %293 = dma.hbm_to_vmem [thread:$0]  %s288, 16, %s291, %s281
        $region40: #{tpu_custom_call.1} parent=31 // pred_fallthru
          _
      $region32: #{tpu_custom_call.1} parent=5 // pred_fallthru
        _
      %p294 = scmp.le.s32.totalorder 1, %s23
      %p295 = scmp.lt.s32.totalorder %s23, 3
      %p296 = pnand %p294, %p295
      %p297 = pneg %p296
      // Predicated region
      $region41: #{tpu_custom_call.1} parent=5 // pred_check
        _
      $region42: #{tpu_custom_call.1} parent=5 // pred_check_branch
        %299 = sbr.rel (%p296) target = $region44
      $region43: #{tpu_custom_call.1} parent=5 // pred_region
        %s300 = ssub.s32 %s23, 1
        %s301 = sand.u32 %s36, 1
        %s302 = scalar_lea.sflag [#allocation4], %s301
        %s303 = sand.u32 %s36, 1
        %s304 = smul.addr %s303, 144
        %s305 = scalar_lea.vmem [#allocation3], %s304
        // Predicated region
        $region45: #{tpu_custom_call.1} parent=43 // pred_check
          %p306 = pneg %p49
        $region46: #{tpu_custom_call.1} parent=43 // pred_check_branch
          %308 = sbr.rel (%p306) target = $region48
        $region47: #{tpu_custom_call.1} parent=43 // pred_region
          %309 = dma.done %s302, 2304
        $region48: #{tpu_custom_call.1} parent=43 // pred_fallthru
          _
        %s310 = sand.u32 %s28, 1
        %s311 = scalar_lea.sflag [#allocation7], %s310
        %s312 = sand.u32 %s62, 1
        %s313 = scalar_lea.vmem [#allocation6], %s312
        // Predicated region
        $region49: #{tpu_custom_call.1} parent=43 // pred_check
          %p314 = pneg %p75
        $region50: #{tpu_custom_call.1} parent=43 // pred_check_branch
          %316 = sbr.rel (%p314) target = $region52
        $region51: #{tpu_custom_call.1} parent=43 // pred_region
          %317 = dma.done %s311, 16
        $region52: #{tpu_custom_call.1} parent=43 // pred_fallthru
          _
        // Predicated region
        $region53: #{tpu_custom_call.1} parent=43 // pred_check
          %p318 = pneg %p96
        $region54: #{tpu_custom_call.1} parent=43 // pred_check_branch
          %320 = sbr.rel (%p318) target = $region56
        $region55: #{tpu_custom_call.1} parent=43 // pred_region
          %321 = dma.done [#allocation7], 4608
        $region56: #{tpu_custom_call.1} parent=43 // pred_fallthru
          _
        // Predicated region
        $region57: #{tpu_custom_call.1} parent=43 // pred_check
          %p322 = pneg %p117
        $region58: #{tpu_custom_call.1} parent=43 // pred_check_branch
          %324 = sbr.rel (%p322) target = $region60
        $region59: #{tpu_custom_call.1} parent=43 // pred_region
          %325 = dma.done [#allocation10], 1024
        $region60: #{tpu_custom_call.1} parent=43 // pred_fallthru
          _
        // Predicated region
        $region61: #{tpu_custom_call.1} parent=43 // pred_check
          %p326 = pneg %p138
        $region62: #{tpu_custom_call.1} parent=43 // pred_check_branch
          %328 = sbr.rel (%p326) target = $region64
        $region63: #{tpu_custom_call.1} parent=43 // pred_region
          %329 = dma.done [#allocation10], 9216
        $region64: #{tpu_custom_call.1} parent=43 // pred_fallthru
          _
        // Predicated region
        $region65: #{tpu_custom_call.1} parent=43 // pred_check
          %p330 = pneg %p159
        $region66: #{tpu_custom_call.1} parent=43 // pred_check_branch
          %332 = sbr.rel (%p330) target = $region68
        $region67: #{tpu_custom_call.1} parent=43 // pred_region
          %333 = dma.done [#allocation13], 1024
        $region68: #{tpu_custom_call.1} parent=43 // pred_fallthru
          _
        %s334 = sand.u32 %s36, 1
        %s335 = scalar_lea.sflag [#allocation4], %s334
        %s336 = sand.u32 %s36, 1
        %s337 = smul.addr %s336, 144
        %s338 = scalar_lea.vmem [#allocation3], %s337
        %p339 = pneg %p49
        %p340 = pneg %p46
        %s341 = sand.u32 %s28, 1
        %s342 = scalar_lea.sflag [#allocation7], %s341
        %s343 = sand.u32 %s62, 1
        %s344 = scalar_lea.vmem [#allocation6], %s343
        %p345 = pneg %p75
        %p346 = pneg %p72
        %p347 = pneg %p96
        %p348 = pneg %p93
        %p349 = pneg %p117
        %p350 = pneg %p114
        %p351 = pneg %p138
        %p352 = pneg %p135
        %p353 = pneg %p159
        %p354 = pneg %p156
        %p355 = pneg %p185
        %p356 = pneg %p182
        %s357 = sand.u32 %s172, 1
        %s358 = scalar_lea.sflag [#allocation5], %s357
        %s359 = sand.u32 %s172, 1
        %s360 = smul.addr %s359, 288
        %s361 = scalar_lea.vmem [#allocation14], %s360
        %v363 = vld [vmem:[%s305] sm:$0xf]
        %v364 = vld [vmem:[%s305 + $0x4] sm:$0xf]
        %v365 = vld [vmem:[%s305 + $0x8] sm:$0xf]
        %v366 = vld [vmem:[%s305 + $0xc] sm:$0xf]
        %v367 = vld [vmem:[%s305 + $0x10] sm:$0xf]
        %v368 = vld [vmem:[%s305 + $0x14] sm:$0xf]
        %v369 = vld [vmem:[%s305 + $0x18] sm:$0xf]
        %v370 = vld [vmem:[%s305 + $0x1c] sm:$0xf]
        %v371 = vld [vmem:[%s305 + $0x20] sm:$0xf]
        %v372 = vld [vmem:[%s305 + $0x24] sm:$0xf]
        %v373 = vld [vmem:[%s305 + $0x28] sm:$0xf]
        %v374 = vld [vmem:[%s305 + $0x2c] sm:$0xf]
        %v375 = vld [vmem:[%s305 + $0x30] sm:$0xf]
        %v376 = vld [vmem:[%s305 + $0x34] sm:$0xf]
        %v377 = vld [vmem:[%s305 + $0x38] sm:$0xf]
        %v378 = vld [vmem:[%s305 + $0x3c] sm:$0xf]
        %v379 = vld [vmem:[%s305 + $0x40] sm:$0xf]
        %v380 = vld [vmem:[%s305 + $0x44] sm:$0xf]
        %v381 = vld [vmem:[%s305 + $0x48] sm:$0xf]
        %v382 = vld [vmem:[%s305 + $0x4c] sm:$0xf]
        %v383 = vld [vmem:[%s305 + $0x50] sm:$0xf]
        %v384 = vld [vmem:[%s305 + $0x54] sm:$0xf]
        %v385 = vld [vmem:[%s305 + $0x58] sm:$0xf]
        %v386 = vld [vmem:[%s305 + $0x5c] sm:$0xf]
        %v387 = vld [vmem:[%s305 + $0x60] sm:$0xf]
        %v388 = vld [vmem:[%s305 + $0x64] sm:$0xf]
        %v389 = vld [vmem:[%s305 + $0x68] sm:$0xf]
        %v390 = vld [vmem:[%s305 + $0x6c] sm:$0xf]
        %v391 = vld [vmem:[%s305 + $0x70] sm:$0xf]
        %v392 = vld [vmem:[%s305 + $0x74] sm:$0xf]
        %v393 = vld [vmem:[%s305 + $0x78] sm:$0xf]
        %v394 = vld [vmem:[%s305 + $0x7c] sm:$0xf]
        %v395 = vld [vmem:[%s305 + $0x80] sm:$0xf]
        %v396 = vld [vmem:[%s305 + $0x84] sm:$0xf]
        %v397 = vld [vmem:[%s305 + $0x88] sm:$0xf]
        %v398 = vld [vmem:[%s305 + $0x8c] sm:$0xf]
        %v399 = vld [vmem:[#allocation9] sm:$0xf]
        %v400 = vld [vmem:[#allocation9 + $0x4] sm:$0xf]
        %v401 = vld [vmem:[#allocation9 + $0x8] sm:$0xf]
        %v402 = vld [vmem:[#allocation9 + $0xc] sm:$0xf]
        %v403 = vld [vmem:[#allocation9 + $0x10] sm:$0xf]
        %v404 = vld [vmem:[#allocation9 + $0x14] sm:$0xf]
        %v405 = vld [vmem:[#allocation9 + $0x18] sm:$0xf]
        %v406 = vld [vmem:[#allocation9 + $0x1c] sm:$0xf]
        %v407 = vld [vmem:[#allocation9 + $0x20] sm:$0xf]
        %v408 = vld [vmem:[#allocation9 + $0x24] sm:$0xf]
        %v409 = vld [vmem:[#allocation9 + $0x28] sm:$0xf]
        %v410 = vld [vmem:[#allocation9 + $0x2c] sm:$0xf]
        %v411 = vld [vmem:[#allocation9 + $0x30] sm:$0xf]
        %v412 = vld [vmem:[#allocation9 + $0x34] sm:$0xf]
        %v413 = vld [vmem:[#allocation9 + $0x38] sm:$0xf]
        %v414 = vld [vmem:[#allocation9 + $0x3c] sm:$0xf]
        %v451 = vunpack.c.l.b16 %v363
        %v452 = vunpack.c.l.b16 %v364
        %v453 = vunpack.c.l.b16 %v365
        %v454 = vunpack.c.l.b16 %v366
        %v455 = vunpack.c.l.b16 %v367
        %v456 = vunpack.c.l.b16 %v368
        %v457 = vunpack.c.l.b16 %v369
        %v458 = vunpack.c.l.b16 %v370
        %v459 = vunpack.c.l.b16 %v371
        %v460 = vunpack.c.l.b16 %v372
        %v461 = vunpack.c.l.b16 %v373
        %v462 = vunpack.c.l.b16 %v374
        %v463 = vunpack.c.l.b16 %v375
        %v464 = vunpack.c.l.b16 %v376
        %v465 = vunpack.c.l.b16 %v377
        %v466 = vunpack.c.l.b16 %v378
        %v467 = vunpack.c.l.b16 %v379
        %v468 = vunpack.c.l.b16 %v380
        %v469 = vunpack.c.l.b16 %v381
        %v470 = vunpack.c.l.b16 %v382
        %v471 = vunpack.c.l.b16 %v383
        %v472 = vunpack.c.l.b16 %v384
        %v473 = vunpack.c.l.b16 %v385
        %v474 = vunpack.c.l.b16 %v386
        %v475 = vunpack.c.l.b16 %v387
        %v476 = vunpack.c.l.b16 %v388
        %v477 = vunpack.c.l.b16 %v389
        %v478 = vunpack.c.l.b16 %v390
        %v479 = vunpack.c.l.b16 %v391
        %v480 = vunpack.c.l.b16 %v392
        %v481 = vunpack.c.l.b16 %v393
        %v482 = vunpack.c.l.b16 %v394
        %v483 = vunpack.c.l.b16 %v395
        %v484 = vunpack.c.l.b16 %v396
        %v485 = vunpack.c.l.b16 %v397
        %v486 = vunpack.c.l.b16 %v398
        %v487 = vpack.c.b16 %v452, %v451
        %v488 = vpack.c.b16 %v454, %v453
        %v489 = vpack.c.b16 %v456, %v455
        %v490 = vpack.c.b16 %v458, %v457
        %v491 = vpack.c.b16 %v460, %v459
        %v492 = vpack.c.b16 %v462, %v461
        %v493 = vpack.c.b16 %v464, %v463
        %v494 = vpack.c.b16 %v466, %v465
        %v495 = vpack.c.b16 %v468, %v467
        %v496 = vpack.c.b16 %v470, %v469
        %v497 = vpack.c.b16 %v472, %v471
        %v498 = vpack.c.b16 %v474, %v473
        %v499 = vpack.c.b16 %v476, %v475
        %v500 = vpack.c.b16 %v478, %v477
        %v501 = vpack.c.b16 %v480, %v479
        %v502 = vpack.c.b16 %v482, %v481
        %v503 = vpack.c.b16 %v484, %v483
        %v504 = vpack.c.b16 %v486, %v485
        %v539 = vunpack.c.l.b16 %v399
        %v540 = vunpack.c.l.b16 %v400
        %v541 = vunpack.c.l.b16 %v401
        %v542 = vunpack.c.l.b16 %v402
        %v543 = vunpack.c.l.b16 %v403
        %v544 = vunpack.c.l.b16 %v404
        %v545 = vunpack.c.l.b16 %v405
        %v546 = vunpack.c.l.b16 %v406
        %v547 = vunpack.c.l.b16 %v407
        %v548 = vunpack.c.l.b16 %v408
        %v549 = vunpack.c.l.b16 %v409
        %v550 = vunpack.c.l.b16 %v410
        %v551 = vunpack.c.l.b16 %v411
        %v552 = vunpack.c.l.b16 %v412
        %v553 = vunpack.c.l.b16 %v413
        %v554 = vunpack.c.l.b16 %v414
        %v555 = vpack.c.b16 %v540, %v539
        %v556 = vpack.c.b16 %v542, %v541
        %v557 = vpack.c.b16 %v544, %v543
        %v558 = vpack.c.b16 %v546, %v545
        %v559 = vpack.c.b16 %v548, %v547
        %v560 = vpack.c.b16 %v550, %v549
        %v561 = vpack.c.b16 %v552, %v551
        %v562 = vpack.c.b16 %v554, %v553
        %571 = vmatprep.subr.bf16.mxu0 0
        %572 = vmatpush1.bf16.msra.mxu0 %v555
        %573 = vmatprep.subr.bf16.mxu0 0
        %574 = vmatpush1.bf16.msra.mxu0 %v556
        %575 = vmatprep.subr.bf16.mxu0 0
        %576 = vmatpush1.bf16.msra.mxu0 %v557
        %577 = vmatprep.subr.bf16.mxu0 0
        %578 = vmatpush1.bf16.msra.mxu0 %v558
        %579 = vmatprep.subr.bf16.mxu0 0
        %580 = vmatpush1.bf16.msra.mxu0 %v559
        %581 = vmatprep.subr.bf16.mxu0 0
        %582 = vmatpush1.bf16.msra.mxu0 %v560
        %583 = vmatprep.subr.bf16.mxu0 0
        %584 = vmatpush1.bf16.msra.mxu0 %v561
        %585 = vmatprep.subr.bf16.mxu0 0
        %586 = vmatpush1.bf16.msra.mxu0 %v562
        %587 = vmatprep.subr.bf16.mxu0 0
        %588 = vmatpush1.bf16.msra.mxu0 0
        %589 = vmatprep.subr.bf16.mxu0 0
        %590 = vmatpush1.bf16.msra.mxu0 0
        %591 = vmatprep.subr.bf16.mxu0 0
        %592 = vmatpush1.bf16.msra.mxu0 0
        %593 = vmatprep.subr.bf16.mxu0 0
        %594 = vmatpush1.bf16.msra.mxu0 0
        %595 = vmatprep.subr.bf16.mxu0 0
        %596 = vmatpush1.bf16.msra.mxu0 0
        %597 = vmatprep.subr.bf16.mxu0 0
        %598 = vmatpush1.bf16.msra.mxu0 0
        %599 = vmatprep.subr.bf16.mxu0 0
        %600 = vmatpush1.bf16.msra.mxu0 0
        %601 = vmatprep.subr.bf16.mxu0 0
        %602 = vmatpush1.bf16.msra.mxu0 0
        %603 = vmatprep.mubr.bf16.mxu0 0
        %604 = vmatmul.mubr.bf16.gmra.mrb[0].mxu0 %v487
        %v605 = vpop.f32.mrb[0].mxu0
        %v606 = vadd.f32 0.0, %v605
        %v607 = vpop.f32.mrb[0].mxu0
        %v608 = vpop.f32.mrb[0].mxu0
        %v609 = vadd.f32 0.0, %v608
        %v610 = vpop.f32.mrb[0].mxu0
        %611 = vmatprep.mubr.bf16.mxu0 0
        %612 = vmatmul.mubr.bf16.gmra.mrb[0].mxu0 %v488
        %v613 = vpop.f32.mrb[0].mxu0
        %v614 = vadd.f32 0.0, %v613
        %v615 = vpop.f32.mrb[0].mxu0
        %v616 = vpop.f32.mrb[0].mxu0
        %v617 = vadd.f32 0.0, %v616
        %v618 = vpop.f32.mrb[0].mxu0
        %619 = vmatprep.mubr.bf16.mxu0 0
        %620 = vmatmul.mubr.bf16.gmra.mrb[0].mxu0 %v489
        %v621 = vpop.f32.mrb[0].mxu0
        %v622 = vadd.f32 0.0, %v621
        %v623 = vpop.f32.mrb[0].mxu0
        %v624 = vpop.f32.mrb[0].mxu0
        %v625 = vadd.f32 0.0, %v624
        %v626 = vpop.f32.mrb[0].mxu0
        %627 = vmatprep.mubr.bf16.mxu0 0
        %628 = vmatmul.mubr.bf16.gmra.mrb[0].mxu0 %v490
        %v629 = vpop.f32.mrb[0].mxu0
        %v630 = vadd.f32 0.0, %v629
        %v631 = vpop.f32.mrb[0].mxu0
        %v632 = vpop.f32.mrb[0].mxu0
        %v633 = vadd.f32 0.0, %v632
        %v634 = vpop.f32.mrb[0].mxu0
        %635 = vmatprep.mubr.bf16.mxu0 0
        %636 = vmatmul.mubr.bf16.gmra.mrb[0].mxu0 %v491
        %v637 = vpop.f32.mrb[0].mxu0
        %v638 = vadd.f32 0.0, %v637
        %v639 = vpop.f32.mrb[0].mxu0
        %v640 = vpop.f32.mrb[0].mxu0
        %v641 = vadd.f32 0.0, %v640
        %v642 = vpop.f32.mrb[0].mxu0
        %643 = vmatprep.mubr.bf16.mxu0 0
        %644 = vmatmul.mubr.bf16.gmra.mrb[0].mxu0 %v492
        %v645 = vpop.f32.mrb[0].mxu0
        %v646 = vadd.f32 0.0, %v645
        %v647 = vpop.f32.mrb[0].mxu0
        %v648 = vpop.f32.mrb[0].mxu0
        %v649 = vadd.f32 0.0, %v648
        %v650 = vpop.f32.mrb[0].mxu0
        %651 = vmatprep.mubr.bf16.mxu0 0
        %652 = vmatmul.mubr.bf16.gmra.mrb[0].mxu0 %v493
        %v653 = vpop.f32.mrb[0].mxu0
        %v654 = vadd.f32 0.0, %v653
        %v655 = vpop.f32.mrb[0].mxu0
        %v656 = vpop.f32.mrb[0].mxu0
        %v657 = vadd.f32 0.0, %v656
        %v658 = vpop.f32.mrb[0].mxu0
        %659 = vmatprep.mubr.bf16.mxu0 0
        %660 = vmatmul.mubr.bf16.gmra.mrb[0].mxu0 %v494
        %v661 = vpop.f32.mrb[0].mxu0
        %v662 = vadd.f32 0.0, %v661
        %v663 = vpop.f32.mrb[0].mxu0
        %v664 = vpop.f32.mrb[0].mxu0
        %v665 = vadd.f32 0.0, %v664
        %v666 = vpop.f32.mrb[0].mxu0
        %667 = vmatprep.mubr.bf16.mxu0 0
        %668 = vmatmul.mubr.bf16.gmra.mrb[0].mxu0 %v495
        %v669 = vpop.f32.mrb[0].mxu0
        %v670 = vadd.f32 0.0, %v669
        %v671 = vpop.f32.mrb[0].mxu0
        %v672 = vpop.f32.mrb[0].mxu0
        %v673 = vadd.f32 0.0, %v672
        %v674 = vpop.f32.mrb[0].mxu0
        %675 = vmatprep.mubr.bf16.mxu0 0
        %676 = vmatmul.mubr.bf16.gmra.mrb[0].mxu0 %v496
        %v677 = vpop.f32.mrb[0].mxu0
        %v678 = vadd.f32 0.0, %v677
        %v679 = vpop.f32.mrb[0].mxu0
        %v680 = vpop.f32.mrb[0].mxu0
        %v681 = vadd.f32 0.0, %v680
        %v682 = vpop.f32.mrb[0].mxu0
        %683 = vmatprep.mubr.bf16.mxu0 0
        %684 = vmatmul.mubr.bf16.gmra.mrb[0].mxu0 %v497
        %v685 = vpop.f32.mrb[0].mxu0
        %v686 = vadd.f32 0.0, %v685
        %v687 = vpop.f32.mrb[0].mxu0
        %v688 = vpop.f32.mrb[0].mxu0
        %v689 = vadd.f32 0.0, %v688
        %v690 = vpop.f32.mrb[0].mxu0
        %691 = vmatprep.mubr.bf16.mxu0 0
        %692 = vmatmul.mubr.bf16.gmra.mrb[0].mxu0 %v498
        %v693 = vpop.f32.mrb[0].mxu0
        %v694 = vadd.f32 0.0, %v693
        %v695 = vpop.f32.mrb[0].mxu0
        %v696 = vpop.f32.mrb[0].mxu0
        %v697 = vadd.f32 0.0, %v696
        %v698 = vpop.f32.mrb[0].mxu0
        %699 = vmatprep.mubr.bf16.mxu0 0
        %700 = vmatmul.mubr.bf16.gmra.mrb[0].mxu0 %v499
        %v701 = vpop.f32.mrb[0].mxu0
        %v702 = vadd.f32 0.0, %v701
        %v703 = vpop.f32.mrb[0].mxu0
        %v704 = vpop.f32.mrb[0].mxu0
        %v705 = vadd.f32 0.0, %v704
        %v706 = vpop.f32.mrb[0].mxu0
        %707 = vmatprep.mubr.bf16.mxu0 0
        %708 = vmatmul.mubr.bf16.gmra.mrb[0].mxu0 %v500
        %v709 = vpop.f32.mrb[0].mxu0
        %v710 = vadd.f32 0.0, %v709
        %v711 = vpop.f32.mrb[0].mxu0
        %v712 = vpop.f32.mrb[0].mxu0
        %v713 = vadd.f32 0.0, %v712
        %v714 = vpop.f32.mrb[0].mxu0
        %715 = vmatprep.mubr.bf16.mxu0 0
        %716 = vmatmul.mubr.bf16.gmra.mrb[0].mxu0 %v501
        %v717 = vpop.f32.mrb[0].mxu0
        %v718 = vadd.f32 0.0, %v717
        %v719 = vpop.f32.mrb[0].mxu0
        %v720 = vpop.f32.mrb[0].mxu0
        %v721 = vadd.f32 0.0, %v720
        %v722 = vpop.f32.mrb[0].mxu0
        %723 = vmatprep.mubr.bf16.mxu0 0
        %724 = vmatmul.mubr.bf16.gmra.mrb[0].mxu0 %v502
        %v725 = vpop.f32.mrb[0].mxu0
        %v726 = vadd.f32 0.0, %v725
        %v727 = vpop.f32.mrb[0].mxu0
        %v728 = vpop.f32.mrb[0].mxu0
        %v729 = vadd.f32 0.0, %v728
        %v730 = vpop.f32.mrb[0].mxu0
        %731 = vmatprep.mubr.bf16.mxu0 0
        %732 = vmatmul.mubr.bf16.gmra.mrb[0].mxu0 %v503
        %v733 = vpop.f32.mrb[0].mxu0
        %v734 = vadd.f32 0.0, %v733
        %v735 = vpop.f32.mrb[0].mxu0
        %v736 = vpop.f32.mrb[0].mxu0
        %v737 = vadd.f32 0.0, %v736
        %v738 = vpop.f32.mrb[0].mxu0
        %739 = vmatprep.mubr.bf16.mxu0 0
        %740 = vmatmul.mubr.bf16.gmra.mrb[0].mxu0 %v504
        %v741 = vpop.f32.mrb[0].mxu0
        %v742 = vadd.f32 0.0, %v741
        %v743 = vpop.f32.mrb[0].mxu0
        %v744 = vpop.f32.mrb[0].mxu0
        %v745 = vadd.f32 0.0, %v744
        %v746 = vpop.f32.mrb[0].mxu0
        %747 = vdwg.mxu0
        %v748 = vmax.f32 %v606, 0.0
        %v749 = vmax.f32 %v609, 0.0
        %v750 = vmax.f32 %v614, 0.0
        %v751 = vmax.f32 %v617, 0.0
        %v752 = vmax.f32 %v622, 0.0
        %v753 = vmax.f32 %v625, 0.0
        %v754 = vmax.f32 %v630, 0.0
        %v755 = vmax.f32 %v633, 0.0
        %v756 = vmax.f32 %v638, 0.0
        %v757 = vmax.f32 %v641, 0.0
        %v758 = vmax.f32 %v646, 0.0
        %v759 = vmax.f32 %v649, 0.0
        %v760 = vmax.f32 %v654, 0.0
        %v761 = vmax.f32 %v657, 0.0
        %v762 = vmax.f32 %v662, 0.0
        %v763 = vmax.f32 %v665, 0.0
        %v764 = vmax.f32 %v670, 0.0
        %v765 = vmax.f32 %v673, 0.0
        %v766 = vmax.f32 %v678, 0.0
        %v767 = vmax.f32 %v681, 0.0
        %v768 = vmax.f32 %v686, 0.0
        %v769 = vmax.f32 %v689, 0.0
        %v770 = vmax.f32 %v694, 0.0
        %v771 = vmax.f32 %v697, 0.0
        %v772 = vmax.f32 %v702, 0.0
        %v773 = vmax.f32 %v705, 0.0
        %v774 = vmax.f32 %v710, 0.0
        %v775 = vmax.f32 %v713, 0.0
        %v776 = vmax.f32 %v718, 0.0
        %v777 = vmax.f32 %v721, 0.0
        %v778 = vmax.f32 %v726, 0.0
        %v779 = vmax.f32 %v729, 0.0
        %v780 = vmax.f32 %v734, 0.0
        %v781 = vmax.f32 %v737, 0.0
        %v782 = vmax.f32 %v742, 0.0
        %v783 = vmax.f32 %v745, 0.0
        %v784 = vld [vmem:[%s313] sm:$0x1]
        %v786 = vlaneseq
        %v787 = vshrl.u32 %v786, 7
        %v788 = vsub.s32 0, %v787
        %v789 = vrot.slane %v784, %v788
        %v791 = vadd.f32 %v748, %v789
        %v792 = vadd.f32 %v749, %v789
        %v793 = vadd.f32 %v750, %v789
        %v794 = vadd.f32 %v751, %v789
        %v795 = vadd.f32 %v752, %v789
        %v796 = vadd.f32 %v753, %v789
        %v797 = vadd.f32 %v754, %v789
        %v798 = vadd.f32 %v755, %v789
        %v799 = vadd.f32 %v756, %v789
        %v800 = vadd.f32 %v757, %v789
        %v801 = vadd.f32 %v758, %v789
        %v802 = vadd.f32 %v759, %v789
        %v803 = vadd.f32 %v760, %v789
        %v804 = vadd.f32 %v761, %v789
        %v805 = vadd.f32 %v762, %v789
        %v806 = vadd.f32 %v763, %v789
        %v807 = vadd.f32 %v764, %v789
        %v808 = vadd.f32 %v765, %v789
        %v809 = vadd.f32 %v766, %v789
        %v810 = vadd.f32 %v767, %v789
        %v811 = vadd.f32 %v768, %v789
        %v812 = vadd.f32 %v769, %v789
        %v813 = vadd.f32 %v770, %v789
        %v814 = vadd.f32 %v771, %v789
        %v815 = vadd.f32 %v772, %v789
        %v816 = vadd.f32 %v773, %v789
        %v817 = vadd.f32 %v774, %v789
        %v818 = vadd.f32 %v775, %v789
        %v819 = vadd.f32 %v776, %v789
        %v820 = vadd.f32 %v777, %v789
        %v821 = vadd.f32 %v778, %v789
        %v822 = vadd.f32 %v779, %v789
        %v823 = vadd.f32 %v780, %v789
        %v824 = vadd.f32 %v781, %v789
        %v825 = vadd.f32 %v782, %v789
        %v826 = vadd.f32 %v783, %v789
        %v827 = vld [vmem:[#allocation8] sm:$0xff]
        %v828 = vld [vmem:[#allocation8 + $0x8] sm:$0xff]
        %v829 = vld [vmem:[#allocation8 + $0x10] sm:$0xff]
        %v830 = vld [vmem:[#allocation8 + $0x18] sm:$0xff]
        %v831 = vld [vmem:[#allocation8 + $0x20] sm:$0xff]
        %v832 = vld [vmem:[#allocation8 + $0x28] sm:$0xff]
        %v833 = vld [vmem:[#allocation8 + $0x30] sm:$0xff]
        %v834 = vld [vmem:[#allocation8 + $0x38] sm:$0xff]
        %v835 = vld [vmem:[#allocation8 + $0x40] sm:$0xff]
        %v836 = vld [vmem:[#allocation8 + $0x48] sm:$0xff]
        %v837 = vld [vmem:[#allocation8 + $0x50] sm:$0xff]
        %v838 = vld [vmem:[#allocation8 + $0x58] sm:$0xff]
        %v839 = vld [vmem:[#allocation8 + $0x60] sm:$0xff]
        %v840 = vld [vmem:[#allocation8 + $0x68] sm:$0xff]
        %v841 = vld [vmem:[#allocation8 + $0x70] sm:$0xff]
        %v842 = vld [vmem:[#allocation8 + $0x78] sm:$0xff]
        %v843 = vld [vmem:[#allocation8 + $0x80] sm:$0xff]
        %v844 = vld [vmem:[#allocation8 + $0x88] sm:$0xff]
        %v845 = vld [vmem:[#allocation8 + $0x90] sm:$0xff]
        %v846 = vld [vmem:[#allocation8 + $0x98] sm:$0xff]
        %v847 = vld [vmem:[#allocation8 + $0xa0] sm:$0xff]
        %v848 = vld [vmem:[#allocation8 + $0xa8] sm:$0xff]
        %v849 = vld [vmem:[#allocation8 + $0xb0] sm:$0xff]
        %v850 = vld [vmem:[#allocation8 + $0xb8] sm:$0xff]
        %v851 = vld [vmem:[#allocation8 + $0xc0] sm:$0xff]
        %v852 = vld [vmem:[#allocation8 + $0xc8] sm:$0xff]
        %v853 = vld [vmem:[#allocation8 + $0xd0] sm:$0xff]
        %v854 = vld [vmem:[#allocation8 + $0xd8] sm:$0xff]
        %v855 = vld [vmem:[#allocation8 + $0xe0] sm:$0xff]
        %v856 = vld [vmem:[#allocation8 + $0xe8] sm:$0xff]
        %v857 = vld [vmem:[#allocation8 + $0xf0] sm:$0xff]
        %v858 = vld [vmem:[#allocation8 + $0xf8] sm:$0xff]
        %v859 = vld [vmem:[#allocation8 + $0x100] sm:$0xff]
        %v860 = vld [vmem:[#allocation8 + $0x108] sm:$0xff]
        %v861 = vld [vmem:[#allocation8 + $0x110] sm:$0xff]
        %v862 = vld [vmem:[#allocation8 + $0x118] sm:$0xff]
        %864 = vset.pattern.permute.xlu0 0
        %865 = vperm.xlu0 %864, %v827
        %v866 = vpop.permute.xlu0 %865
        %869 = vset.pattern.permute.xlu0 0
        %870 = vperm.xlu0 %869, %v828
        %v871 = vpop.permute.xlu0 %870
        %874 = vset.pattern.permute.xlu0 0
        %875 = vperm.xlu0 %874, %v829
        %v876 = vpop.permute.xlu0 %875
        %879 = vset.pattern.permute.xlu0 0
        %880 = vperm.xlu0 %879, %v830
        %v881 = vpop.permute.xlu0 %880
        %884 = vset.pattern.permute.xlu0 0
        %885 = vperm.xlu0 %884, %v831
        %v886 = vpop.permute.xlu0 %885
        %889 = vset.pattern.permute.xlu0 0
        %890 = vperm.xlu0 %889, %v832
        %v891 = vpop.permute.xlu0 %890
        %894 = vset.pattern.permute.xlu0 0
        %895 = vperm.xlu0 %894, %v833
        %v896 = vpop.permute.xlu0 %895
        %899 = vset.pattern.permute.xlu0 0
        %900 = vperm.xlu0 %899, %v834
        %v901 = vpop.permute.xlu0 %900
        %904 = vset.pattern.permute.xlu0 0
        %905 = vperm.xlu0 %904, %v835
        %v906 = vpop.permute.xlu0 %905
        %909 = vset.pattern.permute.xlu0 0
        %910 = vperm.xlu0 %909, %v836
        %v911 = vpop.permute.xlu0 %910
        %914 = vset.pattern.permute.xlu0 0
        %915 = vperm.xlu0 %914, %v837
        %v916 = vpop.permute.xlu0 %915
        %919 = vset.pattern.permute.xlu0 0
        %920 = vperm.xlu0 %919, %v838
        %v921 = vpop.permute.xlu0 %920
        %924 = vset.pattern.permute.xlu0 0
        %925 = vperm.xlu0 %924, %v839
        %v926 = vpop.permute.xlu0 %925
        %929 = vset.pattern.permute.xlu0 0
        %930 = vperm.xlu0 %929, %v840
        %v931 = vpop.permute.xlu0 %930
        %934 = vset.pattern.permute.xlu0 0
        %935 = vperm.xlu0 %934, %v841
        %v936 = vpop.permute.xlu0 %935
        %939 = vset.pattern.permute.xlu0 0
        %940 = vperm.xlu0 %939, %v842
        %v941 = vpop.permute.xlu0 %940
        %944 = vset.pattern.permute.xlu0 0
        %945 = vperm.xlu0 %944, %v843
        %v946 = vpop.permute.xlu0 %945
        %949 = vset.pattern.permute.xlu0 0
        %950 = vperm.xlu0 %949, %v844
        %v951 = vpop.permute.xlu0 %950
        %954 = vset.pattern.permute.xlu0 0
        %955 = vperm.xlu0 %954, %v845
        %v956 = vpop.permute.xlu0 %955
        %959 = vset.pattern.permute.xlu0 0
        %960 = vperm.xlu0 %959, %v846
        %v961 = vpop.permute.xlu0 %960
        %964 = vset.pattern.permute.xlu0 0
        %965 = vperm.xlu0 %964, %v847
        %v966 = vpop.permute.xlu0 %965
        %969 = vset.pattern.permute.xlu0 0
        %970 = vperm.xlu0 %969, %v848
        %v971 = vpop.permute.xlu0 %970
        %974 = vset.pattern.permute.xlu0 0
        %975 = vperm.xlu0 %974, %v849
        %v976 = vpop.permute.xlu0 %975
        %979 = vset.pattern.permute.xlu0 0
        %980 = vperm.xlu0 %979, %v850
        %v981 = vpop.permute.xlu0 %980
        %984 = vset.pattern.permute.xlu0 0
        %985 = vperm.xlu0 %984, %v851
        %v986 = vpop.permute.xlu0 %985
        %989 = vset.pattern.permute.xlu0 0
        %990 = vperm.xlu0 %989, %v852
        %v991 = vpop.permute.xlu0 %990
        %994 = vset.pattern.permute.xlu0 0
        %995 = vperm.xlu0 %994, %v853
        %v996 = vpop.permute.xlu0 %995
        %999 = vset.pattern.permute.xlu0 0
        %1000 = vperm.xlu0 %999, %v854
        %v1001 = vpop.permute.xlu0 %1000
        %1004 = vset.pattern.permute.xlu0 0
        %1005 = vperm.xlu0 %1004, %v855
        %v1006 = vpop.permute.xlu0 %1005
        %1009 = vset.pattern.permute.xlu0 0
        %1010 = vperm.xlu0 %1009, %v856
        %v1011 = vpop.permute.xlu0 %1010
        %1014 = vset.pattern.permute.xlu0 0
        %1015 = vperm.xlu0 %1014, %v857
        %v1016 = vpop.permute.xlu0 %1015
        %1019 = vset.pattern.permute.xlu0 0
        %1020 = vperm.xlu0 %1019, %v858
        %v1021 = vpop.permute.xlu0 %1020
        %1024 = vset.pattern.permute.xlu0 0
        %1025 = vperm.xlu0 %1024, %v859
        %v1026 = vpop.permute.xlu0 %1025
        %1029 = vset.pattern.permute.xlu0 0
        %1030 = vperm.xlu0 %1029, %v860
        %v1031 = vpop.permute.xlu0 %1030
        %1034 = vset.pattern.permute.xlu0 0
        %1035 = vperm.xlu0 %1034, %v861
        %v1036 = vpop.permute.xlu0 %1035
        %1039 = vset.pattern.permute.xlu0 0
        %1040 = vperm.xlu0 %1039, %v862
        %v1041 = vpop.permute.xlu0 %1040
        %v1043 = vmul.f32 %v791, %v866
        %v1044 = vmul.f32 %v792, %v871
        %v1045 = vmul.f32 %v793, %v876
        %v1046 = vmul.f32 %v794, %v881
        %v1047 = vmul.f32 %v795, %v886
        %v1048 = vmul.f32 %v796, %v891
        %v1049 = vmul.f32 %v797, %v896
        %v1050 = vmul.f32 %v798, %v901
        %v1051 = vmul.f32 %v799, %v906
        %v1052 = vmul.f32 %v800, %v911
        %v1053 = vmul.f32 %v801, %v916
        %v1054 = vmul.f32 %v802, %v921
        %v1055 = vmul.f32 %v803, %v926
        %v1056 = vmul.f32 %v804, %v931
        %v1057 = vmul.f32 %v805, %v936
        %v1058 = vmul.f32 %v806, %v941
        %v1059 = vmul.f32 %v807, %v946
        %v1060 = vmul.f32 %v808, %v951
        %v1061 = vmul.f32 %v809, %v956
        %v1062 = vmul.f32 %v810, %v961
        %v1063 = vmul.f32 %v811, %v966
        %v1064 = vmul.f32 %v812, %v971
        %v1065 = vmul.f32 %v813, %v976
        %v1066 = vmul.f32 %v814, %v981
        %v1067 = vmul.f32 %v815, %v986
        %v1068 = vmul.f32 %v816, %v991
        %v1069 = vmul.f32 %v817, %v996
        %v1070 = vmul.f32 %v818, %v1001
        %v1071 = vmul.f32 %v819, %v1006
        %v1072 = vmul.f32 %v820, %v1011
        %v1073 = vmul.f32 %v821, %v1016
        %v1074 = vmul.f32 %v822, %v1021
        %v1075 = vmul.f32 %v823, %v1026
        %v1076 = vmul.f32 %v824, %v1031
        %v1077 = vmul.f32 %v825, %v1036
        %v1078 = vmul.f32 %v826, %v1041
        %1079 = vst [vmem:[#allocation2] sm:$0xff] 0
        %1080 = vst [vmem:[#allocation2 + $0x8] sm:$0xff] 0
        %1081 = vst [vmem:[#allocation2 + $0xa0] sm:$0xff] 0
        %1082 = vst [vmem:[#allocation2 + $0xa8] sm:$0xff] 0
        %v1083 = vpack.c.bf16 %v1044, %v1043
        %v1084 = vpack.c.bf16 %v1046, %v1045
        %v1085 = vpack.c.bf16 %v1048, %v1047
        %v1086 = vpack.c.bf16 %v1050, %v1049
        %v1087 = vpack.c.bf16 %v1052, %v1051
        %v1088 = vpack.c.bf16 %v1054, %v1053
        %v1089 = vpack.c.bf16 %v1056, %v1055
        %v1090 = vpack.c.bf16 %v1058, %v1057
        %v1091 = vpack.c.bf16 %v1060, %v1059
        %v1092 = vpack.c.bf16 %v1062, %v1061
        %v1093 = vpack.c.bf16 %v1064, %v1063
        %v1094 = vpack.c.bf16 %v1066, %v1065
        %v1095 = vpack.c.bf16 %v1068, %v1067
        %v1096 = vpack.c.bf16 %v1070, %v1069
        %v1097 = vpack.c.bf16 %v1072, %v1071
        %v1098 = vpack.c.bf16 %v1074, %v1073
        %v1099 = vpack.c.bf16 %v1076, %v1075
        %v1100 = vpack.c.bf16 %v1078, %v1077
        %1101 = vst [vmem:[#allocation2 + $0x10] sm:$0xff] %v1083
        %1102 = vst [vmem:[#allocation2 + $0x18] sm:$0xff] %v1084
        %1103 = vst [vmem:[#allocation2 + $0x20] sm:$0xff] %v1085
        %1104 = vst [vmem:[#allocation2 + $0x28] sm:$0xff] %v1086
        %1105 = vst [vmem:[#allocation2 + $0x30] sm:$0xff] %v1087
        %1106 = vst [vmem:[#allocation2 + $0x38] sm:$0xff] %v1088
        %1107 = vst [vmem:[#allocation2 + $0x40] sm:$0xff] %v1089
        %1108 = vst [vmem:[#allocation2 + $0x48] sm:$0xff] %v1090
        %1109 = vst [vmem:[#allocation2 + $0x50] sm:$0xff] %v1091
        %1110 = vst [vmem:[#allocation2 + $0x58] sm:$0xff] %v1092
        %1111 = vst [vmem:[#allocation2 + $0x60] sm:$0xff] %v1093
        %1112 = vst [vmem:[#allocation2 + $0x68] sm:$0xff] %v1094
        %1113 = vst [vmem:[#allocation2 + $0x70] sm:$0xff] %v1095
        %1114 = vst [vmem:[#allocation2 + $0x78] sm:$0xff] %v1096
        %1115 = vst [vmem:[#allocation2 + $0x80] sm:$0xff] %v1097
        %1116 = vst [vmem:[#allocation2 + $0x88] sm:$0xff] %v1098
        %1117 = vst [vmem:[#allocation2 + $0x90] sm:$0xff] %v1099
        %1118 = vst [vmem:[#allocation2 + $0x98] sm:$0xff] %v1100
        %v1119 = vld [vmem:[#allocation12] sm:$0xf]
        %v1120 = vld [vmem:[#allocation12 + $0x4] sm:$0xf]
        %v1121 = vld [vmem:[#allocation12 + $0x8] sm:$0xf]
        %v1122 = vld [vmem:[#allocation12 + $0xc] sm:$0xf]
        %v1123 = vld [vmem:[#allocation12 + $0x10] sm:$0xf]
        %v1124 = vld [vmem:[#allocation12 + $0x14] sm:$0xf]
        %v1125 = vld [vmem:[#allocation12 + $0x18] sm:$0xf]
        %v1126 = vld [vmem:[#allocation12 + $0x1c] sm:$0xf]
        %v1127 = vld [vmem:[#allocation12 + $0x20] sm:$0xf]
        %v1128 = vld [vmem:[#allocation12 + $0x24] sm:$0xf]
        %v1129 = vld [vmem:[#allocation12 + $0x28] sm:$0xf]
        %v1130 = vld [vmem:[#allocation12 + $0x2c] sm:$0xf]
        %v1131 = vld [vmem:[#allocation12 + $0x30] sm:$0xf]
        %v1132 = vld [vmem:[#allocation12 + $0x34] sm:$0xf]
        %v1133 = vld [vmem:[#allocation12 + $0x38] sm:$0xf]
        %v1134 = vld [vmem:[#allocation12 + $0x3c] sm:$0xf]
        %v1135 = vld [vmem:[#allocation2] sm:$0xc0]
        %v1136 = vld [vmem:[#allocation2 + $0x8] sm:$0xff]
        %v1137 = vld [vmem:[#allocation2 + $0x10] sm:$0xff]
        %v1138 = vld [vmem:[#allocation2 + $0x18] sm:$0xff]
        %v1139 = vld [vmem:[#allocation2 + $0x20] sm:$0xff]
        %v1140 = vld [vmem:[#allocation2 + $0x28] sm:$0xff]
        %v1141 = vld [vmem:[#allocation2 + $0x30] sm:$0xff]
        %v1142 = vld [vmem:[#allocation2 + $0x38] sm:$0xff]
        %v1143 = vld [vmem:[#allocation2 + $0x40] sm:$0xff]
        %v1144 = vld [vmem:[#allocation2 + $0x48] sm:$0xff]
        %v1145 = vld [vmem:[#allocation2 + $0x50] sm:$0xff]
        %v1146 = vld [vmem:[#allocation2 + $0x58] sm:$0xff]
        %v1147 = vld [vmem:[#allocation2 + $0x60] sm:$0xff]
        %v1148 = vld [vmem:[#allocation2 + $0x68] sm:$0xff]
        %v1149 = vld [vmem:[#allocation2 + $0x70] sm:$0xff]
        %v1150 = vld [vmem:[#allocation2 + $0x78] sm:$0xff]
        %v1151 = vld [vmem:[#allocation2 + $0x80] sm:$0xff]
        %v1152 = vld [vmem:[#allocation2 + $0x88] sm:$0xff]
        %v1153 = vld [vmem:[#allocation2 + $0x90] sm:$0x7f]
        %v1154 = vld [vmem:[#allocation11] sm:$0xf]
        %v1155 = vld [vmem:[#allocation11 + $0x4] sm:$0xf]
        %v1156 = vld [vmem:[#allocation11 + $0x8] sm:$0xf]
        %v1157 = vld [vmem:[#allocation11 + $0xc] sm:$0xf]
        %v1158 = vld [vmem:[#allocation11 + $0x10] sm:$0xf]
        %v1159 = vld [vmem:[#allocation11 + $0x14] sm:$0xf]
        %v1160 = vld [vmem:[#allocation11 + $0x18] sm:$0xf]
        %v1161 = vld [vmem:[#allocation11 + $0x1c] sm:$0xf]
        %v1162 = vld [vmem:[#allocation11 + $0x20] sm:$0xf]
        %v1163 = vld [vmem:[#allocation11 + $0x24] sm:$0xf]
        %v1164 = vld [vmem:[#allocation11 + $0x28] sm:$0xf]
        %v1165 = vld [vmem:[#allocation11 + $0x2c] sm:$0xf]
        %v1166 = vld [vmem:[#allocation11 + $0x30] sm:$0xf]
        %v1167 = vld [vmem:[#allocation11 + $0x34] sm:$0xf]
        %v1168 = vld [vmem:[#allocation11 + $0x38] sm:$0xf]
        %v1169 = vld [vmem:[#allocation11 + $0x3c] sm:$0xf]
        %vm1170 = vsmask.f32 1280
        %v1172 = vshrl.u32 %v1135, 16
        %v1174 = vrot.slane %v1172, 6
        %v1175 = vshll.u32 %v1135, 16
        %v1177 = vrot.slane %v1175, 7
        %v1178 = vor.u32 %v1174, %v1177
        %v1180 = vshrl.u32 %v1136, 16
        %v1182 = vrot.slane %v1180, 6
        %v1183 = vshll.u32 %v1136, 16
        %v1185 = vrot.slane %v1183, 7
        %v1186 = vor.u32 %v1182, %v1185
        %v1187 = vsel %vm1170, %v1178, %v1186
        %v1189 = vshrl.u32 %v1137, 16
        %v1191 = vrot.slane %v1189, 6
        %v1192 = vshll.u32 %v1137, 16
        %v1194 = vrot.slane %v1192, 7
        %v1195 = vor.u32 %v1191, %v1194
        %v1196 = vsel %vm1170, %v1186, %v1195
        %v1198 = vshrl.u32 %v1138, 16
        %v1200 = vrot.slane %v1198, 6
        %v1201 = vshll.u32 %v1138, 16
        %v1203 = vrot.slane %v1201, 7
        %v1204 = vor.u32 %v1200, %v1203
        %v1205 = vsel %vm1170, %v1195, %v1204
        %v1207 = vshrl.u32 %v1139, 16
        %v1209 = vrot.slane %v1207, 6
        %v1210 = vshll.u32 %v1139, 16
        %v1212 = vrot.slane %v1210, 7
        %v1213 = vor.u32 %v1209, %v1212
        %v1214 = vsel %vm1170, %v1204, %v1213
        %v1216 = vshrl.u32 %v1140, 16
        %v1218 = vrot.slane %v1216, 6
        %v1219 = vshll.u32 %v1140, 16
        %v1221 = vrot.slane %v1219, 7
        %v1222 = vor.u32 %v1218, %v1221
        %v1223 = vsel %vm1170, %v1213, %v1222
        %v1225 = vshrl.u32 %v1141, 16
        %v1227 = vrot.slane %v1225, 6
        %v1228 = vshll.u32 %v1141, 16
        %v1230 = vrot.slane %v1228, 7
        %v1231 = vor.u32 %v1227, %v1230
        %v1232 = vsel %vm1170, %v1222, %v1231
        %v1234 = vshrl.u32 %v1142, 16
        %v1236 = vrot.slane %v1234, 6
        %v1237 = vshll.u32 %v1142, 16
        %v1239 = vrot.slane %v1237, 7
        %v1240 = vor.u32 %v1236, %v1239
        %v1241 = vsel %vm1170, %v1231, %v1240
        %v1243 = vshrl.u32 %v1143, 16
        %v1245 = vrot.slane %v1243, 6
        %v1246 = vshll.u32 %v1143, 16
        %v1248 = vrot.slane %v1246, 7
        %v1249 = vor.u32 %v1245, %v1248
        %v1250 = vsel %vm1170, %v1240, %v1249
        %v1252 = vshrl.u32 %v1144, 16
        %v1254 = vrot.slane %v1252, 6
        %v1255 = vshll.u32 %v1144, 16
        %v1257 = vrot.slane %v1255, 7
        %v1258 = vor.u32 %v1254, %v1257
        %v1259 = vsel %vm1170, %v1249, %v1258
        %v1261 = vshrl.u32 %v1145, 16
        %v1263 = vrot.slane %v1261, 6
        %v1264 = vshll.u32 %v1145, 16
        %v1266 = vrot.slane %v1264, 7
        %v1267 = vor.u32 %v1263, %v1266
        %v1268 = vsel %vm1170, %v1258, %v1267
        %v1270 = vshrl.u32 %v1146, 16
        %v1272 = vrot.slane %v1270, 6
        %v1273 = vshll.u32 %v1146, 16
        %v1275 = vrot.slane %v1273, 7
        %v1276 = vor.u32 %v1272, %v1275
        %v1277 = vsel %vm1170, %v1267, %v1276
        %v1279 = vshrl.u32 %v1147, 16
        %v1281 = vrot.slane %v1279, 6
        %v1282 = vshll.u32 %v1147, 16
        %v1284 = vrot.slane %v1282, 7
        %v1285 = vor.u32 %v1281, %v1284
        %v1286 = vsel %vm1170, %v1276, %v1285
        %v1288 = vshrl.u32 %v1148, 16
        %v1290 = vrot.slane %v1288, 6
        %v1291 = vshll.u32 %v1148, 16
        %v1293 = vrot.slane %v1291, 7
        %v1294 = vor.u32 %v1290, %v1293
        %v1295 = vsel %vm1170, %v1285, %v1294
        %v1297 = vshrl.u32 %v1149, 16
        %v1299 = vrot.slane %v1297, 6
        %v1300 = vshll.u32 %v1149, 16
        %v1302 = vrot.slane %v1300, 7
        %v1303 = vor.u32 %v1299, %v1302
        %v1304 = vsel %vm1170, %v1294, %v1303
        %v1306 = vshrl.u32 %v1150, 16
        %v1308 = vrot.slane %v1306, 6
        %v1309 = vshll.u32 %v1150, 16
        %v1311 = vrot.slane %v1309, 7
        %v1312 = vor.u32 %v1308, %v1311
        %v1313 = vsel %vm1170, %v1303, %v1312
        %v1315 = vshrl.u32 %v1151, 16
        %v1317 = vrot.slane %v1315, 6
        %v1318 = vshll.u32 %v1151, 16
        %v1320 = vrot.slane %v1318, 7
        %v1321 = vor.u32 %v1317, %v1320
        %v1322 = vsel %vm1170, %v1312, %v1321
        %v1324 = vshrl.u32 %v1152, 16
        %v1326 = vrot.slane %v1324, 6
        %v1327 = vshll.u32 %v1152, 16
        %v1329 = vrot.slane %v1327, 7
        %v1330 = vor.u32 %v1326, %v1329
        %v1331 = vsel %vm1170, %v1321, %v1330
        %v1333 = vshrl.u32 %v1153, 16
        %v1335 = vrot.slane %v1333, 6
        %v1336 = vshll.u32 %v1153, 16
        %v1338 = vrot.slane %v1336, 7
        %v1339 = vor.u32 %v1335, %v1338
        %v1340 = vsel %vm1170, %v1330, %v1339
        %v1375 = vunpack.c.l.b16 %v1154
        %v1376 = vunpack.c.l.b16 %v1155
        %v1377 = vunpack.c.l.b16 %v1156
        %v1378 = vunpack.c.l.b16 %v1157
        %v1379 = vunpack.c.l.b16 %v1158
        %v1380 = vunpack.c.l.b16 %v1159
        %v1381 = vunpack.c.l.b16 %v1160
        %v1382 = vunpack.c.l.b16 %v1161
        %v1383 = vunpack.c.l.b16 %v1162
        %v1384 = vunpack.c.l.b16 %v1163
        %v1385 = vunpack.c.l.b16 %v1164
        %v1386 = vunpack.c.l.b16 %v1165
        %v1387 = vunpack.c.l.b16 %v1166
        %v1388 = vunpack.c.l.b16 %v1167
        %v1389 = vunpack.c.l.b16 %v1168
        %v1390 = vunpack.c.l.b16 %v1169
        %v1391 = vpack.c.b16 %v1376, %v1375
        %v1392 = vpack.c.b16 %v1378, %v1377
        %v1393 = vpack.c.b16 %v1380, %v1379
        %v1394 = vpack.c.b16 %v1382, %v1381
        %v1395 = vpack.c.b16 %v1384, %v1383
        %v1396 = vpack.c.b16 %v1386, %v1385
        %v1397 = vpack.c.b16 %v1388, %v1387
        %v1398 = vpack.c.b16 %v1390, %v1389
        %1407 = vmatprep.subr.bf16.mxu0 0
        %1408 = vmatpush1.bf16.msra.mxu0 %v1391
        %1409 = vmatprep.subr.bf16.mxu0 0
        %1410 = vmatpush1.bf16.msra.mxu0 %v1392
        %1411 = vmatprep.subr.bf16.mxu0 0
        %1412 = vmatpush1.bf16.msra.mxu0 %v1393
        %1413 = vmatprep.subr.bf16.mxu0 0
        %1414 = vmatpush1.bf16.msra.mxu0 %v1394
        %1415 = vmatprep.subr.bf16.mxu0 0
        %1416 = vmatpush1.bf16.msra.mxu0 %v1395
        %1417 = vmatprep.subr.bf16.mxu0 0
        %1418 = vmatpush1.bf16.msra.mxu0 %v1396
        %1419 = vmatprep.subr.bf16.mxu0 0
        %1420 = vmatpush1.bf16.msra.mxu0 %v1397
        %1421 = vmatprep.subr.bf16.mxu0 0
        %1422 = vmatpush1.bf16.msra.mxu0 %v1398
        %1423 = vmatprep.subr.bf16.mxu0 0
        %1424 = vmatpush1.bf16.msra.mxu0 0
        %1425 = vmatprep.subr.bf16.mxu0 0
        %1426 = vmatpush1.bf16.msra.mxu0 0
        %1427 = vmatprep.subr.bf16.mxu0 0
        %1428 = vmatpush1.bf16.msra.mxu0 0
        %1429 = vmatprep.subr.bf16.mxu0 0
        %1430 = vmatpush1.bf16.msra.mxu0 0
        %1431 = vmatprep.subr.bf16.mxu0 0
        %1432 = vmatpush1.bf16.msra.mxu0 0
        %1433 = vmatprep.subr.bf16.mxu0 0
        %1434 = vmatpush1.bf16.msra.mxu0 0
        %1435 = vmatprep.subr.bf16.mxu0 0
        %1436 = vmatpush1.bf16.msra.mxu0 0
        %1437 = vmatprep.subr.bf16.mxu0 0
        %1438 = vmatpush1.bf16.msra.mxu0 0
        %1439 = vmatprep.mubr.bf16.mxu0 0
        %1440 = vmatmul.mubr.bf16.gmra.mrb[0].mxu0 %v1187
        %v1441 = vpop.f32.mrb[0].mxu0
        %v1442 = vadd.f32 0.0, %v1441
        %v1443 = vpop.f32.mrb[0].mxu0
        %v1444 = vpop.f32.mrb[0].mxu0
        %v1445 = vadd.f32 0.0, %v1444
        %v1446 = vpop.f32.mrb[0].mxu0
        %1447 = vmatprep.mubr.bf16.mxu0 0
        %1448 = vmatmul.mubr.bf16.gmra.mrb[0].mxu0 %v1196
        %v1449 = vpop.f32.mrb[0].mxu0
        %v1450 = vadd.f32 0.0, %v1449
        %v1451 = vpop.f32.mrb[0].mxu0
        %v1452 = vpop.f32.mrb[0].mxu0
        %v1453 = vadd.f32 0.0, %v1452
        %v1454 = vpop.f32.mrb[0].mxu0
        %1455 = vmatprep.mubr.bf16.mxu0 0
        %1456 = vmatmul.mubr.bf16.gmra.mrb[0].mxu0 %v1205
        %v1457 = vpop.f32.mrb[0].mxu0
        %v1458 = vadd.f32 0.0, %v1457
        %v1459 = vpop.f32.mrb[0].mxu0
        %v1460 = vpop.f32.mrb[0].mxu0
        %v1461 = vadd.f32 0.0, %v1460
        %v1462 = vpop.f32.mrb[0].mxu0
        %1463 = vmatprep.mubr.bf16.mxu0 0
        %1464 = vmatmul.mubr.bf16.gmra.mrb[0].mxu0 %v1214
        %v1465 = vpop.f32.mrb[0].mxu0
        %v1466 = vadd.f32 0.0, %v1465
        %v1467 = vpop.f32.mrb[0].mxu0
        %v1468 = vpop.f32.mrb[0].mxu0
        %v1469 = vadd.f32 0.0, %v1468
        %v1470 = vpop.f32.mrb[0].mxu0
        %1471 = vmatprep.mubr.bf16.mxu0 0
        %1472 = vmatmul.mubr.bf16.gmra.mrb[0].mxu0 %v1223
        %v1473 = vpop.f32.mrb[0].mxu0
        %v1474 = vadd.f32 0.0, %v1473
        %v1475 = vpop.f32.mrb[0].mxu0
        %v1476 = vpop.f32.mrb[0].mxu0
        %v1477 = vadd.f32 0.0, %v1476
        %v1478 = vpop.f32.mrb[0].mxu0
        %1479 = vmatprep.mubr.bf16.mxu0 0
        %1480 = vmatmul.mubr.bf16.gmra.mrb[0].mxu0 %v1232
        %v1481 = vpop.f32.mrb[0].mxu0
        %v1482 = vadd.f32 0.0, %v1481
        %v1483 = vpop.f32.mrb[0].mxu0
        %v1484 = vpop.f32.mrb[0].mxu0
        %v1485 = vadd.f32 0.0, %v1484
        %v1486 = vpop.f32.mrb[0].mxu0
        %1487 = vmatprep.mubr.bf16.mxu0 0
        %1488 = vmatmul.mubr.bf16.gmra.mrb[0].mxu0 %v1241
        %v1489 = vpop.f32.mrb[0].mxu0
        %v1490 = vadd.f32 0.0, %v1489
        %v1491 = vpop.f32.mrb[0].mxu0
        %v1492 = vpop.f32.mrb[0].mxu0
        %v1493 = vadd.f32 0.0, %v1492
        %v1494 = vpop.f32.mrb[0].mxu0
        %1495 = vmatprep.mubr.bf16.mxu0 0
        %1496 = vmatmul.mubr.bf16.gmra.mrb[0].mxu0 %v1250
        %v1497 = vpop.f32.mrb[0].mxu0
        %v1498 = vadd.f32 0.0, %v1497
        %v1499 = vpop.f32.mrb[0].mxu0
        %v1500 = vpop.f32.mrb[0].mxu0
        %v1501 = vadd.f32 0.0, %v1500
        %v1502 = vpop.f32.mrb[0].mxu0
        %1503 = vmatprep.mubr.bf16.mxu0 0
        %1504 = vmatmul.mubr.bf16.gmra.mrb[0].mxu0 %v1259
        %v1505 = vpop.f32.mrb[0].mxu0
        %v1506 = vadd.f32 0.0, %v1505
        %v1507 = vpop.f32.mrb[0].mxu0
        %v1508 = vpop.f32.mrb[0].mxu0
        %v1509 = vadd.f32 0.0, %v1508
        %v1510 = vpop.f32.mrb[0].mxu0
        %1511 = vmatprep.mubr.bf16.mxu0 0
        %1512 = vmatmul.mubr.bf16.gmra.mrb[0].mxu0 %v1268
        %v1513 = vpop.f32.mrb[0].mxu0
        %v1514 = vadd.f32 0.0, %v1513
        %v1515 = vpop.f32.mrb[0].mxu0
        %v1516 = vpop.f32.mrb[0].mxu0
        %v1517 = vadd.f32 0.0, %v1516
        %v1518 = vpop.f32.mrb[0].mxu0
        %1519 = vmatprep.mubr.bf16.mxu0 0
        %1520 = vmatmul.mubr.bf16.gmra.mrb[0].mxu0 %v1277
        %v1521 = vpop.f32.mrb[0].mxu0
        %v1522 = vadd.f32 0.0, %v1521
        %v1523 = vpop.f32.mrb[0].mxu0
        %v1524 = vpop.f32.mrb[0].mxu0
        %v1525 = vadd.f32 0.0, %v1524
        %v1526 = vpop.f32.mrb[0].mxu0
        %1527 = vmatprep.mubr.bf16.mxu0 0
        %1528 = vmatmul.mubr.bf16.gmra.mrb[0].mxu0 %v1286
        %v1529 = vpop.f32.mrb[0].mxu0
        %v1530 = vadd.f32 0.0, %v1529
        %v1531 = vpop.f32.mrb[0].mxu0
        %v1532 = vpop.f32.mrb[0].mxu0
        %v1533 = vadd.f32 0.0, %v1532
        %v1534 = vpop.f32.mrb[0].mxu0
        %1535 = vmatprep.mubr.bf16.mxu0 0
        %1536 = vmatmul.mubr.bf16.gmra.mrb[0].mxu0 %v1295
        %v1537 = vpop.f32.mrb[0].mxu0
        %v1538 = vadd.f32 0.0, %v1537
        %v1539 = vpop.f32.mrb[0].mxu0
        %v1540 = vpop.f32.mrb[0].mxu0
        %v1541 = vadd.f32 0.0, %v1540
        %v1542 = vpop.f32.mrb[0].mxu0
        %1543 = vmatprep.mubr.bf16.mxu0 0
        %1544 = vmatmul.mubr.bf16.gmra.mrb[0].mxu0 %v1304
        %v1545 = vpop.f32.mrb[0].mxu0
        %v1546 = vadd.f32 0.0, %v1545
        %v1547 = vpop.f32.mrb[0].mxu0
        %v1548 = vpop.f32.mrb[0].mxu0
        %v1549 = vadd.f32 0.0, %v1548
        %v1550 = vpop.f32.mrb[0].mxu0
        %1551 = vmatprep.mubr.bf16.mxu0 0
        %1552 = vmatmul.mubr.bf16.gmra.mrb[0].mxu0 %v1313
        %v1553 = vpop.f32.mrb[0].mxu0
        %v1554 = vadd.f32 0.0, %v1553
        %v1555 = vpop.f32.mrb[0].mxu0
        %v1556 = vpop.f32.mrb[0].mxu0
        %v1557 = vadd.f32 0.0, %v1556
        %v1558 = vpop.f32.mrb[0].mxu0
        %1559 = vmatprep.mubr.bf16.mxu0 0
        %1560 = vmatmul.mubr.bf16.gmra.mrb[0].mxu0 %v1322
        %v1561 = vpop.f32.mrb[0].mxu0
        %v1562 = vadd.f32 0.0, %v1561
        %v1563 = vpop.f32.mrb[0].mxu0
        %v1564 = vpop.f32.mrb[0].mxu0
        %v1565 = vadd.f32 0.0, %v1564
        %v1566 = vpop.f32.mrb[0].mxu0
        %1567 = vmatprep.mubr.bf16.mxu0 0
        %1568 = vmatmul.mubr.bf16.gmra.mrb[0].mxu0 %v1331
        %v1569 = vpop.f32.mrb[0].mxu0
        %v1570 = vadd.f32 0.0, %v1569
        %v1571 = vpop.f32.mrb[0].mxu0
        %v1572 = vpop.f32.mrb[0].mxu0
        %v1573 = vadd.f32 0.0, %v1572
        %v1574 = vpop.f32.mrb[0].mxu0
        %1575 = vmatprep.mubr.bf16.mxu0 0
        %1576 = vmatmul.mubr.bf16.gmra.mrb[0].mxu0 %v1340
        %v1577 = vpop.f32.mrb[0].mxu0
        %v1578 = vadd.f32 0.0, %v1577
        %v1579 = vpop.f32.mrb[0].mxu0
        %v1580 = vpop.f32.mrb[0].mxu0
        %v1581 = vadd.f32 0.0, %v1580
        %v1582 = vpop.f32.mrb[0].mxu0
        %1583 = vdwg.mxu0
        %v1600 = vunpack.c.l.b16 %v1119
        %v1601 = vunpack.c.l.b16 %v1120
        %v1602 = vunpack.c.l.b16 %v1121
        %v1603 = vunpack.c.l.b16 %v1122
        %v1604 = vunpack.c.l.b16 %v1123
        %v1605 = vunpack.c.l.b16 %v1124
        %v1606 = vunpack.c.l.b16 %v1125
        %v1607 = vunpack.c.l.b16 %v1126
        %v1608 = vunpack.c.l.b16 %v1127
        %v1609 = vunpack.c.l.b16 %v1128
        %v1610 = vunpack.c.l.b16 %v1129
        %v1611 = vunpack.c.l.b16 %v1130
        %v1612 = vunpack.c.l.b16 %v1131
        %v1613 = vunpack.c.l.b16 %v1132
        %v1614 = vunpack.c.l.b16 %v1133
        %v1615 = vunpack.c.l.b16 %v1134
        %v1616 = vpack.c.b16 %v1601, %v1600
        %v1617 = vpack.c.b16 %v1603, %v1602
        %v1618 = vpack.c.b16 %v1605, %v1604
        %v1619 = vpack.c.b16 %v1607, %v1606
        %v1620 = vpack.c.b16 %v1609, %v1608
        %v1621 = vpack.c.b16 %v1611, %v1610
        %v1622 = vpack.c.b16 %v1613, %v1612
        %v1623 = vpack.c.b16 %v1615, %v1614
        %1632 = vmatprep.subr.bf16.mxu0 0
        %1633 = vmatpush1.bf16.msra.mxu0 %v1616
        %1634 = vmatprep.subr.bf16.mxu0 0
        %1635 = vmatpush1.bf16.msra.mxu0 %v1617
        %1636 = vmatprep.subr.bf16.mxu0 0
        %1637 = vmatpush1.bf16.msra.mxu0 %v1618
        %1638 = vmatprep.subr.bf16.mxu0 0
        %1639 = vmatpush1.bf16.msra.mxu0 %v1619
        %1640 = vmatprep.subr.bf16.mxu0 0
        %1641 = vmatpush1.bf16.msra.mxu0 %v1620
        %1642 = vmatprep.subr.bf16.mxu0 0
        %1643 = vmatpush1.bf16.msra.mxu0 %v1621
        %1644 = vmatprep.subr.bf16.mxu0 0
        %1645 = vmatpush1.bf16.msra.mxu0 %v1622
        %1646 = vmatprep.subr.bf16.mxu0 0
        %1647 = vmatpush1.bf16.msra.mxu0 %v1623
        %1648 = vmatprep.subr.bf16.mxu0 0
        %1649 = vmatpush1.bf16.msra.mxu0 0
        %1650 = vmatprep.subr.bf16.mxu0 0
        %1651 = vmatpush1.bf16.msra.mxu0 0
        %1652 = vmatprep.subr.bf16.mxu0 0
        %1653 = vmatpush1.bf16.msra.mxu0 0
        %1654 = vmatprep.subr.bf16.mxu0 0
        %1655 = vmatpush1.bf16.msra.mxu0 0
        %1656 = vmatprep.subr.bf16.mxu0 0
        %1657 = vmatpush1.bf16.msra.mxu0 0
        %1658 = vmatprep.subr.bf16.mxu0 0
        %1659 = vmatpush1.bf16.msra.mxu0 0
        %1660 = vmatprep.subr.bf16.mxu0 0
        %1661 = vmatpush1.bf16.msra.mxu0 0
        %1662 = vmatprep.subr.bf16.mxu0 0
        %1663 = vmatpush1.bf16.msra.mxu0 0
        %1664 = vmatprep.mubr.bf16.mxu0 0
        %1665 = vmatmul.mubr.bf16.gmra.mrb[0].mxu0 %v487
        %v1666 = vpop.f32.mrb[0].mxu0
        %v1667 = vadd.f32 %v1442, %v1666
        %v1668 = vpop.f32.mrb[0].mxu0
        %v1669 = vpop.f32.mrb[0].mxu0
        %v1670 = vadd.f32 %v1445, %v1669
        %v1671 = vpop.f32.mrb[0].mxu0
        %1672 = vmatprep.mubr.bf16.mxu0 0
        %1673 = vmatmul.mubr.bf16.gmra.mrb[0].mxu0 %v488
        %v1674 = vpop.f32.mrb[0].mxu0
        %v1675 = vadd.f32 %v1450, %v1674
        %v1676 = vpop.f32.mrb[0].mxu0
        %v1677 = vpop.f32.mrb[0].mxu0
        %v1678 = vadd.f32 %v1453, %v1677
        %v1679 = vpop.f32.mrb[0].mxu0
        %1680 = vmatprep.mubr.bf16.mxu0 0
        %1681 = vmatmul.mubr.bf16.gmra.mrb[0].mxu0 %v489
        %v1682 = vpop.f32.mrb[0].mxu0
        %v1683 = vadd.f32 %v1458, %v1682
        %v1684 = vpop.f32.mrb[0].mxu0
        %v1685 = vpop.f32.mrb[0].mxu0
        %v1686 = vadd.f32 %v1461, %v1685
        %v1687 = vpop.f32.mrb[0].mxu0
        %1688 = vmatprep.mubr.bf16.mxu0 0
        %1689 = vmatmul.mubr.bf16.gmra.mrb[0].mxu0 %v490
        %v1690 = vpop.f32.mrb[0].mxu0
        %v1691 = vadd.f32 %v1466, %v1690
        %v1692 = vpop.f32.mrb[0].mxu0
        %v1693 = vpop.f32.mrb[0].mxu0
        %v1694 = vadd.f32 %v1469, %v1693
        %v1695 = vpop.f32.mrb[0].mxu0
        %1696 = vmatprep.mubr.bf16.mxu0 0
        %1697 = vmatmul.mubr.bf16.gmra.mrb[0].mxu0 %v491
        %v1698 = vpop.f32.mrb[0].mxu0
        %v1699 = vadd.f32 %v1474, %v1698
        %v1700 = vpop.f32.mrb[0].mxu0
        %v1701 = vpop.f32.mrb[0].mxu0
        %v1702 = vadd.f32 %v1477, %v1701
        %v1703 = vpop.f32.mrb[0].mxu0
        %1704 = vmatprep.mubr.bf16.mxu0 0
        %1705 = vmatmul.mubr.bf16.gmra.mrb[0].mxu0 %v492
        %v1706 = vpop.f32.mrb[0].mxu0
        %v1707 = vadd.f32 %v1482, %v1706
        %v1708 = vpop.f32.mrb[0].mxu0
        %v1709 = vpop.f32.mrb[0].mxu0
        %v1710 = vadd.f32 %v1485, %v1709
        %v1711 = vpop.f32.mrb[0].mxu0
        %1712 = vmatprep.mubr.bf16.mxu0 0
        %1713 = vmatmul.mubr.bf16.gmra.mrb[0].mxu0 %v493
        %v1714 = vpop.f32.mrb[0].mxu0
        %v1715 = vadd.f32 %v1490, %v1714
        %v1716 = vpop.f32.mrb[0].mxu0
        %v1717 = vpop.f32.mrb[0].mxu0
        %v1718 = vadd.f32 %v1493, %v1717
        %v1719 = vpop.f32.mrb[0].mxu0
        %1720 = vmatprep.mubr.bf16.mxu0 0
        %1721 = vmatmul.mubr.bf16.gmra.mrb[0].mxu0 %v494
        %v1722 = vpop.f32.mrb[0].mxu0
        %v1723 = vadd.f32 %v1498, %v1722
        %v1724 = vpop.f32.mrb[0].mxu0
        %v1725 = vpop.f32.mrb[0].mxu0
        %v1726 = vadd.f32 %v1501, %v1725
        %v1727 = vpop.f32.mrb[0].mxu0
        %1728 = vmatprep.mubr.bf16.mxu0 0
        %1729 = vmatmul.mubr.bf16.gmra.mrb[0].mxu0 %v495
        %v1730 = vpop.f32.mrb[0].mxu0
        %v1731 = vadd.f32 %v1506, %v1730
        %v1732 = vpop.f32.mrb[0].mxu0
        %v1733 = vpop.f32.mrb[0].mxu0
        %v1734 = vadd.f32 %v1509, %v1733
        %v1735 = vpop.f32.mrb[0].mxu0
        %1736 = vmatprep.mubr.bf16.mxu0 0
        %1737 = vmatmul.mubr.bf16.gmra.mrb[0].mxu0 %v496
        %v1738 = vpop.f32.mrb[0].mxu0
        %v1739 = vadd.f32 %v1514, %v1738
        %v1740 = vpop.f32.mrb[0].mxu0
        %v1741 = vpop.f32.mrb[0].mxu0
        %v1742 = vadd.f32 %v1517, %v1741
        %v1743 = vpop.f32.mrb[0].mxu0
        %1744 = vmatprep.mubr.bf16.mxu0 0
        %1745 = vmatmul.mubr.bf16.gmra.mrb[0].mxu0 %v497
        %v1746 = vpop.f32.mrb[0].mxu0
        %v1747 = vadd.f32 %v1522, %v1746
        %v1748 = vpop.f32.mrb[0].mxu0
        %v1749 = vpop.f32.mrb[0].mxu0
        %v1750 = vadd.f32 %v1525, %v1749
        %v1751 = vpop.f32.mrb[0].mxu0
        %1752 = vmatprep.mubr.bf16.mxu0 0
        %1753 = vmatmul.mubr.bf16.gmra.mrb[0].mxu0 %v498
        %v1754 = vpop.f32.mrb[0].mxu0
        %v1755 = vadd.f32 %v1530, %v1754
        %v1756 = vpop.f32.mrb[0].mxu0
        %v1757 = vpop.f32.mrb[0].mxu0
        %v1758 = vadd.f32 %v1533, %v1757
        %v1759 = vpop.f32.mrb[0].mxu0
        %1760 = vmatprep.mubr.bf16.mxu0 0
        %1761 = vmatmul.mubr.bf16.gmra.mrb[0].mxu0 %v499
        %v1762 = vpop.f32.mrb[0].mxu0
        %v1763 = vadd.f32 %v1538, %v1762
        %v1764 = vpop.f32.mrb[0].mxu0
        %v1765 = vpop.f32.mrb[0].mxu0
        %v1766 = vadd.f32 %v1541, %v1765
        %v1767 = vpop.f32.mrb[0].mxu0
        %1768 = vmatprep.mubr.bf16.mxu0 0
        %1769 = vmatmul.mubr.bf16.gmra.mrb[0].mxu0 %v500
        %v1770 = vpop.f32.mrb[0].mxu0
        %v1771 = vadd.f32 %v1546, %v1770
        %v1772 = vpop.f32.mrb[0].mxu0
        %v1773 = vpop.f32.mrb[0].mxu0
        %v1774 = vadd.f32 %v1549, %v1773
        %v1775 = vpop.f32.mrb[0].mxu0
        %1776 = vmatprep.mubr.bf16.mxu0 0
        %1777 = vmatmul.mubr.bf16.gmra.mrb[0].mxu0 %v501
        %v1778 = vpop.f32.mrb[0].mxu0
        %v1779 = vadd.f32 %v1554, %v1778
        %v1780 = vpop.f32.mrb[0].mxu0
        %v1781 = vpop.f32.mrb[0].mxu0
        %v1782 = vadd.f32 %v1557, %v1781
        %v1783 = vpop.f32.mrb[0].mxu0
        %1784 = vmatprep.mubr.bf16.mxu0 0
        %1785 = vmatmul.mubr.bf16.gmra.mrb[0].mxu0 %v502
        %v1786 = vpop.f32.mrb[0].mxu0
        %v1787 = vadd.f32 %v1562, %v1786
        %v1788 = vpop.f32.mrb[0].mxu0
        %v1789 = vpop.f32.mrb[0].mxu0
        %v1790 = vadd.f32 %v1565, %v1789
        %v1791 = vpop.f32.mrb[0].mxu0
        %1792 = vmatprep.mubr.bf16.mxu0 0
        %1793 = vmatmul.mubr.bf16.gmra.mrb[0].mxu0 %v503
        %v1794 = vpop.f32.mrb[0].mxu0
        %v1795 = vadd.f32 %v1570, %v1794
        %v1796 = vpop.f32.mrb[0].mxu0
        %v1797 = vpop.f32.mrb[0].mxu0
        %v1798 = vadd.f32 %v1573, %v1797
        %v1799 = vpop.f32.mrb[0].mxu0
        %1800 = vmatprep.mubr.bf16.mxu0 0
        %1801 = vmatmul.mubr.bf16.gmra.mrb[0].mxu0 %v504
        %v1802 = vpop.f32.mrb[0].mxu0
        %v1803 = vadd.f32 %v1578, %v1802
        %v1804 = vpop.f32.mrb[0].mxu0
        %v1805 = vpop.f32.mrb[0].mxu0
        %v1806 = vadd.f32 %v1581, %v1805
        %v1807 = vpop.f32.mrb[0].mxu0
        %1808 = vdwg.mxu0
        %v1809 = vld [vmem:[#allocation2] sm:$0x80]
        %s1810 = scalar_lea.vmem [#allocation11], 64
        %v1811 = vld [vmem:[%s1810] sm:$0xf]
        %v1812 = vld [vmem:[%s1810 + $0x4] sm:$0xf]
        %v1813 = vld [vmem:[%s1810 + $0x8] sm:$0xf]
        %v1814 = vld [vmem:[%s1810 + $0xc] sm:$0xf]
        %v1815 = vld [vmem:[%s1810 + $0x10] sm:$0xf]
        %v1816 = vld [vmem:[%s1810 + $0x14] sm:$0xf]
        %v1817 = vld [vmem:[%s1810 + $0x18] sm:$0xf]
        %v1818 = vld [vmem:[%s1810 + $0x1c] sm:$0xf]
        %v1819 = vld [vmem:[%s1810 + $0x20] sm:$0xf]
        %v1820 = vld [vmem:[%s1810 + $0x24] sm:$0xf]
        %v1821 = vld [vmem:[%s1810 + $0x28] sm:$0xf]
        %v1822 = vld [vmem:[%s1810 + $0x2c] sm:$0xf]
        %v1823 = vld [vmem:[%s1810 + $0x30] sm:$0xf]
        %v1824 = vld [vmem:[%s1810 + $0x34] sm:$0xf]
        %v1825 = vld [vmem:[%s1810 + $0x38] sm:$0xf]
        %v1826 = vld [vmem:[%s1810 + $0x3c] sm:$0xf]
        %vm1846 = vcmask 1040384
        %v1847 = vrot.slane %v1809, 7
        %v1848 = vrot.slane %v1136, 7
        %v1849 = vsel %vm1846, %v1847, %v1848
        %v1850 = vrot.slane %v1137, 7
        %v1851 = vsel %vm1846, %v1848, %v1850
        %v1852 = vrot.slane %v1138, 7
        %v1853 = vsel %vm1846, %v1850, %v1852
        %v1854 = vrot.slane %v1139, 7
        %v1855 = vsel %vm1846, %v1852, %v1854
        %v1856 = vrot.slane %v1140, 7
        %v1857 = vsel %vm1846, %v1854, %v1856
        %v1858 = vrot.slane %v1141, 7
        %v1859 = vsel %vm1846, %v1856, %v1858
        %v1860 = vrot.slane %v1142, 7
        %v1861 = vsel %vm1846, %v1858, %v1860
        %v1862 = vrot.slane %v1143, 7
        %v1863 = vsel %vm1846, %v1860, %v1862
        %v1864 = vrot.slane %v1144, 7
        %v1865 = vsel %vm1846, %v1862, %v1864
        %v1866 = vrot.slane %v1145, 7
        %v1867 = vsel %vm1846, %v1864, %v1866
        %v1868 = vrot.slane %v1146, 7
        %v1869 = vsel %vm1846, %v1866, %v1868
        %v1870 = vrot.slane %v1147, 7
        %v1871 = vsel %vm1846, %v1868, %v1870
        %v1872 = vrot.slane %v1148, 7
        %v1873 = vsel %vm1846, %v1870, %v1872
        %v1874 = vrot.slane %v1149, 7
        %v1875 = vsel %vm1846, %v1872, %v1874
        %v1876 = vrot.slane %v1150, 7
        %v1877 = vsel %vm1846, %v1874, %v1876
        %v1878 = vrot.slane %v1151, 7
        %v1879 = vsel %vm1846, %v1876, %v1878
        %v1880 = vrot.slane %v1152, 7
        %v1881 = vsel %vm1846, %v1878, %v1880
        %v1882 = vrot.slane %v1153, 7
        %v1883 = vsel %vm1846, %v1880, %v1882
        %v1918 = vunpack.c.l.b16 %v1811
        %v1919 = vunpack.c.l.b16 %v1812
        %v1920 = vunpack.c.l.b16 %v1813
        %v1921 = vunpack.c.l.b16 %v1814
        %v1922 = vunpack.c.l.b16 %v1815
        %v1923 = vunpack.c.l.b16 %v1816
        %v1924 = vunpack.c.l.b16 %v1817
        %v1925 = vunpack.c.l.b16 %v1818
        %v1926 = vunpack.c.l.b16 %v1819
        %v1927 = vunpack.c.l.b16 %v1820
        %v1928 = vunpack.c.l.b16 %v1821
        %v1929 = vunpack.c.l.b16 %v1822
        %v1930 = vunpack.c.l.b16 %v1823
        %v1931 = vunpack.c.l.b16 %v1824
        %v1932 = vunpack.c.l.b16 %v1825
        %v1933 = vunpack.c.l.b16 %v1826
        %v1934 = vpack.c.b16 %v1919, %v1918
        %v1935 = vpack.c.b16 %v1921, %v1920
        %v1936 = vpack.c.b16 %v1923, %v1922
        %v1937 = vpack.c.b16 %v1925, %v1924
        %v1938 = vpack.c.b16 %v1927, %v1926
        %v1939 = vpack.c.b16 %v1929, %v1928
        %v1940 = vpack.c.b16 %v1931, %v1930
        %v1941 = vpack.c.b16 %v1933, %v1932
        %1950 = vmatprep.subr.bf16.mxu0 0
        %1951 = vmatpush1.bf16.msra.mxu0 %v1934
        %1952 = vmatprep.subr.bf16.mxu0 0
        %1953 = vmatpush1.bf16.msra.mxu0 %v1935
        %1954 = vmatprep.subr.bf16.mxu0 0
        %1955 = vmatpush1.bf16.msra.mxu0 %v1936
        %1956 = vmatprep.subr.bf16.mxu0 0
        %1957 = vmatpush1.bf16.msra.mxu0 %v1937
        %1958 = vmatprep.subr.bf16.mxu0 0
        %1959 = vmatpush1.bf16.msra.mxu0 %v1938
        %1960 = vmatprep.subr.bf16.mxu0 0
        %1961 = vmatpush1.bf16.msra.mxu0 %v1939
        %1962 = vmatprep.subr.bf16.mxu0 0
        %1963 = vmatpush1.bf16.msra.mxu0 %v1940
        %1964 = vmatprep.subr.bf16.mxu0 0
        %1965 = vmatpush1.bf16.msra.mxu0 %v1941
        %1966 = vmatprep.subr.bf16.mxu0 0
        %1967 = vmatpush1.bf16.msra.mxu0 0
        %1968 = vmatprep.subr.bf16.mxu0 0
        %1969 = vmatpush1.bf16.msra.mxu0 0
        %1970 = vmatprep.subr.bf16.mxu0 0
        %1971 = vmatpush1.bf16.msra.mxu0 0
        %1972 = vmatprep.subr.bf16.mxu0 0
        %1973 = vmatpush1.bf16.msra.mxu0 0
        %1974 = vmatprep.subr.bf16.mxu0 0
        %1975 = vmatpush1.bf16.msra.mxu0 0
        %1976 = vmatprep.subr.bf16.mxu0 0
        %1977 = vmatpush1.bf16.msra.mxu0 0
        %1978 = vmatprep.subr.bf16.mxu0 0
        %1979 = vmatpush1.bf16.msra.mxu0 0
        %1980 = vmatprep.subr.bf16.mxu0 0
        %1981 = vmatpush1.bf16.msra.mxu0 0
        %1982 = vmatprep.mubr.bf16.mxu0 0
        %1983 = vmatmul.mubr.bf16.gmra.mrb[0].mxu0 %v1849
        %v1984 = vpop.f32.mrb[0].mxu0
        %v1985 = vadd.f32 0.0, %v1984
        %v1986 = vpop.f32.mrb[0].mxu0
        %v1987 = vpop.f32.mrb[0].mxu0
        %v1988 = vadd.f32 0.0, %v1987
        %v1989 = vpop.f32.mrb[0].mxu0
        %1990 = vmatprep.mubr.bf16.mxu0 0
        %1991 = vmatmul.mubr.bf16.gmra.mrb[0].mxu0 %v1851
        %v1992 = vpop.f32.mrb[0].mxu0
        %v1993 = vadd.f32 0.0, %v1992
        %v1994 = vpop.f32.mrb[0].mxu0
        %v1995 = vpop.f32.mrb[0].mxu0
        %v1996 = vadd.f32 0.0, %v1995
        %v1997 = vpop.f32.mrb[0].mxu0
        %1998 = vmatprep.mubr.bf16.mxu0 0
        %1999 = vmatmul.mubr.bf16.gmra.mrb[0].mxu0 %v1853
        %v2000 = vpop.f32.mrb[0].mxu0
        %v2001 = vadd.f32 0.0, %v2000
        %v2002 = vpop.f32.mrb[0].mxu0
        %v2003 = vpop.f32.mrb[0].mxu0
        %v2004 = vadd.f32 0.0, %v2003
        %v2005 = vpop.f32.mrb[0].mxu0
        %2006 = vmatprep.mubr.bf16.mxu0 0
        %2007 = vmatmul.mubr.bf16.gmra.mrb[0].mxu0 %v1855
        %v2008 = vpop.f32.mrb[0].mxu0
        %v2009 = vadd.f32 0.0, %v2008
        %v2010 = vpop.f32.mrb[0].mxu0
        %v2011 = vpop.f32.mrb[0].mxu0
        %v2012 = vadd.f32 0.0, %v2011
        %v2013 = vpop.f32.mrb[0].mxu0
        %2014 = vmatprep.mubr.bf16.mxu0 0
        %2015 = vmatmul.mubr.bf16.gmra.mrb[0].mxu0 %v1857
        %v2016 = vpop.f32.mrb[0].mxu0
        %v2017 = vadd.f32 0.0, %v2016
        %v2018 = vpop.f32.mrb[0].mxu0
        %v2019 = vpop.f32.mrb[0].mxu0
        %v2020 = vadd.f32 0.0, %v2019
        %v2021 = vpop.f32.mrb[0].mxu0
        %2022 = vmatprep.mubr.bf16.mxu0 0
        %2023 = vmatmul.mubr.bf16.gmra.mrb[0].mxu0 %v1859
        %v2024 = vpop.f32.mrb[0].mxu0
        %v2025 = vadd.f32 0.0, %v2024
        %v2026 = vpop.f32.mrb[0].mxu0
        %v2027 = vpop.f32.mrb[0].mxu0
        %v2028 = vadd.f32 0.0, %v2027
        %v2029 = vpop.f32.mrb[0].mxu0
        %2030 = vmatprep.mubr.bf16.mxu0 0
        %2031 = vmatmul.mubr.bf16.gmra.mrb[0].mxu0 %v1861
        %v2032 = vpop.f32.mrb[0].mxu0
        %v2033 = vadd.f32 0.0, %v2032
        %v2034 = vpop.f32.mrb[0].mxu0
        %v2035 = vpop.f32.mrb[0].mxu0
        %v2036 = vadd.f32 0.0, %v2035
        %v2037 = vpop.f32.mrb[0].mxu0
        %2038 = vmatprep.mubr.bf16.mxu0 0
        %2039 = vmatmul.mubr.bf16.gmra.mrb[0].mxu0 %v1863
        %v2040 = vpop.f32.mrb[0].mxu0
        %v2041 = vadd.f32 0.0, %v2040
        %v2042 = vpop.f32.mrb[0].mxu0
        %v2043 = vpop.f32.mrb[0].mxu0
        %v2044 = vadd.f32 0.0, %v2043
        %v2045 = vpop.f32.mrb[0].mxu0
        %2046 = vmatprep.mubr.bf16.mxu0 0
        %2047 = vmatmul.mubr.bf16.gmra.mrb[0].mxu0 %v1865
        %v2048 = vpop.f32.mrb[0].mxu0
        %v2049 = vadd.f32 0.0, %v2048
        %v2050 = vpop.f32.mrb[0].mxu0
        %v2051 = vpop.f32.mrb[0].mxu0
        %v2052 = vadd.f32 0.0, %v2051
        %v2053 = vpop.f32.mrb[0].mxu0
        %2054 = vmatprep.mubr.bf16.mxu0 0
        %2055 = vmatmul.mubr.bf16.gmra.mrb[0].mxu0 %v1867
        %v2056 = vpop.f32.mrb[0].mxu0
        %v2057 = vadd.f32 0.0, %v2056
        %v2058 = vpop.f32.mrb[0].mxu0
        %v2059 = vpop.f32.mrb[0].mxu0
        %v2060 = vadd.f32 0.0, %v2059
        %v2061 = vpop.f32.mrb[0].mxu0
        %2062 = vmatprep.mubr.bf16.mxu0 0
        %2063 = vmatmul.mubr.bf16.gmra.mrb[0].mxu0 %v1869
        %v2064 = vpop.f32.mrb[0].mxu0
        %v2065 = vadd.f32 0.0, %v2064
        %v2066 = vpop.f32.mrb[0].mxu0
        %v2067 = vpop.f32.mrb[0].mxu0
        %v2068 = vadd.f32 0.0, %v2067
        %v2069 = vpop.f32.mrb[0].mxu0
        %2070 = vmatprep.mubr.bf16.mxu0 0
        %2071 = vmatmul.mubr.bf16.gmra.mrb[0].mxu0 %v1871
        %v2072 = vpop.f32.mrb[0].mxu0
        %v2073 = vadd.f32 0.0, %v2072
        %v2074 = vpop.f32.mrb[0].mxu0
        %v2075 = vpop.f32.mrb[0].mxu0
        %v2076 = vadd.f32 0.0, %v2075
        %v2077 = vpop.f32.mrb[0].mxu0
        %2078 = vmatprep.mubr.bf16.mxu0 0
        %2079 = vmatmul.mubr.bf16.gmra.mrb[0].mxu0 %v1873
        %v2080 = vpop.f32.mrb[0].mxu0
        %v2081 = vadd.f32 0.0, %v2080
        %v2082 = vpop.f32.mrb[0].mxu0
        %v2083 = vpop.f32.mrb[0].mxu0
        %v2084 = vadd.f32 0.0, %v2083
        %v2085 = vpop.f32.mrb[0].mxu0
        %2086 = vmatprep.mubr.bf16.mxu0 0
        %2087 = vmatmul.mubr.bf16.gmra.mrb[0].mxu0 %v1875
        %v2088 = vpop.f32.mrb[0].mxu0
        %v2089 = vadd.f32 0.0, %v2088
        %v2090 = vpop.f32.mrb[0].mxu0
        %v2091 = vpop.f32.mrb[0].mxu0
        %v2092 = vadd.f32 0.0, %v2091
        %v2093 = vpop.f32.mrb[0].mxu0
        %2094 = vmatprep.mubr.bf16.mxu0 0
        %2095 = vmatmul.mubr.bf16.gmra.mrb[0].mxu0 %v1877
        %v2096 = vpop.f32.mrb[0].mxu0
        %v2097 = vadd.f32 0.0, %v2096
        %v2098 = vpop.f32.mrb[0].mxu0
        %v2099 = vpop.f32.mrb[0].mxu0
        %v2100 = vadd.f32 0.0, %v2099
        %v2101 = vpop.f32.mrb[0].mxu0
        %2102 = vmatprep.mubr.bf16.mxu0 0
        %2103 = vmatmul.mubr.bf16.gmra.mrb[0].mxu0 %v1879
        %v2104 = vpop.f32.mrb[0].mxu0
        %v2105 = vadd.f32 0.0, %v2104
        %v2106 = vpop.f32.mrb[0].mxu0
        %v2107 = vpop.f32.mrb[0].mxu0
        %v2108 = vadd.f32 0.0, %v2107
        %v2109 = vpop.f32.mrb[0].mxu0
        %2110 = vmatprep.mubr.bf16.mxu0 0
        %2111 = vmatmul.mubr.bf16.gmra.mrb[0].mxu0 %v1881
        %v2112 = vpop.f32.mrb[0].mxu0
        %v2113 = vadd.f32 0.0, %v2112
        %v2114 = vpop.f32.mrb[0].mxu0
        %v2115 = vpop.f32.mrb[0].mxu0
        %v2116 = vadd.f32 0.0, %v2115
        %v2117 = vpop.f32.mrb[0].mxu0
        %2118 = vmatprep.mubr.bf16.mxu0 0
        %2119 = vmatmul.mubr.bf16.gmra.mrb[0].mxu0 %v1883
        %v2120 = vpop.f32.mrb[0].mxu0
        %v2121 = vadd.f32 0.0, %v2120
        %v2122 = vpop.f32.mrb[0].mxu0
        %v2123 = vpop.f32.mrb[0].mxu0
        %v2124 = vadd.f32 0.0, %v2123
        %v2125 = vpop.f32.mrb[0].mxu0
        %2126 = vdwg.mxu0
        %v2127 = vadd.f32 %v1667, %v1985
        %v2128 = vadd.f32 %v1670, %v1988
        %v2129 = vadd.f32 %v1675, %v1993
        %v2130 = vadd.f32 %v1678, %v1996
        %v2131 = vadd.f32 %v1683, %v2001
        %v2132 = vadd.f32 %v1686, %v2004
        %v2133 = vadd.f32 %v1691, %v2009
        %v2134 = vadd.f32 %v1694, %v2012
        %v2135 = vadd.f32 %v1699, %v2017
        %v2136 = vadd.f32 %v1702, %v2020
        %v2137 = vadd.f32 %v1707, %v2025
        %v2138 = vadd.f32 %v1710, %v2028
        %v2139 = vadd.f32 %v1715, %v2033
        %v2140 = vadd.f32 %v1718, %v2036
        %v2141 = vadd.f32 %v1723, %v2041
        %v2142 = vadd.f32 %v1726, %v2044
        %v2143 = vadd.f32 %v1731, %v2049
        %v2144 = vadd.f32 %v1734, %v2052
        %v2145 = vadd.f32 %v1739, %v2057
        %v2146 = vadd.f32 %v1742, %v2060
        %v2147 = vadd.f32 %v1747, %v2065
        %v2148 = vadd.f32 %v1750, %v2068
        %v2149 = vadd.f32 %v1755, %v2073
        %v2150 = vadd.f32 %v1758, %v2076
        %v2151 = vadd.f32 %v1763, %v2081
        %v2152 = vadd.f32 %v1766, %v2084
        %v2153 = vadd.f32 %v1771, %v2089
        %v2154 = vadd.f32 %v1774, %v2092
        %v2155 = vadd.f32 %v1779, %v2097
        %v2156 = vadd.f32 %v1782, %v2100
        %v2157 = vadd.f32 %v1787, %v2105
        %v2158 = vadd.f32 %v1790, %v2108
        %v2159 = vadd.f32 %v1795, %v2113
        %v2160 = vadd.f32 %v1798, %v2116
        %v2161 = vadd.f32 %v1803, %v2121
        %v2162 = vadd.f32 %v1806, %v2124
        %v2163 = vld [vmem:[#allocation2 + $0x90] sm:$0xff]
        %s2164 = scalar_lea.vmem [#allocation11], 128
        %v2165 = vld [vmem:[%s2164] sm:$0xf]
        %v2166 = vld [vmem:[%s2164 + $0x4] sm:$0xf]
        %v2167 = vld [vmem:[%s2164 + $0x8] sm:$0xf]
        %v2168 = vld [vmem:[%s2164 + $0xc] sm:$0xf]
        %v2169 = vld [vmem:[%s2164 + $0x10] sm:$0xf]
        %v2170 = vld [vmem:[%s2164 + $0x14] sm:$0xf]
        %v2171 = vld [vmem:[%s2164 + $0x18] sm:$0xf]
        %v2172 = vld [vmem:[%s2164 + $0x1c] sm:$0xf]
        %v2173 = vld [vmem:[%s2164 + $0x20] sm:$0xf]
        %v2174 = vld [vmem:[%s2164 + $0x24] sm:$0xf]
        %v2175 = vld [vmem:[%s2164 + $0x28] sm:$0xf]
        %v2176 = vld [vmem:[%s2164 + $0x2c] sm:$0xf]
        %v2177 = vld [vmem:[%s2164 + $0x30] sm:$0xf]
        %v2178 = vld [vmem:[%s2164 + $0x34] sm:$0xf]
        %v2179 = vld [vmem:[%s2164 + $0x38] sm:$0xf]
        %v2180 = vld [vmem:[%s2164 + $0x3c] sm:$0xf]
        %vm2181 = vsmask.f32 256
        %v2183 = vshrl.u32 %v1809, 16
        %v2185 = vrot.slane %v2183, 7
        %v2186 = vrot.slane %v1180, 7
        %v2187 = vor.u32 %v2186, %v1183
        %v2188 = vsel %vm2181, %v2185, %v2187
        %v2189 = vrot.slane %v1189, 7
        %v2190 = vor.u32 %v2189, %v1192
        %v2191 = vsel %vm2181, %v2186, %v2190
        %v2192 = vrot.slane %v1198, 7
        %v2193 = vor.u32 %v2192, %v1201
        %v2194 = vsel %vm2181, %v2189, %v2193
        %v2195 = vrot.slane %v1207, 7
        %v2196 = vor.u32 %v2195, %v1210
        %v2197 = vsel %vm2181, %v2192, %v2196
        %v2198 = vrot.slane %v1216, 7
        %v2199 = vor.u32 %v2198, %v1219
        %v2200 = vsel %vm2181, %v2195, %v2199
        %v2201 = vrot.slane %v1225, 7
        %v2202 = vor.u32 %v2201, %v1228
        %v2203 = vsel %vm2181, %v2198, %v2202
        %v2204 = vrot.slane %v1234, 7
        %v2205 = vor.u32 %v2204, %v1237
        %v2206 = vsel %vm2181, %v2201, %v2205
        %v2207 = vrot.slane %v1243, 7
        %v2208 = vor.u32 %v2207, %v1246
        %v2209 = vsel %vm2181, %v2204, %v2208
        %v2210 = vrot.slane %v1252, 7
        %v2211 = vor.u32 %v2210, %v1255
        %v2212 = vsel %vm2181, %v2207, %v2211
        %v2213 = vrot.slane %v1261, 7
        %v2214 = vor.u32 %v2213, %v1264
        %v2215 = vsel %vm2181, %v2210, %v2214
        %v2216 = vrot.slane %v1270, 7
        %v2217 = vor.u32 %v2216, %v1273
        %v2218 = vsel %vm2181, %v2213, %v2217
        %v2219 = vrot.slane %v1279, 7
        %v2220 = vor.u32 %v2219, %v1282
        %v2221 = vsel %vm2181, %v2216, %v2220
        %v2222 = vrot.slane %v1288, 7
        %v2223 = vor.u32 %v2222, %v1291
        %v2224 = vsel %vm2181, %v2219, %v2223
        %v2225 = vrot.slane %v1297, 7
        %v2226 = vor.u32 %v2225, %v1300
        %v2227 = vsel %vm2181, %v2222, %v2226
        %v2228 = vrot.slane %v1306, 7
        %v2229 = vor.u32 %v2228, %v1309
        %v2230 = vsel %vm2181, %v2225, %v2229
        %v2231 = vrot.slane %v1315, 7
        %v2232 = vor.u32 %v2231, %v1318
        %v2233 = vsel %vm2181, %v2228, %v2232
        %v2234 = vrot.slane %v1324, 7
        %v2235 = vor.u32 %v2234, %v1327
        %v2236 = vsel %vm2181, %v2231, %v2235
        %v2238 = vshrl.u32 %v2163, 16
        %v2240 = vrot.slane %v2238, 7
        %v2241 = vshll.u32 %v2163, 16
        %v2243 = vor.u32 %v2240, %v2241
        %v2244 = vsel %vm2181, %v2234, %v2243
        %v2279 = vunpack.c.l.b16 %v2165
        %v2280 = vunpack.c.l.b16 %v2166
        %v2281 = vunpack.c.l.b16 %v2167
        %v2282 = vunpack.c.l.b16 %v2168
        %v2283 = vunpack.c.l.b16 %v2169
        %v2284 = vunpack.c.l.b16 %v2170
        %v2285 = vunpack.c.l.b16 %v2171
        %v2286 = vunpack.c.l.b16 %v2172
        %v2287 = vunpack.c.l.b16 %v2173
        %v2288 = vunpack.c.l.b16 %v2174
        %v2289 = vunpack.c.l.b16 %v2175
        %v2290 = vunpack.c.l.b16 %v2176
        %v2291 = vunpack.c.l.b16 %v2177
        %v2292 = vunpack.c.l.b16 %v2178
        %v2293 = vunpack.c.l.b16 %v2179
        %v2294 = vunpack.c.l.b16 %v2180
        %v2295 = vpack.c.b16 %v2280, %v2279
        %v2296 = vpack.c.b16 %v2282, %v2281
        %v2297 = vpack.c.b16 %v2284, %v2283
        %v2298 = vpack.c.b16 %v2286, %v2285
        %v2299 = vpack.c.b16 %v2288, %v2287
        %v2300 = vpack.c.b16 %v2290, %v2289
        %v2301 = vpack.c.b16 %v2292, %v2291
        %v2302 = vpack.c.b16 %v2294, %v2293
        %2311 = vmatprep.subr.bf16.mxu0 0
        %2312 = vmatpush1.bf16.msra.mxu0 %v2295
        %2313 = vmatprep.subr.bf16.mxu0 0
        %2314 = vmatpush1.bf16.msra.mxu0 %v2296
        %2315 = vmatprep.subr.bf16.mxu0 0
        %2316 = vmatpush1.bf16.msra.mxu0 %v2297
        %2317 = vmatprep.subr.bf16.mxu0 0
        %2318 = vmatpush1.bf16.msra.mxu0 %v2298
        %2319 = vmatprep.subr.bf16.mxu0 0
        %2320 = vmatpush1.bf16.msra.mxu0 %v2299
        %2321 = vmatprep.subr.bf16.mxu0 0
        %2322 = vmatpush1.bf16.msra.mxu0 %v2300
        %2323 = vmatprep.subr.bf16.mxu0 0
        %2324 = vmatpush1.bf16.msra.mxu0 %v2301
        %2325 = vmatprep.subr.bf16.mxu0 0
        %2326 = vmatpush1.bf16.msra.mxu0 %v2302
        %2327 = vmatprep.subr.bf16.mxu0 0
        %2328 = vmatpush1.bf16.msra.mxu0 0
        %2329 = vmatprep.subr.bf16.mxu0 0
        %2330 = vmatpush1.bf16.msra.mxu0 0
        %2331 = vmatprep.subr.bf16.mxu0 0
        %2332 = vmatpush1.bf16.msra.mxu0 0
        %2333 = vmatprep.subr.bf16.mxu0 0
        %2334 = vmatpush1.bf16.msra.mxu0 0
        %2335 = vmatprep.subr.bf16.mxu0 0
        %2336 = vmatpush1.bf16.msra.mxu0 0
        %2337 = vmatprep.subr.bf16.mxu0 0
        %2338 = vmatpush1.bf16.msra.mxu0 0
        %2339 = vmatprep.subr.bf16.mxu0 0
        %2340 = vmatpush1.bf16.msra.mxu0 0
        %2341 = vmatprep.subr.bf16.mxu0 0
        %2342 = vmatpush1.bf16.msra.mxu0 0
        %2343 = vmatprep.mubr.bf16.mxu0 0
        %2344 = vmatmul.mubr.bf16.gmra.mrb[0].mxu0 %v2188
        %v2345 = vpop.f32.mrb[0].mxu0
        %v2346 = vadd.f32 0.0, %v2345
        %v2347 = vpop.f32.mrb[0].mxu0
        %v2348 = vpop.f32.mrb[0].mxu0
        %v2349 = vadd.f32 0.0, %v2348
        %v2350 = vpop.f32.mrb[0].mxu0
        %2351 = vmatprep.mubr.bf16.mxu0 0
        %2352 = vmatmul.mubr.bf16.gmra.mrb[0].mxu0 %v2191
        %v2353 = vpop.f32.mrb[0].mxu0
        %v2354 = vadd.f32 0.0, %v2353
        %v2355 = vpop.f32.mrb[0].mxu0
        %v2356 = vpop.f32.mrb[0].mxu0
        %v2357 = vadd.f32 0.0, %v2356
        %v2358 = vpop.f32.mrb[0].mxu0
        %2359 = vmatprep.mubr.bf16.mxu0 0
        %2360 = vmatmul.mubr.bf16.gmra.mrb[0].mxu0 %v2194
        %v2361 = vpop.f32.mrb[0].mxu0
        %v2362 = vadd.f32 0.0, %v2361
        %v2363 = vpop.f32.mrb[0].mxu0
        %v2364 = vpop.f32.mrb[0].mxu0
        %v2365 = vadd.f32 0.0, %v2364
        %v2366 = vpop.f32.mrb[0].mxu0
        %2367 = vmatprep.mubr.bf16.mxu0 0
        %2368 = vmatmul.mubr.bf16.gmra.mrb[0].mxu0 %v2197
        %v2369 = vpop.f32.mrb[0].mxu0
        %v2370 = vadd.f32 0.0, %v2369
        %v2371 = vpop.f32.mrb[0].mxu0
        %v2372 = vpop.f32.mrb[0].mxu0
        %v2373 = vadd.f32 0.0, %v2372
        %v2374 = vpop.f32.mrb[0].mxu0
        %2375 = vmatprep.mubr.bf16.mxu0 0
        %2376 = vmatmul.mubr.bf16.gmra.mrb[0].mxu0 %v2200
        %v2377 = vpop.f32.mrb[0].mxu0
        %v2378 = vadd.f32 0.0, %v2377
        %v2379 = vpop.f32.mrb[0].mxu0
        %v2380 = vpop.f32.mrb[0].mxu0
        %v2381 = vadd.f32 0.0, %v2380
        %v2382 = vpop.f32.mrb[0].mxu0
        %2383 = vmatprep.mubr.bf16.mxu0 0
        %2384 = vmatmul.mubr.bf16.gmra.mrb[0].mxu0 %v2203
        %v2385 = vpop.f32.mrb[0].mxu0
        %v2386 = vadd.f32 0.0, %v2385
        %v2387 = vpop.f32.mrb[0].mxu0
        %v2388 = vpop.f32.mrb[0].mxu0
        %v2389 = vadd.f32 0.0, %v2388
        %v2390 = vpop.f32.mrb[0].mxu0
        %2391 = vmatprep.mubr.bf16.mxu0 0
        %2392 = vmatmul.mubr.bf16.gmra.mrb[0].mxu0 %v2206
        %v2393 = vpop.f32.mrb[0].mxu0
        %v2394 = vadd.f32 0.0, %v2393
        %v2395 = vpop.f32.mrb[0].mxu0
        %v2396 = vpop.f32.mrb[0].mxu0
        %v2397 = vadd.f32 0.0, %v2396
        %v2398 = vpop.f32.mrb[0].mxu0
        %2399 = vmatprep.mubr.bf16.mxu0 0
        %2400 = vmatmul.mubr.bf16.gmra.mrb[0].mxu0 %v2209
        %v2401 = vpop.f32.mrb[0].mxu0
        %v2402 = vadd.f32 0.0, %v2401
        %v2403 = vpop.f32.mrb[0].mxu0
        %v2404 = vpop.f32.mrb[0].mxu0
        %v2405 = vadd.f32 0.0, %v2404
        %v2406 = vpop.f32.mrb[0].mxu0
        %2407 = vmatprep.mubr.bf16.mxu0 0
        %2408 = vmatmul.mubr.bf16.gmra.mrb[0].mxu0 %v2212
        %v2409 = vpop.f32.mrb[0].mxu0
        %v2410 = vadd.f32 0.0, %v2409
        %v2411 = vpop.f32.mrb[0].mxu0
        %v2412 = vpop.f32.mrb[0].mxu0
        %v2413 = vadd.f32 0.0, %v2412
        %v2414 = vpop.f32.mrb[0].mxu0
        %2415 = vmatprep.mubr.bf16.mxu0 0
        %2416 = vmatmul.mubr.bf16.gmra.mrb[0].mxu0 %v2215
        %v2417 = vpop.f32.mrb[0].mxu0
        %v2418 = vadd.f32 0.0, %v2417
        %v2419 = vpop.f32.mrb[0].mxu0
        %v2420 = vpop.f32.mrb[0].mxu0
        %v2421 = vadd.f32 0.0, %v2420
        %v2422 = vpop.f32.mrb[0].mxu0
        %2423 = vmatprep.mubr.bf16.mxu0 0
        %2424 = vmatmul.mubr.bf16.gmra.mrb[0].mxu0 %v2218
        %v2425 = vpop.f32.mrb[0].mxu0
        %v2426 = vadd.f32 0.0, %v2425
        %v2427 = vpop.f32.mrb[0].mxu0
        %v2428 = vpop.f32.mrb[0].mxu0
        %v2429 = vadd.f32 0.0, %v2428
        %v2430 = vpop.f32.mrb[0].mxu0
        %2431 = vmatprep.mubr.bf16.mxu0 0
        %2432 = vmatmul.mubr.bf16.gmra.mrb[0].mxu0 %v2221
        %v2433 = vpop.f32.mrb[0].mxu0
        %v2434 = vadd.f32 0.0, %v2433
        %v2435 = vpop.f32.mrb[0].mxu0
        %v2436 = vpop.f32.mrb[0].mxu0
        %v2437 = vadd.f32 0.0, %v2436
        %v2438 = vpop.f32.mrb[0].mxu0
        %2439 = vmatprep.mubr.bf16.mxu0 0
        %2440 = vmatmul.mubr.bf16.gmra.mrb[0].mxu0 %v2224
        %v2441 = vpop.f32.mrb[0].mxu0
        %v2442 = vadd.f32 0.0, %v2441
        %v2443 = vpop.f32.mrb[0].mxu0
        %v2444 = vpop.f32.mrb[0].mxu0
        %v2445 = vadd.f32 0.0, %v2444
        %v2446 = vpop.f32.mrb[0].mxu0
        %2447 = vmatprep.mubr.bf16.mxu0 0
        %2448 = vmatmul.mubr.bf16.gmra.mrb[0].mxu0 %v2227
        %v2449 = vpop.f32.mrb[0].mxu0
        %v2450 = vadd.f32 0.0, %v2449
        %v2451 = vpop.f32.mrb[0].mxu0
        %v2452 = vpop.f32.mrb[0].mxu0
        %v2453 = vadd.f32 0.0, %v2452
        %v2454 = vpop.f32.mrb[0].mxu0
        %2455 = vmatprep.mubr.bf16.mxu0 0
        %2456 = vmatmul.mubr.bf16.gmra.mrb[0].mxu0 %v2230
        %v2457 = vpop.f32.mrb[0].mxu0
        %v2458 = vadd.f32 0.0, %v2457
        %v2459 = vpop.f32.mrb[0].mxu0
        %v2460 = vpop.f32.mrb[0].mxu0
        %v2461 = vadd.f32 0.0, %v2460
        %v2462 = vpop.f32.mrb[0].mxu0
        %2463 = vmatprep.mubr.bf16.mxu0 0
        %2464 = vmatmul.mubr.bf16.gmra.mrb[0].mxu0 %v2233
        %v2465 = vpop.f32.mrb[0].mxu0
        %v2466 = vadd.f32 0.0, %v2465
        %v2467 = vpop.f32.mrb[0].mxu0
        %v2468 = vpop.f32.mrb[0].mxu0
        %v2469 = vadd.f32 0.0, %v2468
        %v2470 = vpop.f32.mrb[0].mxu0
        %2471 = vmatprep.mubr.bf16.mxu0 0
        %2472 = vmatmul.mubr.bf16.gmra.mrb[0].mxu0 %v2236
        %v2473 = vpop.f32.mrb[0].mxu0
        %v2474 = vadd.f32 0.0, %v2473
        %v2475 = vpop.f32.mrb[0].mxu0
        %v2476 = vpop.f32.mrb[0].mxu0
        %v2477 = vadd.f32 0.0, %v2476
        %v2478 = vpop.f32.mrb[0].mxu0
        %2479 = vmatprep.mubr.bf16.mxu0 0
        %2480 = vmatmul.mubr.bf16.gmra.mrb[0].mxu0 %v2244
        %v2481 = vpop.f32.mrb[0].mxu0
        %v2482 = vadd.f32 0.0, %v2481
        %v2483 = vpop.f32.mrb[0].mxu0
        %v2484 = vpop.f32.mrb[0].mxu0
        %v2485 = vadd.f32 0.0, %v2484
        %v2486 = vpop.f32.mrb[0].mxu0
        %2487 = vdwg.mxu0
        %v2488 = vadd.f32 %v2127, %v2346
        %v2489 = vadd.f32 %v2128, %v2349
        %v2490 = vadd.f32 %v2129, %v2354
        %v2491 = vadd.f32 %v2130, %v2357
        %v2492 = vadd.f32 %v2131, %v2362
        %v2493 = vadd.f32 %v2132, %v2365
        %v2494 = vadd.f32 %v2133, %v2370
        %v2495 = vadd.f32 %v2134, %v2373
        %v2496 = vadd.f32 %v2135, %v2378
        %v2497 = vadd.f32 %v2136, %v2381
        %v2498 = vadd.f32 %v2137, %v2386
        %v2499 = vadd.f32 %v2138, %v2389
        %v2500 = vadd.f32 %v2139, %v2394
        %v2501 = vadd.f32 %v2140, %v2397
        %v2502 = vadd.f32 %v2141, %v2402
        %v2503 = vadd.f32 %v2142, %v2405
        %v2504 = vadd.f32 %v2143, %v2410
        %v2505 = vadd.f32 %v2144, %v2413
        %v2506 = vadd.f32 %v2145, %v2418
        %v2507 = vadd.f32 %v2146, %v2421
        %v2508 = vadd.f32 %v2147, %v2426
        %v2509 = vadd.f32 %v2148, %v2429
        %v2510 = vadd.f32 %v2149, %v2434
        %v2511 = vadd.f32 %v2150, %v2437
        %v2512 = vadd.f32 %v2151, %v2442
        %v2513 = vadd.f32 %v2152, %v2445
        %v2514 = vadd.f32 %v2153, %v2450
        %v2515 = vadd.f32 %v2154, %v2453
        %v2516 = vadd.f32 %v2155, %v2458
        %v2517 = vadd.f32 %v2156, %v2461
        %v2518 = vadd.f32 %v2157, %v2466
        %v2519 = vadd.f32 %v2158, %v2469
        %v2520 = vadd.f32 %v2159, %v2474
        %v2521 = vadd.f32 %v2160, %v2477
        %v2522 = vadd.f32 %v2161, %v2482
        %v2523 = vadd.f32 %v2162, %v2485
        %v2524 = vld [vmem:[#allocation2 + $0x8] sm:$0x80]
        %v2525 = vld [vmem:[#allocation2 + $0x10] sm:$0xff]
        %v2526 = vld [vmem:[#allocation2 + $0x18] sm:$0xff]
        %v2527 = vld [vmem:[#allocation2 + $0x20] sm:$0xff]
        %v2528 = vld [vmem:[#allocation2 + $0x28] sm:$0xff]
        %v2529 = vld [vmem:[#allocation2 + $0x30] sm:$0xff]
        %v2530 = vld [vmem:[#allocation2 + $0x38] sm:$0xff]
        %v2531 = vld [vmem:[#allocation2 + $0x40] sm:$0xff]
        %v2532 = vld [vmem:[#allocation2 + $0x48] sm:$0xff]
        %v2533 = vld [vmem:[#allocation2 + $0x50] sm:$0xff]
        %v2534 = vld [vmem:[#allocation2 + $0x58] sm:$0xff]
        %v2535 = vld [vmem:[#allocation2 + $0x60] sm:$0xff]
        %v2536 = vld [vmem:[#allocation2 + $0x68] sm:$0xff]
        %v2537 = vld [vmem:[#allocation2 + $0x70] sm:$0xff]
        %v2538 = vld [vmem:[#allocation2 + $0x78] sm:$0xff]
        %v2539 = vld [vmem:[#allocation2 + $0x80] sm:$0xff]
        %v2540 = vld [vmem:[#allocation2 + $0x88] sm:$0xff]
        %v2541 = vld [vmem:[#allocation2 + $0x90] sm:$0xff]
        %v2542 = vld [vmem:[#allocation2 + $0x98] sm:$0xff]
        %s2543 = scalar_lea.vmem [#allocation11], 192
        %v2544 = vld [vmem:[%s2543] sm:$0xf]
        %v2545 = vld [vmem:[%s2543 + $0x4] sm:$0xf]
        %v2546 = vld [vmem:[%s2543 + $0x8] sm:$0xf]
        %v2547 = vld [vmem:[%s2543 + $0xc] sm:$0xf]
        %v2548 = vld [vmem:[%s2543 + $0x10] sm:$0xf]
        %v2549 = vld [vmem:[%s2543 + $0x14] sm:$0xf]
        %v2550 = vld [vmem:[%s2543 + $0x18] sm:$0xf]
        %v2551 = vld [vmem:[%s2543 + $0x1c] sm:$0xf]
        %v2552 = vld [vmem:[%s2543 + $0x20] sm:$0xf]
        %v2553 = vld [vmem:[%s2543 + $0x24] sm:$0xf]
        %v2554 = vld [vmem:[%s2543 + $0x28] sm:$0xf]
        %v2555 = vld [vmem:[%s2543 + $0x2c] sm:$0xf]
        %v2556 = vld [vmem:[%s2543 + $0x30] sm:$0xf]
        %v2557 = vld [vmem:[%s2543 + $0x34] sm:$0xf]
        %v2558 = vld [vmem:[%s2543 + $0x38] sm:$0xf]
        %v2559 = vld [vmem:[%s2543 + $0x3c] sm:$0xf]
        %v2561 = vshrl.u32 %v2524, 16
        %v2563 = vrot.slane %v2561, 7
        %v2565 = vshrl.u32 %v2525, 16
        %v2567 = vrot.slane %v2565, 7
        %v2568 = vshll.u32 %v2525, 16
        %v2570 = vor.u32 %v2567, %v2568
        %v2571 = vsel %vm2181, %v2563, %v2570
        %v2573 = vshrl.u32 %v2526, 16
        %v2575 = vrot.slane %v2573, 7
        %v2576 = vshll.u32 %v2526, 16
        %v2578 = vor.u32 %v2575, %v2576
        %v2579 = vsel %vm2181, %v2567, %v2578
        %v2581 = vshrl.u32 %v2527, 16
        %v2583 = vrot.slane %v2581, 7
        %v2584 = vshll.u32 %v2527, 16
        %v2586 = vor.u32 %v2583, %v2584
        %v2587 = vsel %vm2181, %v2575, %v2586
        %v2589 = vshrl.u32 %v2528, 16
        %v2591 = vrot.slane %v2589, 7
        %v2592 = vshll.u32 %v2528, 16
        %v2594 = vor.u32 %v2591, %v2592
        %v2595 = vsel %vm2181, %v2583, %v2594
        %v2597 = vshrl.u32 %v2529, 16
        %v2599 = vrot.slane %v2597, 7
        %v2600 = vshll.u32 %v2529, 16
        %v2602 = vor.u32 %v2599, %v2600
        %v2603 = vsel %vm2181, %v2591, %v2602
        %v2605 = vshrl.u32 %v2530, 16
        %v2607 = vrot.slane %v2605, 7
        %v2608 = vshll.u32 %v2530, 16
        %v2610 = vor.u32 %v2607, %v2608
        %v2611 = vsel %vm2181, %v2599, %v2610
        %v2613 = vshrl.u32 %v2531, 16
        %v2615 = vrot.slane %v2613, 7
        %v2616 = vshll.u32 %v2531, 16
        %v2618 = vor.u32 %v2615, %v2616
        %v2619 = vsel %vm2181, %v2607, %v2618
        %v2621 = vshrl.u32 %v2532, 16
        %v2623 = vrot.slane %v2621, 7
        %v2624 = vshll.u32 %v2532, 16
        %v2626 = vor.u32 %v2623, %v2624
        %v2627 = vsel %vm2181, %v2615, %v2626
        %v2629 = vshrl.u32 %v2533, 16
        %v2631 = vrot.slane %v2629, 7
        %v2632 = vshll.u32 %v2533, 16
        %v2634 = vor.u32 %v2631, %v2632
        %v2635 = vsel %vm2181, %v2623, %v2634
        %v2637 = vshrl.u32 %v2534, 16
        %v2639 = vrot.slane %v2637, 7
        %v2640 = vshll.u32 %v2534, 16
        %v2642 = vor.u32 %v2639, %v2640
        %v2643 = vsel %vm2181, %v2631, %v2642
        %v2645 = vshrl.u32 %v2535, 16
        %v2647 = vrot.slane %v2645, 7
        %v2648 = vshll.u32 %v2535, 16
        %v2650 = vor.u32 %v2647, %v2648
        %v2651 = vsel %vm2181, %v2639, %v2650
        %v2653 = vshrl.u32 %v2536, 16
        %v2655 = vrot.slane %v2653, 7
        %v2656 = vshll.u32 %v2536, 16
        %v2658 = vor.u32 %v2655, %v2656
        %v2659 = vsel %vm2181, %v2647, %v2658
        %v2661 = vshrl.u32 %v2537, 16
        %v2663 = vrot.slane %v2661, 7
        %v2664 = vshll.u32 %v2537, 16
        %v2666 = vor.u32 %v2663, %v2664
        %v2667 = vsel %vm2181, %v2655, %v2666
        %v2669 = vshrl.u32 %v2538, 16
        %v2671 = vrot.slane %v2669, 7
        %v2672 = vshll.u32 %v2538, 16
        %v2674 = vor.u32 %v2671, %v2672
        %v2675 = vsel %vm2181, %v2663, %v2674
        %v2677 = vshrl.u32 %v2539, 16
        %v2679 = vrot.slane %v2677, 7
        %v2680 = vshll.u32 %v2539, 16
        %v2682 = vor.u32 %v2679, %v2680
        %v2683 = vsel %vm2181, %v2671, %v2682
        %v2685 = vshrl.u32 %v2540, 16
        %v2687 = vrot.slane %v2685, 7
        %v2688 = vshll.u32 %v2540, 16
        %v2690 = vor.u32 %v2687, %v2688
        %v2691 = vsel %vm2181, %v2679, %v2690
        %v2693 = vshrl.u32 %v2541, 16
        %v2695 = vrot.slane %v2693, 7
        %v2696 = vshll.u32 %v2541, 16
        %v2698 = vor.u32 %v2695, %v2696
        %v2699 = vsel %vm2181, %v2687, %v2698
        %v2701 = vshrl.u32 %v2542, 16
        %v2703 = vrot.slane %v2701, 7
        %v2704 = vshll.u32 %v2542, 16
        %v2706 = vor.u32 %v2703, %v2704
        %v2707 = vsel %vm2181, %v2695, %v2706
        %v2742 = vunpack.c.l.b16 %v2544
        %v2743 = vunpack.c.l.b16 %v2545
        %v2744 = vunpack.c.l.b16 %v2546
        %v2745 = vunpack.c.l.b16 %v2547
        %v2746 = vunpack.c.l.b16 %v2548
        %v2747 = vunpack.c.l.b16 %v2549
        %v2748 = vunpack.c.l.b16 %v2550
        %v2749 = vunpack.c.l.b16 %v2551
        %v2750 = vunpack.c.l.b16 %v2552
        %v2751 = vunpack.c.l.b16 %v2553
        %v2752 = vunpack.c.l.b16 %v2554
        %v2753 = vunpack.c.l.b16 %v2555
        %v2754 = vunpack.c.l.b16 %v2556
        %v2755 = vunpack.c.l.b16 %v2557
        %v2756 = vunpack.c.l.b16 %v2558
        %v2757 = vunpack.c.l.b16 %v2559
        %v2758 = vpack.c.b16 %v2743, %v2742
        %v2759 = vpack.c.b16 %v2745, %v2744
        %v2760 = vpack.c.b16 %v2747, %v2746
        %v2761 = vpack.c.b16 %v2749, %v2748
        %v2762 = vpack.c.b16 %v2751, %v2750
        %v2763 = vpack.c.b16 %v2753, %v2752
        %v2764 = vpack.c.b16 %v2755, %v2754
        %v2765 = vpack.c.b16 %v2757, %v2756
        %2774 = vmatprep.subr.bf16.mxu0 0
        %2775 = vmatpush1.bf16.msra.mxu0 %v2758
        %2776 = vmatprep.subr.bf16.mxu0 0
        %2777 = vmatpush1.bf16.msra.mxu0 %v2759
        %2778 = vmatprep.subr.bf16.mxu0 0
        %2779 = vmatpush1.bf16.msra.mxu0 %v2760
        %2780 = vmatprep.subr.bf16.mxu0 0
        %2781 = vmatpush1.bf16.msra.mxu0 %v2761
        %2782 = vmatprep.subr.bf16.mxu0 0
        %2783 = vmatpush1.bf16.msra.mxu0 %v2762
        %2784 = vmatprep.subr.bf16.mxu0 0
        %2785 = vmatpush1.bf16.msra.mxu0 %v2763
        %2786 = vmatprep.subr.bf16.mxu0 0
        %2787 = vmatpush1.bf16.msra.mxu0 %v2764
        %2788 = vmatprep.subr.bf16.mxu0 0
        %2789 = vmatpush1.bf16.msra.mxu0 %v2765
        %2790 = vmatprep.subr.bf16.mxu0 0
        %2791 = vmatpush1.bf16.msra.mxu0 0
        %2792 = vmatprep.subr.bf16.mxu0 0
        %2793 = vmatpush1.bf16.msra.mxu0 0
        %2794 = vmatprep.subr.bf16.mxu0 0
        %2795 = vmatpush1.bf16.msra.mxu0 0
        %2796 = vmatprep.subr.bf16.mxu0 0
        %2797 = vmatpush1.bf16.msra.mxu0 0
        %2798 = vmatprep.subr.bf16.mxu0 0
        %2799 = vmatpush1.bf16.msra.mxu0 0
        %2800 = vmatprep.subr.bf16.mxu0 0
        %2801 = vmatpush1.bf16.msra.mxu0 0
        %2802 = vmatprep.subr.bf16.mxu0 0
        %2803 = vmatpush1.bf16.msra.mxu0 0
        %2804 = vmatprep.subr.bf16.mxu0 0
        %2805 = vmatpush1.bf16.msra.mxu0 0
        %2806 = vmatprep.mubr.bf16.mxu0 0
        %2807 = vmatmul.mubr.bf16.gmra.mrb[0].mxu0 %v2571
        %v2808 = vpop.f32.mrb[0].mxu0
        %v2809 = vadd.f32 0.0, %v2808
        %v2810 = vpop.f32.mrb[0].mxu0
        %v2811 = vpop.f32.mrb[0].mxu0
        %v2812 = vadd.f32 0.0, %v2811
        %v2813 = vpop.f32.mrb[0].mxu0
        %2814 = vmatprep.mubr.bf16.mxu0 0
        %2815 = vmatmul.mubr.bf16.gmra.mrb[0].mxu0 %v2579
        %v2816 = vpop.f32.mrb[0].mxu0
        %v2817 = vadd.f32 0.0, %v2816
        %v2818 = vpop.f32.mrb[0].mxu0
        %v2819 = vpop.f32.mrb[0].mxu0
        %v2820 = vadd.f32 0.0, %v2819
        %v2821 = vpop.f32.mrb[0].mxu0
        %2822 = vmatprep.mubr.bf16.mxu0 0
        %2823 = vmatmul.mubr.bf16.gmra.mrb[0].mxu0 %v2587
        %v2824 = vpop.f32.mrb[0].mxu0
        %v2825 = vadd.f32 0.0, %v2824
        %v2826 = vpop.f32.mrb[0].mxu0
        %v2827 = vpop.f32.mrb[0].mxu0
        %v2828 = vadd.f32 0.0, %v2827
        %v2829 = vpop.f32.mrb[0].mxu0
        %2830 = vmatprep.mubr.bf16.mxu0 0
        %2831 = vmatmul.mubr.bf16.gmra.mrb[0].mxu0 %v2595
        %v2832 = vpop.f32.mrb[0].mxu0
        %v2833 = vadd.f32 0.0, %v2832
        %v2834 = vpop.f32.mrb[0].mxu0
        %v2835 = vpop.f32.mrb[0].mxu0
        %v2836 = vadd.f32 0.0, %v2835
        %v2837 = vpop.f32.mrb[0].mxu0
        %2838 = vmatprep.mubr.bf16.mxu0 0
        %2839 = vmatmul.mubr.bf16.gmra.mrb[0].mxu0 %v2603
        %v2840 = vpop.f32.mrb[0].mxu0
        %v2841 = vadd.f32 0.0, %v2840
        %v2842 = vpop.f32.mrb[0].mxu0
        %v2843 = vpop.f32.mrb[0].mxu0
        %v2844 = vadd.f32 0.0, %v2843
        %v2845 = vpop.f32.mrb[0].mxu0
        %2846 = vmatprep.mubr.bf16.mxu0 0
        %2847 = vmatmul.mubr.bf16.gmra.mrb[0].mxu0 %v2611
        %v2848 = vpop.f32.mrb[0].mxu0
        %v2849 = vadd.f32 0.0, %v2848
        %v2850 = vpop.f32.mrb[0].mxu0
        %v2851 = vpop.f32.mrb[0].mxu0
        %v2852 = vadd.f32 0.0, %v2851
        %v2853 = vpop.f32.mrb[0].mxu0
        %2854 = vmatprep.mubr.bf16.mxu0 0
        %2855 = vmatmul.mubr.bf16.gmra.mrb[0].mxu0 %v2619
        %v2856 = vpop.f32.mrb[0].mxu0
        %v2857 = vadd.f32 0.0, %v2856
        %v2858 = vpop.f32.mrb[0].mxu0
        %v2859 = vpop.f32.mrb[0].mxu0
        %v2860 = vadd.f32 0.0, %v2859
        %v2861 = vpop.f32.mrb[0].mxu0
        %2862 = vmatprep.mubr.bf16.mxu0 0
        %2863 = vmatmul.mubr.bf16.gmra.mrb[0].mxu0 %v2627
        %v2864 = vpop.f32.mrb[0].mxu0
        %v2865 = vadd.f32 0.0, %v2864
        %v2866 = vpop.f32.mrb[0].mxu0
        %v2867 = vpop.f32.mrb[0].mxu0
        %v2868 = vadd.f32 0.0, %v2867
        %v2869 = vpop.f32.mrb[0].mxu0
        %2870 = vmatprep.mubr.bf16.mxu0 0
        %2871 = vmatmul.mubr.bf16.gmra.mrb[0].mxu0 %v2635
        %v2872 = vpop.f32.mrb[0].mxu0
        %v2873 = vadd.f32 0.0, %v2872
        %v2874 = vpop.f32.mrb[0].mxu0
        %v2875 = vpop.f32.mrb[0].mxu0
        %v2876 = vadd.f32 0.0, %v2875
        %v2877 = vpop.f32.mrb[0].mxu0
        %2878 = vmatprep.mubr.bf16.mxu0 0
        %2879 = vmatmul.mubr.bf16.gmra.mrb[0].mxu0 %v2643
        %v2880 = vpop.f32.mrb[0].mxu0
        %v2881 = vadd.f32 0.0, %v2880
        %v2882 = vpop.f32.mrb[0].mxu0
        %v2883 = vpop.f32.mrb[0].mxu0
        %v2884 = vadd.f32 0.0, %v2883
        %v2885 = vpop.f32.mrb[0].mxu0
        %2886 = vmatprep.mubr.bf16.mxu0 0
        %2887 = vmatmul.mubr.bf16.gmra.mrb[0].mxu0 %v2651
        %v2888 = vpop.f32.mrb[0].mxu0
        %v2889 = vadd.f32 0.0, %v2888
        %v2890 = vpop.f32.mrb[0].mxu0
        %v2891 = vpop.f32.mrb[0].mxu0
        %v2892 = vadd.f32 0.0, %v2891
        %v2893 = vpop.f32.mrb[0].mxu0
        %2894 = vmatprep.mubr.bf16.mxu0 0
        %2895 = vmatmul.mubr.bf16.gmra.mrb[0].mxu0 %v2659
        %v2896 = vpop.f32.mrb[0].mxu0
        %v2897 = vadd.f32 0.0, %v2896
        %v2898 = vpop.f32.mrb[0].mxu0
        %v2899 = vpop.f32.mrb[0].mxu0
        %v2900 = vadd.f32 0.0, %v2899
        %v2901 = vpop.f32.mrb[0].mxu0
        %2902 = vmatprep.mubr.bf16.mxu0 0
        %2903 = vmatmul.mubr.bf16.gmra.mrb[0].mxu0 %v2667
        %v2904 = vpop.f32.mrb[0].mxu0
        %v2905 = vadd.f32 0.0, %v2904
        %v2906 = vpop.f32.mrb[0].mxu0
        %v2907 = vpop.f32.mrb[0].mxu0
        %v2908 = vadd.f32 0.0, %v2907
        %v2909 = vpop.f32.mrb[0].mxu0
        %2910 = vmatprep.mubr.bf16.mxu0 0
        %2911 = vmatmul.mubr.bf16.gmra.mrb[0].mxu0 %v2675
        %v2912 = vpop.f32.mrb[0].mxu0
        %v2913 = vadd.f32 0.0, %v2912
        %v2914 = vpop.f32.mrb[0].mxu0
        %v2915 = vpop.f32.mrb[0].mxu0
        %v2916 = vadd.f32 0.0, %v2915
        %v2917 = vpop.f32.mrb[0].mxu0
        %2918 = vmatprep.mubr.bf16.mxu0 0
        %2919 = vmatmul.mubr.bf16.gmra.mrb[0].mxu0 %v2683
        %v2920 = vpop.f32.mrb[0].mxu0
        %v2921 = vadd.f32 0.0, %v2920
        %v2922 = vpop.f32.mrb[0].mxu0
        %v2923 = vpop.f32.mrb[0].mxu0
        %v2924 = vadd.f32 0.0, %v2923
        %v2925 = vpop.f32.mrb[0].mxu0
        %2926 = vmatprep.mubr.bf16.mxu0 0
        %2927 = vmatmul.mubr.bf16.gmra.mrb[0].mxu0 %v2691
        %v2928 = vpop.f32.mrb[0].mxu0
        %v2929 = vadd.f32 0.0, %v2928
        %v2930 = vpop.f32.mrb[0].mxu0
        %v2931 = vpop.f32.mrb[0].mxu0
        %v2932 = vadd.f32 0.0, %v2931
        %v2933 = vpop.f32.mrb[0].mxu0
        %2934 = vmatprep.mubr.bf16.mxu0 0
        %2935 = vmatmul.mubr.bf16.gmra.mrb[0].mxu0 %v2699
        %v2936 = vpop.f32.mrb[0].mxu0
        %v2937 = vadd.f32 0.0, %v2936
        %v2938 = vpop.f32.mrb[0].mxu0
        %v2939 = vpop.f32.mrb[0].mxu0
        %v2940 = vadd.f32 0.0, %v2939
        %v2941 = vpop.f32.mrb[0].mxu0
        %2942 = vmatprep.mubr.bf16.mxu0 0
        %2943 = vmatmul.mubr.bf16.gmra.mrb[0].mxu0 %v2707
        %v2944 = vpop.f32.mrb[0].mxu0
        %v2945 = vadd.f32 0.0, %v2944
        %v2946 = vpop.f32.mrb[0].mxu0
        %v2947 = vpop.f32.mrb[0].mxu0
        %v2948 = vadd.f32 0.0, %v2947
        %v2949 = vpop.f32.mrb[0].mxu0
        %2950 = vdwg.mxu0
        %v2951 = vadd.f32 %v2488, %v2809
        %v2952 = vadd.f32 %v2489, %v2812
        %v2953 = vadd.f32 %v2490, %v2817
        %v2954 = vadd.f32 %v2491, %v2820
        %v2955 = vadd.f32 %v2492, %v2825
        %v2956 = vadd.f32 %v2493, %v2828
        %v2957 = vadd.f32 %v2494, %v2833
        %v2958 = vadd.f32 %v2495, %v2836
        %v2959 = vadd.f32 %v2496, %v2841
        %v2960 = vadd.f32 %v2497, %v2844
        %v2961 = vadd.f32 %v2498, %v2849
        %v2962 = vadd.f32 %v2499, %v2852
        %v2963 = vadd.f32 %v2500, %v2857
        %v2964 = vadd.f32 %v2501, %v2860
        %v2965 = vadd.f32 %v2502, %v2865
        %v2966 = vadd.f32 %v2503, %v2868
        %v2967 = vadd.f32 %v2504, %v2873
        %v2968 = vadd.f32 %v2505, %v2876
        %v2969 = vadd.f32 %v2506, %v2881
        %v2970 = vadd.f32 %v2507, %v2884
        %v2971 = vadd.f32 %v2508, %v2889
        %v2972 = vadd.f32 %v2509, %v2892
        %v2973 = vadd.f32 %v2510, %v2897
        %v2974 = vadd.f32 %v2511, %v2900
        %v2975 = vadd.f32 %v2512, %v2905
        %v2976 = vadd.f32 %v2513, %v2908
        %v2977 = vadd.f32 %v2514, %v2913
        %v2978 = vadd.f32 %v2515, %v2916
        %v2979 = vadd.f32 %v2516, %v2921
        %v2980 = vadd.f32 %v2517, %v2924
        %v2981 = vadd.f32 %v2518, %v2929
        %v2982 = vadd.f32 %v2519, %v2932
        %v2983 = vadd.f32 %v2520, %v2937
        %v2984 = vadd.f32 %v2521, %v2940
        %v2985 = vadd.f32 %v2522, %v2945
        %v2986 = vadd.f32 %v2523, %v2948
        %s2987 = scalar_lea.vmem [#allocation11], 256
        %v2988 = vld [vmem:[%s2987] sm:$0xf]
        %v2989 = vld [vmem:[%s2987 + $0x4] sm:$0xf]
        %v2990 = vld [vmem:[%s2987 + $0x8] sm:$0xf]
        %v2991 = vld [vmem:[%s2987 + $0xc] sm:$0xf]
        %v2992 = vld [vmem:[%s2987 + $0x10] sm:$0xf]
        %v2993 = vld [vmem:[%s2987 + $0x14] sm:$0xf]
        %v2994 = vld [vmem:[%s2987 + $0x18] sm:$0xf]
        %v2995 = vld [vmem:[%s2987 + $0x1c] sm:$0xf]
        %v2996 = vld [vmem:[%s2987 + $0x20] sm:$0xf]
        %v2997 = vld [vmem:[%s2987 + $0x24] sm:$0xf]
        %v2998 = vld [vmem:[%s2987 + $0x28] sm:$0xf]
        %v2999 = vld [vmem:[%s2987 + $0x2c] sm:$0xf]
        %v3000 = vld [vmem:[%s2987 + $0x30] sm:$0xf]
        %v3001 = vld [vmem:[%s2987 + $0x34] sm:$0xf]
        %v3002 = vld [vmem:[%s2987 + $0x38] sm:$0xf]
        %v3003 = vld [vmem:[%s2987 + $0x3c] sm:$0xf]
        %v3020 = vunpack.c.l.b16 %v2988
        %v3021 = vunpack.c.l.b16 %v2989
        %v3022 = vunpack.c.l.b16 %v2990
        %v3023 = vunpack.c.l.b16 %v2991
        %v3024 = vunpack.c.l.b16 %v2992
        %v3025 = vunpack.c.l.b16 %v2993
        %v3026 = vunpack.c.l.b16 %v2994
        %v3027 = vunpack.c.l.b16 %v2995
        %v3028 = vunpack.c.l.b16 %v2996
        %v3029 = vunpack.c.l.b16 %v2997
        %v3030 = vunpack.c.l.b16 %v2998
        %v3031 = vunpack.c.l.b16 %v2999
        %v3032 = vunpack.c.l.b16 %v3000
        %v3033 = vunpack.c.l.b16 %v3001
        %v3034 = vunpack.c.l.b16 %v3002
        %v3035 = vunpack.c.l.b16 %v3003
        %v3036 = vpack.c.b16 %v3021, %v3020
        %v3037 = vpack.c.b16 %v3023, %v3022
        %v3038 = vpack.c.b16 %v3025, %v3024
        %v3039 = vpack.c.b16 %v3027, %v3026
        %v3040 = vpack.c.b16 %v3029, %v3028
        %v3041 = vpack.c.b16 %v3031, %v3030
        %v3042 = vpack.c.b16 %v3033, %v3032
        %v3043 = vpack.c.b16 %v3035, %v3034
        %3052 = vmatprep.subr.bf16.mxu0 0
        %3053 = vmatpush1.bf16.msra.mxu0 %v3036
        %3054 = vmatprep.subr.bf16.mxu0 0
        %3055 = vmatpush1.bf16.msra.mxu0 %v3037
        %3056 = vmatprep.subr.bf16.mxu0 0
        %3057 = vmatpush1.bf16.msra.mxu0 %v3038
        %3058 = vmatprep.subr.bf16.mxu0 0
        %3059 = vmatpush1.bf16.msra.mxu0 %v3039
        %3060 = vmatprep.subr.bf16.mxu0 0
        %3061 = vmatpush1.bf16.msra.mxu0 %v3040
        %3062 = vmatprep.subr.bf16.mxu0 0
        %3063 = vmatpush1.bf16.msra.mxu0 %v3041
        %3064 = vmatprep.subr.bf16.mxu0 0
        %3065 = vmatpush1.bf16.msra.mxu0 %v3042
        %3066 = vmatprep.subr.bf16.mxu0 0
        %3067 = vmatpush1.bf16.msra.mxu0 %v3043
        %3068 = vmatprep.subr.bf16.mxu0 0
        %3069 = vmatpush1.bf16.msra.mxu0 0
        %3070 = vmatprep.subr.bf16.mxu0 0
        %3071 = vmatpush1.bf16.msra.mxu0 0
        %3072 = vmatprep.subr.bf16.mxu0 0
        %3073 = vmatpush1.bf16.msra.mxu0 0
        %3074 = vmatprep.subr.bf16.mxu0 0
        %3075 = vmatpush1.bf16.msra.mxu0 0
        %3076 = vmatprep.subr.bf16.mxu0 0
        %3077 = vmatpush1.bf16.msra.mxu0 0
        %3078 = vmatprep.subr.bf16.mxu0 0
        %3079 = vmatpush1.bf16.msra.mxu0 0
        %3080 = vmatprep.subr.bf16.mxu0 0
        %3081 = vmatpush1.bf16.msra.mxu0 0
        %3082 = vmatprep.subr.bf16.mxu0 0
        %3083 = vmatpush1.bf16.msra.mxu0 0
        %3084 = vmatprep.mubr.bf16.mxu0 0
        %3085 = vmatmul.mubr.bf16.gmra.mrb[0].mxu0 %v2525
        %v3086 = vpop.f32.mrb[0].mxu0
        %v3087 = vadd.f32 0.0, %v3086
        %v3088 = vpop.f32.mrb[0].mxu0
        %v3089 = vpop.f32.mrb[0].mxu0
        %v3090 = vadd.f32 0.0, %v3089
        %v3091 = vpop.f32.mrb[0].mxu0
        %3092 = vmatprep.mubr.bf16.mxu0 0
        %3093 = vmatmul.mubr.bf16.gmra.mrb[0].mxu0 %v2526
        %v3094 = vpop.f32.mrb[0].mxu0
        %v3095 = vadd.f32 0.0, %v3094
        %v3096 = vpop.f32.mrb[0].mxu0
        %v3097 = vpop.f32.mrb[0].mxu0
        %v3098 = vadd.f32 0.0, %v3097
        %v3099 = vpop.f32.mrb[0].mxu0
        %3100 = vmatprep.mubr.bf16.mxu0 0
        %3101 = vmatmul.mubr.bf16.gmra.mrb[0].mxu0 %v2527
        %v3102 = vpop.f32.mrb[0].mxu0
        %v3103 = vadd.f32 0.0, %v3102
        %v3104 = vpop.f32.mrb[0].mxu0
        %v3105 = vpop.f32.mrb[0].mxu0
        %v3106 = vadd.f32 0.0, %v3105
        %v3107 = vpop.f32.mrb[0].mxu0
        %3108 = vmatprep.mubr.bf16.mxu0 0
        %3109 = vmatmul.mubr.bf16.gmra.mrb[0].mxu0 %v2528
        %v3110 = vpop.f32.mrb[0].mxu0
        %v3111 = vadd.f32 0.0, %v3110
        %v3112 = vpop.f32.mrb[0].mxu0
        %v3113 = vpop.f32.mrb[0].mxu0
        %v3114 = vadd.f32 0.0, %v3113
        %v3115 = vpop.f32.mrb[0].mxu0
        %3116 = vmatprep.mubr.bf16.mxu0 0
        %3117 = vmatmul.mubr.bf16.gmra.mrb[0].mxu0 %v2529
        %v3118 = vpop.f32.mrb[0].mxu0
        %v3119 = vadd.f32 0.0, %v3118
        %v3120 = vpop.f32.mrb[0].mxu0
        %v3121 = vpop.f32.mrb[0].mxu0
        %v3122 = vadd.f32 0.0, %v3121
        %v3123 = vpop.f32.mrb[0].mxu0
        %3124 = vmatprep.mubr.bf16.mxu0 0
        %3125 = vmatmul.mubr.bf16.gmra.mrb[0].mxu0 %v2530
        %v3126 = vpop.f32.mrb[0].mxu0
        %v3127 = vadd.f32 0.0, %v3126
        %v3128 = vpop.f32.mrb[0].mxu0
        %v3129 = vpop.f32.mrb[0].mxu0
        %v3130 = vadd.f32 0.0, %v3129
        %v3131 = vpop.f32.mrb[0].mxu0
        %3132 = vmatprep.mubr.bf16.mxu0 0
        %3133 = vmatmul.mubr.bf16.gmra.mrb[0].mxu0 %v2531
        %v3134 = vpop.f32.mrb[0].mxu0
        %v3135 = vadd.f32 0.0, %v3134
        %v3136 = vpop.f32.mrb[0].mxu0
        %v3137 = vpop.f32.mrb[0].mxu0
        %v3138 = vadd.f32 0.0, %v3137
        %v3139 = vpop.f32.mrb[0].mxu0
        %3140 = vmatprep.mubr.bf16.mxu0 0
        %3141 = vmatmul.mubr.bf16.gmra.mrb[0].mxu0 %v2532
        %v3142 = vpop.f32.mrb[0].mxu0
        %v3143 = vadd.f32 0.0, %v3142
        %v3144 = vpop.f32.mrb[0].mxu0
        %v3145 = vpop.f32.mrb[0].mxu0
        %v3146 = vadd.f32 0.0, %v3145
        %v3147 = vpop.f32.mrb[0].mxu0
        %3148 = vmatprep.mubr.bf16.mxu0 0
        %3149 = vmatmul.mubr.bf16.gmra.mrb[0].mxu0 %v2533
        %v3150 = vpop.f32.mrb[0].mxu0
        %v3151 = vadd.f32 0.0, %v3150
        %v3152 = vpop.f32.mrb[0].mxu0
        %v3153 = vpop.f32.mrb[0].mxu0
        %v3154 = vadd.f32 0.0, %v3153
        %v3155 = vpop.f32.mrb[0].mxu0
        %3156 = vmatprep.mubr.bf16.mxu0 0
        %3157 = vmatmul.mubr.bf16.gmra.mrb[0].mxu0 %v2534
        %v3158 = vpop.f32.mrb[0].mxu0
        %v3159 = vadd.f32 0.0, %v3158
        %v3160 = vpop.f32.mrb[0].mxu0
        %v3161 = vpop.f32.mrb[0].mxu0
        %v3162 = vadd.f32 0.0, %v3161
        %v3163 = vpop.f32.mrb[0].mxu0
        %3164 = vmatprep.mubr.bf16.mxu0 0
        %3165 = vmatmul.mubr.bf16.gmra.mrb[0].mxu0 %v2535
        %v3166 = vpop.f32.mrb[0].mxu0
        %v3167 = vadd.f32 0.0, %v3166
        %v3168 = vpop.f32.mrb[0].mxu0
        %v3169 = vpop.f32.mrb[0].mxu0
        %v3170 = vadd.f32 0.0, %v3169
        %v3171 = vpop.f32.mrb[0].mxu0
        %3172 = vmatprep.mubr.bf16.mxu0 0
        %3173 = vmatmul.mubr.bf16.gmra.mrb[0].mxu0 %v2536
        %v3174 = vpop.f32.mrb[0].mxu0
        %v3175 = vadd.f32 0.0, %v3174
        %v3176 = vpop.f32.mrb[0].mxu0
        %v3177 = vpop.f32.mrb[0].mxu0
        %v3178 = vadd.f32 0.0, %v3177
        %v3179 = vpop.f32.mrb[0].mxu0
        %3180 = vmatprep.mubr.bf16.mxu0 0
        %3181 = vmatmul.mubr.bf16.gmra.mrb[0].mxu0 %v2537
        %v3182 = vpop.f32.mrb[0].mxu0
        %v3183 = vadd.f32 0.0, %v3182
        %v3184 = vpop.f32.mrb[0].mxu0
        %v3185 = vpop.f32.mrb[0].mxu0
        %v3186 = vadd.f32 0.0, %v3185
        %v3187 = vpop.f32.mrb[0].mxu0
        %3188 = vmatprep.mubr.bf16.mxu0 0
        %3189 = vmatmul.mubr.bf16.gmra.mrb[0].mxu0 %v2538
        %v3190 = vpop.f32.mrb[0].mxu0
        %v3191 = vadd.f32 0.0, %v3190
        %v3192 = vpop.f32.mrb[0].mxu0
        %v3193 = vpop.f32.mrb[0].mxu0
        %v3194 = vadd.f32 0.0, %v3193
        %v3195 = vpop.f32.mrb[0].mxu0
        %3196 = vmatprep.mubr.bf16.mxu0 0
        %3197 = vmatmul.mubr.bf16.gmra.mrb[0].mxu0 %v2539
        %v3198 = vpop.f32.mrb[0].mxu0
        %v3199 = vadd.f32 0.0, %v3198
        %v3200 = vpop.f32.mrb[0].mxu0
        %v3201 = vpop.f32.mrb[0].mxu0
        %v3202 = vadd.f32 0.0, %v3201
        %v3203 = vpop.f32.mrb[0].mxu0
        %3204 = vmatprep.mubr.bf16.mxu0 0
        %3205 = vmatmul.mubr.bf16.gmra.mrb[0].mxu0 %v2540
        %v3206 = vpop.f32.mrb[0].mxu0
        %v3207 = vadd.f32 0.0, %v3206
        %v3208 = vpop.f32.mrb[0].mxu0
        %v3209 = vpop.f32.mrb[0].mxu0
        %v3210 = vadd.f32 0.0, %v3209
        %v3211 = vpop.f32.mrb[0].mxu0
        %3212 = vmatprep.mubr.bf16.mxu0 0
        %3213 = vmatmul.mubr.bf16.gmra.mrb[0].mxu0 %v2541
        %v3214 = vpop.f32.mrb[0].mxu0
        %v3215 = vadd.f32 0.0, %v3214
        %v3216 = vpop.f32.mrb[0].mxu0
        %v3217 = vpop.f32.mrb[0].mxu0
        %v3218 = vadd.f32 0.0, %v3217
        %v3219 = vpop.f32.mrb[0].mxu0
        %3220 = vmatprep.mubr.bf16.mxu0 0
        %3221 = vmatmul.mubr.bf16.gmra.mrb[0].mxu0 %v2542
        %v3222 = vpop.f32.mrb[0].mxu0
        %v3223 = vadd.f32 0.0, %v3222
        %v3224 = vpop.f32.mrb[0].mxu0
        %v3225 = vpop.f32.mrb[0].mxu0
        %v3226 = vadd.f32 0.0, %v3225
        %v3227 = vpop.f32.mrb[0].mxu0
        %3228 = vdwg.mxu0
        %v3229 = vadd.f32 %v2951, %v3087
        %v3230 = vadd.f32 %v2952, %v3090
        %v3231 = vadd.f32 %v2953, %v3095
        %v3232 = vadd.f32 %v2954, %v3098
        %v3233 = vadd.f32 %v2955, %v3103
        %v3234 = vadd.f32 %v2956, %v3106
        %v3235 = vadd.f32 %v2957, %v3111
        %v3236 = vadd.f32 %v2958, %v3114
        %v3237 = vadd.f32 %v2959, %v3119
        %v3238 = vadd.f32 %v2960, %v3122
        %v3239 = vadd.f32 %v2961, %v3127
        %v3240 = vadd.f32 %v2962, %v3130
        %v3241 = vadd.f32 %v2963, %v3135
        %v3242 = vadd.f32 %v2964, %v3138
        %v3243 = vadd.f32 %v2965, %v3143
        %v3244 = vadd.f32 %v2966, %v3146
        %v3245 = vadd.f32 %v2967, %v3151
        %v3246 = vadd.f32 %v2968, %v3154
        %v3247 = vadd.f32 %v2969, %v3159
        %v3248 = vadd.f32 %v2970, %v3162
        %v3249 = vadd.f32 %v2971, %v3167
        %v3250 = vadd.f32 %v2972, %v3170
        %v3251 = vadd.f32 %v2973, %v3175
        %v3252 = vadd.f32 %v2974, %v3178
        %v3253 = vadd.f32 %v2975, %v3183
        %v3254 = vadd.f32 %v2976, %v3186
        %v3255 = vadd.f32 %v2977, %v3191
        %v3256 = vadd.f32 %v2978, %v3194
        %v3257 = vadd.f32 %v2979, %v3199
        %v3258 = vadd.f32 %v2980, %v3202
        %v3259 = vadd.f32 %v2981, %v3207
        %v3260 = vadd.f32 %v2982, %v3210
        %v3261 = vadd.f32 %v2983, %v3215
        %v3262 = vadd.f32 %v2984, %v3218
        %v3263 = vadd.f32 %v2985, %v3223
        %v3264 = vadd.f32 %v2986, %v3226
        %v3265 = vld [vmem:[#allocation2 + $0x10] sm:$0xff]
        %v3266 = vld [vmem:[#allocation2 + $0x18] sm:$0xff]
        %v3267 = vld [vmem:[#allocation2 + $0x20] sm:$0xff]
        %v3268 = vld [vmem:[#allocation2 + $0x28] sm:$0xff]
        %v3269 = vld [vmem:[#allocation2 + $0x30] sm:$0xff]
        %v3270 = vld [vmem:[#allocation2 + $0x38] sm:$0xff]
        %v3271 = vld [vmem:[#allocation2 + $0x40] sm:$0xff]
        %v3272 = vld [vmem:[#allocation2 + $0x48] sm:$0xff]
        %v3273 = vld [vmem:[#allocation2 + $0x50] sm:$0xff]
        %v3274 = vld [vmem:[#allocation2 + $0x58] sm:$0xff]
        %v3275 = vld [vmem:[#allocation2 + $0x60] sm:$0xff]
        %v3276 = vld [vmem:[#allocation2 + $0x68] sm:$0xff]
        %v3277 = vld [vmem:[#allocation2 + $0x70] sm:$0xff]
        %v3278 = vld [vmem:[#allocation2 + $0x78] sm:$0xff]
        %v3279 = vld [vmem:[#allocation2 + $0x80] sm:$0xff]
        %v3280 = vld [vmem:[#allocation2 + $0x88] sm:$0xff]
        %v3281 = vld [vmem:[#allocation2 + $0x90] sm:$0xff]
        %v3282 = vld [vmem:[#allocation2 + $0x98] sm:$0xff]
        %v3283 = vld [vmem:[#allocation2 + $0xa0] sm:$0x1]
        %s3284 = scalar_lea.vmem [#allocation11], 320
        %v3285 = vld [vmem:[%s3284] sm:$0xf]
        %v3286 = vld [vmem:[%s3284 + $0x4] sm:$0xf]
        %v3287 = vld [vmem:[%s3284 + $0x8] sm:$0xf]
        %v3288 = vld [vmem:[%s3284 + $0xc] sm:$0xf]
        %v3289 = vld [vmem:[%s3284 + $0x10] sm:$0xf]
        %v3290 = vld [vmem:[%s3284 + $0x14] sm:$0xf]
        %v3291 = vld [vmem:[%s3284 + $0x18] sm:$0xf]
        %v3292 = vld [vmem:[%s3284 + $0x1c] sm:$0xf]
        %v3293 = vld [vmem:[%s3284 + $0x20] sm:$0xf]
        %v3294 = vld [vmem:[%s3284 + $0x24] sm:$0xf]
        %v3295 = vld [vmem:[%s3284 + $0x28] sm:$0xf]
        %v3296 = vld [vmem:[%s3284 + $0x2c] sm:$0xf]
        %v3297 = vld [vmem:[%s3284 + $0x30] sm:$0xf]
        %v3298 = vld [vmem:[%s3284 + $0x34] sm:$0xf]
        %v3299 = vld [vmem:[%s3284 + $0x38] sm:$0xf]
        %v3300 = vld [vmem:[%s3284 + $0x3c] sm:$0xf]
        %vm3301 = vsmask.f32 7424
        %v3303 = vshrl.u32 %v3265, 16
        %v3305 = vshll.u32 %v3265, 16
        %v3307 = vrot.slane %v3305, 1
        %v3308 = vor.u32 %v3303, %v3307
        %v3310 = vshll.u32 %v3266, 16
        %v3312 = vrot.slane %v3310, 1
        %v3313 = vsel %vm3301, %v3308, %v3312
        %v3314 = vshrl.u32 %v3266, 16
        %v3316 = vor.u32 %v3314, %v3312
        %v3318 = vshll.u32 %v3267, 16
        %v3320 = vrot.slane %v3318, 1
        %v3321 = vsel %vm3301, %v3316, %v3320
        %v3322 = vshrl.u32 %v3267, 16
        %v3324 = vor.u32 %v3322, %v3320
        %v3326 = vshll.u32 %v3268, 16
        %v3328 = vrot.slane %v3326, 1
        %v3329 = vsel %vm3301, %v3324, %v3328
        %v3330 = vshrl.u32 %v3268, 16
        %v3332 = vor.u32 %v3330, %v3328
        %v3334 = vshll.u32 %v3269, 16
        %v3336 = vrot.slane %v3334, 1
        %v3337 = vsel %vm3301, %v3332, %v3336
        %v3338 = vshrl.u32 %v3269, 16
        %v3340 = vor.u32 %v3338, %v3336
        %v3342 = vshll.u32 %v3270, 16
        %v3344 = vrot.slane %v3342, 1
        %v3345 = vsel %vm3301, %v3340, %v3344
        %v3346 = vshrl.u32 %v3270, 16
        %v3348 = vor.u32 %v3346, %v3344
        %v3350 = vshll.u32 %v3271, 16
        %v3352 = vrot.slane %v3350, 1
        %v3353 = vsel %vm3301, %v3348, %v3352
        %v3354 = vshrl.u32 %v3271, 16
        %v3356 = vor.u32 %v3354, %v3352
        %v3358 = vshll.u32 %v3272, 16
        %v3360 = vrot.slane %v3358, 1
        %v3361 = vsel %vm3301, %v3356, %v3360
        %v3362 = vshrl.u32 %v3272, 16
        %v3364 = vor.u32 %v3362, %v3360
        %v3366 = vshll.u32 %v3273, 16
        %v3368 = vrot.slane %v3366, 1
        %v3369 = vsel %vm3301, %v3364, %v3368
        %v3370 = vshrl.u32 %v3273, 16
        %v3372 = vor.u32 %v3370, %v3368
        %v3374 = vshll.u32 %v3274, 16
        %v3376 = vrot.slane %v3374, 1
        %v3377 = vsel %vm3301, %v3372, %v3376
        %v3378 = vshrl.u32 %v3274, 16
        %v3380 = vor.u32 %v3378, %v3376
        %v3382 = vshll.u32 %v3275, 16
        %v3384 = vrot.slane %v3382, 1
        %v3385 = vsel %vm3301, %v3380, %v3384
        %v3386 = vshrl.u32 %v3275, 16
        %v3388 = vor.u32 %v3386, %v3384
        %v3390 = vshll.u32 %v3276, 16
        %v3392 = vrot.slane %v3390, 1
        %v3393 = vsel %vm3301, %v3388, %v3392
        %v3394 = vshrl.u32 %v3276, 16
        %v3396 = vor.u32 %v3394, %v3392
        %v3398 = vshll.u32 %v3277, 16
        %v3400 = vrot.slane %v3398, 1
        %v3401 = vsel %vm3301, %v3396, %v3400
        %v3402 = vshrl.u32 %v3277, 16
        %v3404 = vor.u32 %v3402, %v3400
        %v3406 = vshll.u32 %v3278, 16
        %v3408 = vrot.slane %v3406, 1
        %v3409 = vsel %vm3301, %v3404, %v3408
        %v3410 = vshrl.u32 %v3278, 16
        %v3412 = vor.u32 %v3410, %v3408
        %v3414 = vshll.u32 %v3279, 16
        %v3416 = vrot.slane %v3414, 1
        %v3417 = vsel %vm3301, %v3412, %v3416
        %v3418 = vshrl.u32 %v3279, 16
        %v3420 = vor.u32 %v3418, %v3416
        %v3422 = vshll.u32 %v3280, 16
        %v3424 = vrot.slane %v3422, 1
        %v3425 = vsel %vm3301, %v3420, %v3424
        %v3426 = vshrl.u32 %v3280, 16
        %v3428 = vor.u32 %v3426, %v3424
        %v3430 = vshll.u32 %v3281, 16
        %v3432 = vrot.slane %v3430, 1
        %v3433 = vsel %vm3301, %v3428, %v3432
        %v3434 = vshrl.u32 %v3281, 16
        %v3436 = vor.u32 %v3434, %v3432
        %v3438 = vshll.u32 %v3282, 16
        %v3440 = vrot.slane %v3438, 1
        %v3441 = vsel %vm3301, %v3436, %v3440
        %v3442 = vshrl.u32 %v3282, 16
        %v3444 = vor.u32 %v3442, %v3440
        %v3446 = vshll.u32 %v3283, 16
        %v3448 = vrot.slane %v3446, 1
        %v3449 = vsel %vm3301, %v3444, %v3448
        %v3484 = vunpack.c.l.b16 %v3285
        %v3485 = vunpack.c.l.b16 %v3286
        %v3486 = vunpack.c.l.b16 %v3287
        %v3487 = vunpack.c.l.b16 %v3288
        %v3488 = vunpack.c.l.b16 %v3289
        %v3489 = vunpack.c.l.b16 %v3290
        %v3490 = vunpack.c.l.b16 %v3291
        %v3491 = vunpack.c.l.b16 %v3292
        %v3492 = vunpack.c.l.b16 %v3293
        %v3493 = vunpack.c.l.b16 %v3294
        %v3494 = vunpack.c.l.b16 %v3295
        %v3495 = vunpack.c.l.b16 %v3296
        %v3496 = vunpack.c.l.b16 %v3297
        %v3497 = vunpack.c.l.b16 %v3298
        %v3498 = vunpack.c.l.b16 %v3299
        %v3499 = vunpack.c.l.b16 %v3300
        %v3500 = vpack.c.b16 %v3485, %v3484
        %v3501 = vpack.c.b16 %v3487, %v3486
        %v3502 = vpack.c.b16 %v3489, %v3488
        %v3503 = vpack.c.b16 %v3491, %v3490
        %v3504 = vpack.c.b16 %v3493, %v3492
        %v3505 = vpack.c.b16 %v3495, %v3494
        %v3506 = vpack.c.b16 %v3497, %v3496
        %v3507 = vpack.c.b16 %v3499, %v3498
        %3516 = vmatprep.subr.bf16.mxu0 0
        %3517 = vmatpush1.bf16.msra.mxu0 %v3500
        %3518 = vmatprep.subr.bf16.mxu0 0
        %3519 = vmatpush1.bf16.msra.mxu0 %v3501
        %3520 = vmatprep.subr.bf16.mxu0 0
        %3521 = vmatpush1.bf16.msra.mxu0 %v3502
        %3522 = vmatprep.subr.bf16.mxu0 0
        %3523 = vmatpush1.bf16.msra.mxu0 %v3503
        %3524 = vmatprep.subr.bf16.mxu0 0
        %3525 = vmatpush1.bf16.msra.mxu0 %v3504
        %3526 = vmatprep.subr.bf16.mxu0 0
        %3527 = vmatpush1.bf16.msra.mxu0 %v3505
        %3528 = vmatprep.subr.bf16.mxu0 0
        %3529 = vmatpush1.bf16.msra.mxu0 %v3506
        %3530 = vmatprep.subr.bf16.mxu0 0
        %3531 = vmatpush1.bf16.msra.mxu0 %v3507
        %3532 = vmatprep.subr.bf16.mxu0 0
        %3533 = vmatpush1.bf16.msra.mxu0 0
        %3534 = vmatprep.subr.bf16.mxu0 0
        %3535 = vmatpush1.bf16.msra.mxu0 0
        %3536 = vmatprep.subr.bf16.mxu0 0
        %3537 = vmatpush1.bf16.msra.mxu0 0
        %3538 = vmatprep.subr.bf16.mxu0 0
        %3539 = vmatpush1.bf16.msra.mxu0 0
        %3540 = vmatprep.subr.bf16.mxu0 0
        %3541 = vmatpush1.bf16.msra.mxu0 0
        %3542 = vmatprep.subr.bf16.mxu0 0
        %3543 = vmatpush1.bf16.msra.mxu0 0
        %3544 = vmatprep.subr.bf16.mxu0 0
        %3545 = vmatpush1.bf16.msra.mxu0 0
        %3546 = vmatprep.subr.bf16.mxu0 0
        %3547 = vmatpush1.bf16.msra.mxu0 0
        %3548 = vmatprep.mubr.bf16.mxu0 0
        %3549 = vmatmul.mubr.bf16.gmra.mrb[0].mxu0 %v3313
        %v3550 = vpop.f32.mrb[0].mxu0
        %v3551 = vadd.f32 0.0, %v3550
        %v3552 = vpop.f32.mrb[0].mxu0
        %v3553 = vpop.f32.mrb[0].mxu0
        %v3554 = vadd.f32 0.0, %v3553
        %v3555 = vpop.f32.mrb[0].mxu0
        %3556 = vmatprep.mubr.bf16.mxu0 0
        %3557 = vmatmul.mubr.bf16.gmra.mrb[0].mxu0 %v3321
        %v3558 = vpop.f32.mrb[0].mxu0
        %v3559 = vadd.f32 0.0, %v3558
        %v3560 = vpop.f32.mrb[0].mxu0
        %v3561 = vpop.f32.mrb[0].mxu0
        %v3562 = vadd.f32 0.0, %v3561
        %v3563 = vpop.f32.mrb[0].mxu0
        %3564 = vmatprep.mubr.bf16.mxu0 0
        %3565 = vmatmul.mubr.bf16.gmra.mrb[0].mxu0 %v3329
        %v3566 = vpop.f32.mrb[0].mxu0
        %v3567 = vadd.f32 0.0, %v3566
        %v3568 = vpop.f32.mrb[0].mxu0
        %v3569 = vpop.f32.mrb[0].mxu0
        %v3570 = vadd.f32 0.0, %v3569
        %v3571 = vpop.f32.mrb[0].mxu0
        %3572 = vmatprep.mubr.bf16.mxu0 0
        %3573 = vmatmul.mubr.bf16.gmra.mrb[0].mxu0 %v3337
        %v3574 = vpop.f32.mrb[0].mxu0
        %v3575 = vadd.f32 0.0, %v3574
        %v3576 = vpop.f32.mrb[0].mxu0
        %v3577 = vpop.f32.mrb[0].mxu0
        %v3578 = vadd.f32 0.0, %v3577
        %v3579 = vpop.f32.mrb[0].mxu0
        %3580 = vmatprep.mubr.bf16.mxu0 0
        %3581 = vmatmul.mubr.bf16.gmra.mrb[0].mxu0 %v3345
        %v3582 = vpop.f32.mrb[0].mxu0
        %v3583 = vadd.f32 0.0, %v3582
        %v3584 = vpop.f32.mrb[0].mxu0
        %v3585 = vpop.f32.mrb[0].mxu0
        %v3586 = vadd.f32 0.0, %v3585
        %v3587 = vpop.f32.mrb[0].mxu0
        %3588 = vmatprep.mubr.bf16.mxu0 0
        %3589 = vmatmul.mubr.bf16.gmra.mrb[0].mxu0 %v3353
        %v3590 = vpop.f32.mrb[0].mxu0
        %v3591 = vadd.f32 0.0, %v3590
        %v3592 = vpop.f32.mrb[0].mxu0
        %v3593 = vpop.f32.mrb[0].mxu0
        %v3594 = vadd.f32 0.0, %v3593
        %v3595 = vpop.f32.mrb[0].mxu0
        %3596 = vmatprep.mubr.bf16.mxu0 0
        %3597 = vmatmul.mubr.bf16.gmra.mrb[0].mxu0 %v3361
        %v3598 = vpop.f32.mrb[0].mxu0
        %v3599 = vadd.f32 0.0, %v3598
        %v3600 = vpop.f32.mrb[0].mxu0
        %v3601 = vpop.f32.mrb[0].mxu0
        %v3602 = vadd.f32 0.0, %v3601
        %v3603 = vpop.f32.mrb[0].mxu0
        %3604 = vmatprep.mubr.bf16.mxu0 0
        %3605 = vmatmul.mubr.bf16.gmra.mrb[0].mxu0 %v3369
        %v3606 = vpop.f32.mrb[0].mxu0
        %v3607 = vadd.f32 0.0, %v3606
        %v3608 = vpop.f32.mrb[0].mxu0
        %v3609 = vpop.f32.mrb[0].mxu0
        %v3610 = vadd.f32 0.0, %v3609
        %v3611 = vpop.f32.mrb[0].mxu0
        %3612 = vmatprep.mubr.bf16.mxu0 0
        %3613 = vmatmul.mubr.bf16.gmra.mrb[0].mxu0 %v3377
        %v3614 = vpop.f32.mrb[0].mxu0
        %v3615 = vadd.f32 0.0, %v3614
        %v3616 = vpop.f32.mrb[0].mxu0
        %v3617 = vpop.f32.mrb[0].mxu0
        %v3618 = vadd.f32 0.0, %v3617
        %v3619 = vpop.f32.mrb[0].mxu0
        %3620 = vmatprep.mubr.bf16.mxu0 0
        %3621 = vmatmul.mubr.bf16.gmra.mrb[0].mxu0 %v3385
        %v3622 = vpop.f32.mrb[0].mxu0
        %v3623 = vadd.f32 0.0, %v3622
        %v3624 = vpop.f32.mrb[0].mxu0
        %v3625 = vpop.f32.mrb[0].mxu0
        %v3626 = vadd.f32 0.0, %v3625
        %v3627 = vpop.f32.mrb[0].mxu0
        %3628 = vmatprep.mubr.bf16.mxu0 0
        %3629 = vmatmul.mubr.bf16.gmra.mrb[0].mxu0 %v3393
        %v3630 = vpop.f32.mrb[0].mxu0
        %v3631 = vadd.f32 0.0, %v3630
        %v3632 = vpop.f32.mrb[0].mxu0
        %v3633 = vpop.f32.mrb[0].mxu0
        %v3634 = vadd.f32 0.0, %v3633
        %v3635 = vpop.f32.mrb[0].mxu0
        %3636 = vmatprep.mubr.bf16.mxu0 0
        %3637 = vmatmul.mubr.bf16.gmra.mrb[0].mxu0 %v3401
        %v3638 = vpop.f32.mrb[0].mxu0
        %v3639 = vadd.f32 0.0, %v3638
        %v3640 = vpop.f32.mrb[0].mxu0
        %v3641 = vpop.f32.mrb[0].mxu0
        %v3642 = vadd.f32 0.0, %v3641
        %v3643 = vpop.f32.mrb[0].mxu0
        %3644 = vmatprep.mubr.bf16.mxu0 0
        %3645 = vmatmul.mubr.bf16.gmra.mrb[0].mxu0 %v3409
        %v3646 = vpop.f32.mrb[0].mxu0
        %v3647 = vadd.f32 0.0, %v3646
        %v3648 = vpop.f32.mrb[0].mxu0
        %v3649 = vpop.f32.mrb[0].mxu0
        %v3650 = vadd.f32 0.0, %v3649
        %v3651 = vpop.f32.mrb[0].mxu0
        %3652 = vmatprep.mubr.bf16.mxu0 0
        %3653 = vmatmul.mubr.bf16.gmra.mrb[0].mxu0 %v3417
        %v3654 = vpop.f32.mrb[0].mxu0
        %v3655 = vadd.f32 0.0, %v3654
        %v3656 = vpop.f32.mrb[0].mxu0
        %v3657 = vpop.f32.mrb[0].mxu0
        %v3658 = vadd.f32 0.0, %v3657
        %v3659 = vpop.f32.mrb[0].mxu0
        %3660 = vmatprep.mubr.bf16.mxu0 0
        %3661 = vmatmul.mubr.bf16.gmra.mrb[0].mxu0 %v3425
        %v3662 = vpop.f32.mrb[0].mxu0
        %v3663 = vadd.f32 0.0, %v3662
        %v3664 = vpop.f32.mrb[0].mxu0
        %v3665 = vpop.f32.mrb[0].mxu0
        %v3666 = vadd.f32 0.0, %v3665
        %v3667 = vpop.f32.mrb[0].mxu0
        %3668 = vmatprep.mubr.bf16.mxu0 0
        %3669 = vmatmul.mubr.bf16.gmra.mrb[0].mxu0 %v3433
        %v3670 = vpop.f32.mrb[0].mxu0
        %v3671 = vadd.f32 0.0, %v3670
        %v3672 = vpop.f32.mrb[0].mxu0
        %v3673 = vpop.f32.mrb[0].mxu0
        %v3674 = vadd.f32 0.0, %v3673
        %v3675 = vpop.f32.mrb[0].mxu0
        %3676 = vmatprep.mubr.bf16.mxu0 0
        %3677 = vmatmul.mubr.bf16.gmra.mrb[0].mxu0 %v3441
        %v3678 = vpop.f32.mrb[0].mxu0
        %v3679 = vadd.f32 0.0, %v3678
        %v3680 = vpop.f32.mrb[0].mxu0
        %v3681 = vpop.f32.mrb[0].mxu0
        %v3682 = vadd.f32 0.0, %v3681
        %v3683 = vpop.f32.mrb[0].mxu0
        %3684 = vmatprep.mubr.bf16.mxu0 0
        %3685 = vmatmul.mubr.bf16.gmra.mrb[0].mxu0 %v3449
        %v3686 = vpop.f32.mrb[0].mxu0
        %v3687 = vadd.f32 0.0, %v3686
        %v3688 = vpop.f32.mrb[0].mxu0
        %v3689 = vpop.f32.mrb[0].mxu0
        %v3690 = vadd.f32 0.0, %v3689
        %v3691 = vpop.f32.mrb[0].mxu0
        %3692 = vdwg.mxu0
        %v3693 = vadd.f32 %v3229, %v3551
        %v3694 = vadd.f32 %v3230, %v3554
        %v3695 = vadd.f32 %v3231, %v3559
        %v3696 = vadd.f32 %v3232, %v3562
        %v3697 = vadd.f32 %v3233, %v3567
        %v3698 = vadd.f32 %v3234, %v3570
        %v3699 = vadd.f32 %v3235, %v3575
        %v3700 = vadd.f32 %v3236, %v3578
        %v3701 = vadd.f32 %v3237, %v3583
        %v3702 = vadd.f32 %v3238, %v3586
        %v3703 = vadd.f32 %v3239, %v3591
        %v3704 = vadd.f32 %v3240, %v3594
        %v3705 = vadd.f32 %v3241, %v3599
        %v3706 = vadd.f32 %v3242, %v3602
        %v3707 = vadd.f32 %v3243, %v3607
        %v3708 = vadd.f32 %v3244, %v3610
        %v3709 = vadd.f32 %v3245, %v3615
        %v3710 = vadd.f32 %v3246, %v3618
        %v3711 = vadd.f32 %v3247, %v3623
        %v3712 = vadd.f32 %v3248, %v3626
        %v3713 = vadd.f32 %v3249, %v3631
        %v3714 = vadd.f32 %v3250, %v3634
        %v3715 = vadd.f32 %v3251, %v3639
        %v3716 = vadd.f32 %v3252, %v3642
        %v3717 = vadd.f32 %v3253, %v3647
        %v3718 = vadd.f32 %v3254, %v3650
        %v3719 = vadd.f32 %v3255, %v3655
        %v3720 = vadd.f32 %v3256, %v3658
        %v3721 = vadd.f32 %v3257, %v3663
        %v3722 = vadd.f32 %v3258, %v3666
        %v3723 = vadd.f32 %v3259, %v3671
        %v3724 = vadd.f32 %v3260, %v3674
        %v3725 = vadd.f32 %v3261, %v3679
        %v3726 = vadd.f32 %v3262, %v3682
        %v3727 = vadd.f32 %v3263, %v3687
        %v3728 = vadd.f32 %v3264, %v3690
        %v3729 = vld [vmem:[#allocation2 + $0x18] sm:$0xff]
        %v3730 = vld [vmem:[#allocation2 + $0x20] sm:$0xff]
        %v3731 = vld [vmem:[#allocation2 + $0x28] sm:$0xff]
        %v3732 = vld [vmem:[#allocation2 + $0x30] sm:$0xff]
        %v3733 = vld [vmem:[#allocation2 + $0x38] sm:$0xff]
        %v3734 = vld [vmem:[#allocation2 + $0x40] sm:$0xff]
        %v3735 = vld [vmem:[#allocation2 + $0x48] sm:$0xff]
        %v3736 = vld [vmem:[#allocation2 + $0x50] sm:$0xff]
        %v3737 = vld [vmem:[#allocation2 + $0x58] sm:$0xff]
        %v3738 = vld [vmem:[#allocation2 + $0x60] sm:$0xff]
        %v3739 = vld [vmem:[#allocation2 + $0x68] sm:$0xff]
        %v3740 = vld [vmem:[#allocation2 + $0x70] sm:$0xff]
        %v3741 = vld [vmem:[#allocation2 + $0x78] sm:$0xff]
        %v3742 = vld [vmem:[#allocation2 + $0x80] sm:$0xff]
        %v3743 = vld [vmem:[#allocation2 + $0x88] sm:$0xff]
        %v3744 = vld [vmem:[#allocation2 + $0x90] sm:$0xff]
        %v3745 = vld [vmem:[#allocation2 + $0x98] sm:$0xff]
        %v3746 = vld [vmem:[#allocation2 + $0xa0] sm:$0xff]
        %v3747 = vld [vmem:[#allocation2 + $0xa8] sm:$0x1]
        %s3748 = scalar_lea.vmem [#allocation11], 384
        %v3749 = vld [vmem:[%s3748] sm:$0xf]
        %v3750 = vld [vmem:[%s3748 + $0x4] sm:$0xf]
        %v3751 = vld [vmem:[%s3748 + $0x8] sm:$0xf]
        %v3752 = vld [vmem:[%s3748 + $0xc] sm:$0xf]
        %v3753 = vld [vmem:[%s3748 + $0x10] sm:$0xf]
        %v3754 = vld [vmem:[%s3748 + $0x14] sm:$0xf]
        %v3755 = vld [vmem:[%s3748 + $0x18] sm:$0xf]
        %v3756 = vld [vmem:[%s3748 + $0x1c] sm:$0xf]
        %v3757 = vld [vmem:[%s3748 + $0x20] sm:$0xf]
        %v3758 = vld [vmem:[%s3748 + $0x24] sm:$0xf]
        %v3759 = vld [vmem:[%s3748 + $0x28] sm:$0xf]
        %v3760 = vld [vmem:[%s3748 + $0x2c] sm:$0xf]
        %v3761 = vld [vmem:[%s3748 + $0x30] sm:$0xf]
        %v3762 = vld [vmem:[%s3748 + $0x34] sm:$0xf]
        %v3763 = vld [vmem:[%s3748 + $0x38] sm:$0xf]
        %v3764 = vld [vmem:[%s3748 + $0x3c] sm:$0xf]
        %v3766 = vshrl.u32 %v3729, 16
        %v3768 = vshll.u32 %v3729, 16
        %v3770 = vrot.slane %v3768, 1
        %v3771 = vor.u32 %v3766, %v3770
        %v3773 = vshll.u32 %v3730, 16
        %v3775 = vrot.slane %v3773, 1
        %v3776 = vsel %vm3301, %v3771, %v3775
        %v3777 = vshrl.u32 %v3730, 16
        %v3779 = vor.u32 %v3777, %v3775
        %v3781 = vshll.u32 %v3731, 16
        %v3783 = vrot.slane %v3781, 1
        %v3784 = vsel %vm3301, %v3779, %v3783
        %v3785 = vshrl.u32 %v3731, 16
        %v3787 = vor.u32 %v3785, %v3783
        %v3789 = vshll.u32 %v3732, 16
        %v3791 = vrot.slane %v3789, 1
        %v3792 = vsel %vm3301, %v3787, %v3791
        %v3793 = vshrl.u32 %v3732, 16
        %v3795 = vor.u32 %v3793, %v3791
        %v3797 = vshll.u32 %v3733, 16
        %v3799 = vrot.slane %v3797, 1
        %v3800 = vsel %vm3301, %v3795, %v3799
        %v3801 = vshrl.u32 %v3733, 16
        %v3803 = vor.u32 %v3801, %v3799
        %v3805 = vshll.u32 %v3734, 16
        %v3807 = vrot.slane %v3805, 1
        %v3808 = vsel %vm3301, %v3803, %v3807
        %v3809 = vshrl.u32 %v3734, 16
        %v3811 = vor.u32 %v3809, %v3807
        %v3813 = vshll.u32 %v3735, 16
        %v3815 = vrot.slane %v3813, 1
        %v3816 = vsel %vm3301, %v3811, %v3815
        %v3817 = vshrl.u32 %v3735, 16
        %v3819 = vor.u32 %v3817, %v3815
        %v3821 = vshll.u32 %v3736, 16
        %v3823 = vrot.slane %v3821, 1
        %v3824 = vsel %vm3301, %v3819, %v3823
        %v3825 = vshrl.u32 %v3736, 16
        %v3827 = vor.u32 %v3825, %v3823
        %v3829 = vshll.u32 %v3737, 16
        %v3831 = vrot.slane %v3829, 1
        %v3832 = vsel %vm3301, %v3827, %v3831
        %v3833 = vshrl.u32 %v3737, 16
        %v3835 = vor.u32 %v3833, %v3831
        %v3837 = vshll.u32 %v3738, 16
        %v3839 = vrot.slane %v3837, 1
        %v3840 = vsel %vm3301, %v3835, %v3839
        %v3841 = vshrl.u32 %v3738, 16
        %v3843 = vor.u32 %v3841, %v3839
        %v3845 = vshll.u32 %v3739, 16
        %v3847 = vrot.slane %v3845, 1
        %v3848 = vsel %vm3301, %v3843, %v3847
        %v3849 = vshrl.u32 %v3739, 16
        %v3851 = vor.u32 %v3849, %v3847
        %v3853 = vshll.u32 %v3740, 16
        %v3855 = vrot.slane %v3853, 1
        %v3856 = vsel %vm3301, %v3851, %v3855
        %v3857 = vshrl.u32 %v3740, 16
        %v3859 = vor.u32 %v3857, %v3855
        %v3861 = vshll.u32 %v3741, 16
        %v3863 = vrot.slane %v3861, 1
        %v3864 = vsel %vm3301, %v3859, %v3863
        %v3865 = vshrl.u32 %v3741, 16
        %v3867 = vor.u32 %v3865, %v3863
        %v3869 = vshll.u32 %v3742, 16
        %v3871 = vrot.slane %v3869, 1
        %v3872 = vsel %vm3301, %v3867, %v3871
        %v3873 = vshrl.u32 %v3742, 16
        %v3875 = vor.u32 %v3873, %v3871
        %v3877 = vshll.u32 %v3743, 16
        %v3879 = vrot.slane %v3877, 1
        %v3880 = vsel %vm3301, %v3875, %v3879
        %v3881 = vshrl.u32 %v3743, 16
        %v3883 = vor.u32 %v3881, %v3879
        %v3885 = vshll.u32 %v3744, 16
        %v3887 = vrot.slane %v3885, 1
        %v3888 = vsel %vm3301, %v3883, %v3887
        %v3889 = vshrl.u32 %v3744, 16
        %v3891 = vor.u32 %v3889, %v3887
        %v3893 = vshll.u32 %v3745, 16
        %v3895 = vrot.slane %v3893, 1
        %v3896 = vsel %vm3301, %v3891, %v3895
        %v3897 = vshrl.u32 %v3745, 16
        %v3899 = vor.u32 %v3897, %v3895
        %v3901 = vshll.u32 %v3746, 16
        %v3903 = vrot.slane %v3901, 1
        %v3904 = vsel %vm3301, %v3899, %v3903
        %v3905 = vshrl.u32 %v3746, 16
        %v3907 = vor.u32 %v3905, %v3903
        %v3909 = vshll.u32 %v3747, 16
        %v3911 = vrot.slane %v3909, 1
        %v3912 = vsel %vm3301, %v3907, %v3911
        %v3947 = vunpack.c.l.b16 %v3749
        %v3948 = vunpack.c.l.b16 %v3750
        %v3949 = vunpack.c.l.b16 %v3751
        %v3950 = vunpack.c.l.b16 %v3752
        %v3951 = vunpack.c.l.b16 %v3753
        %v3952 = vunpack.c.l.b16 %v3754
        %v3953 = vunpack.c.l.b16 %v3755
        %v3954 = vunpack.c.l.b16 %v3756
        %v3955 = vunpack.c.l.b16 %v3757
        %v3956 = vunpack.c.l.b16 %v3758
        %v3957 = vunpack.c.l.b16 %v3759
        %v3958 = vunpack.c.l.b16 %v3760
        %v3959 = vunpack.c.l.b16 %v3761
        %v3960 = vunpack.c.l.b16 %v3762
        %v3961 = vunpack.c.l.b16 %v3763
        %v3962 = vunpack.c.l.b16 %v3764
        %v3963 = vpack.c.b16 %v3948, %v3947
        %v3964 = vpack.c.b16 %v3950, %v3949
        %v3965 = vpack.c.b16 %v3952, %v3951
        %v3966 = vpack.c.b16 %v3954, %v3953
        %v3967 = vpack.c.b16 %v3956, %v3955
        %v3968 = vpack.c.b16 %v3958, %v3957
        %v3969 = vpack.c.b16 %v3960, %v3959
        %v3970 = vpack.c.b16 %v3962, %v3961
        %3979 = vmatprep.subr.bf16.mxu0 0
        %3980 = vmatpush1.bf16.msra.mxu0 %v3963
        %3981 = vmatprep.subr.bf16.mxu0 0
        %3982 = vmatpush1.bf16.msra.mxu0 %v3964
        %3983 = vmatprep.subr.bf16.mxu0 0
        %3984 = vmatpush1.bf16.msra.mxu0 %v3965
        %3985 = vmatprep.subr.bf16.mxu0 0
        %3986 = vmatpush1.bf16.msra.mxu0 %v3966
        %3987 = vmatprep.subr.bf16.mxu0 0
        %3988 = vmatpush1.bf16.msra.mxu0 %v3967
        %3989 = vmatprep.subr.bf16.mxu0 0
        %3990 = vmatpush1.bf16.msra.mxu0 %v3968
        %3991 = vmatprep.subr.bf16.mxu0 0
        %3992 = vmatpush1.bf16.msra.mxu0 %v3969
        %3993 = vmatprep.subr.bf16.mxu0 0
        %3994 = vmatpush1.bf16.msra.mxu0 %v3970
        %3995 = vmatprep.subr.bf16.mxu0 0
        %3996 = vmatpush1.bf16.msra.mxu0 0
        %3997 = vmatprep.subr.bf16.mxu0 0
        %3998 = vmatpush1.bf16.msra.mxu0 0
        %3999 = vmatprep.subr.bf16.mxu0 0
        %4000 = vmatpush1.bf16.msra.mxu0 0
        %4001 = vmatprep.subr.bf16.mxu0 0
        %4002 = vmatpush1.bf16.msra.mxu0 0
        %4003 = vmatprep.subr.bf16.mxu0 0
        %4004 = vmatpush1.bf16.msra.mxu0 0
        %4005 = vmatprep.subr.bf16.mxu0 0
        %4006 = vmatpush1.bf16.msra.mxu0 0
        %4007 = vmatprep.subr.bf16.mxu0 0
        %4008 = vmatpush1.bf16.msra.mxu0 0
        %4009 = vmatprep.subr.bf16.mxu0 0
        %4010 = vmatpush1.bf16.msra.mxu0 0
        %4011 = vmatprep.mubr.bf16.mxu0 0
        %4012 = vmatmul.mubr.bf16.gmra.mrb[0].mxu0 %v3776
        %v4013 = vpop.f32.mrb[0].mxu0
        %v4014 = vadd.f32 0.0, %v4013
        %v4015 = vpop.f32.mrb[0].mxu0
        %v4016 = vpop.f32.mrb[0].mxu0
        %v4017 = vadd.f32 0.0, %v4016
        %v4018 = vpop.f32.mrb[0].mxu0
        %4019 = vmatprep.mubr.bf16.mxu0 0
        %4020 = vmatmul.mubr.bf16.gmra.mrb[0].mxu0 %v3784
        %v4021 = vpop.f32.mrb[0].mxu0
        %v4022 = vadd.f32 0.0, %v4021
        %v4023 = vpop.f32.mrb[0].mxu0
        %v4024 = vpop.f32.mrb[0].mxu0
        %v4025 = vadd.f32 0.0, %v4024
        %v4026 = vpop.f32.mrb[0].mxu0
        %4027 = vmatprep.mubr.bf16.mxu0 0
        %4028 = vmatmul.mubr.bf16.gmra.mrb[0].mxu0 %v3792
        %v4029 = vpop.f32.mrb[0].mxu0
        %v4030 = vadd.f32 0.0, %v4029
        %v4031 = vpop.f32.mrb[0].mxu0
        %v4032 = vpop.f32.mrb[0].mxu0
        %v4033 = vadd.f32 0.0, %v4032
        %v4034 = vpop.f32.mrb[0].mxu0
        %4035 = vmatprep.mubr.bf16.mxu0 0
        %4036 = vmatmul.mubr.bf16.gmra.mrb[0].mxu0 %v3800
        %v4037 = vpop.f32.mrb[0].mxu0
        %v4038 = vadd.f32 0.0, %v4037
        %v4039 = vpop.f32.mrb[0].mxu0
        %v4040 = vpop.f32.mrb[0].mxu0
        %v4041 = vadd.f32 0.0, %v4040
        %v4042 = vpop.f32.mrb[0].mxu0
        %4043 = vmatprep.mubr.bf16.mxu0 0
        %4044 = vmatmul.mubr.bf16.gmra.mrb[0].mxu0 %v3808
        %v4045 = vpop.f32.mrb[0].mxu0
        %v4046 = vadd.f32 0.0, %v4045
        %v4047 = vpop.f32.mrb[0].mxu0
        %v4048 = vpop.f32.mrb[0].mxu0
        %v4049 = vadd.f32 0.0, %v4048
        %v4050 = vpop.f32.mrb[0].mxu0
        %4051 = vmatprep.mubr.bf16.mxu0 0
        %4052 = vmatmul.mubr.bf16.gmra.mrb[0].mxu0 %v3816
        %v4053 = vpop.f32.mrb[0].mxu0
        %v4054 = vadd.f32 0.0, %v4053
        %v4055 = vpop.f32.mrb[0].mxu0
        %v4056 = vpop.f32.mrb[0].mxu0
        %v4057 = vadd.f32 0.0, %v4056
        %v4058 = vpop.f32.mrb[0].mxu0
        %4059 = vmatprep.mubr.bf16.mxu0 0
        %4060 = vmatmul.mubr.bf16.gmra.mrb[0].mxu0 %v3824
        %v4061 = vpop.f32.mrb[0].mxu0
        %v4062 = vadd.f32 0.0, %v4061
        %v4063 = vpop.f32.mrb[0].mxu0
        %v4064 = vpop.f32.mrb[0].mxu0
        %v4065 = vadd.f32 0.0, %v4064
        %v4066 = vpop.f32.mrb[0].mxu0
        %4067 = vmatprep.mubr.bf16.mxu0 0
        %4068 = vmatmul.mubr.bf16.gmra.mrb[0].mxu0 %v3832
        %v4069 = vpop.f32.mrb[0].mxu0
        %v4070 = vadd.f32 0.0, %v4069
        %v4071 = vpop.f32.mrb[0].mxu0
        %v4072 = vpop.f32.mrb[0].mxu0
        %v4073 = vadd.f32 0.0, %v4072
        %v4074 = vpop.f32.mrb[0].mxu0
        %4075 = vmatprep.mubr.bf16.mxu0 0
        %4076 = vmatmul.mubr.bf16.gmra.mrb[0].mxu0 %v3840
        %v4077 = vpop.f32.mrb[0].mxu0
        %v4078 = vadd.f32 0.0, %v4077
        %v4079 = vpop.f32.mrb[0].mxu0
        %v4080 = vpop.f32.mrb[0].mxu0
        %v4081 = vadd.f32 0.0, %v4080
        %v4082 = vpop.f32.mrb[0].mxu0
        %4083 = vmatprep.mubr.bf16.mxu0 0
        %4084 = vmatmul.mubr.bf16.gmra.mrb[0].mxu0 %v3848
        %v4085 = vpop.f32.mrb[0].mxu0
        %v4086 = vadd.f32 0.0, %v4085
        %v4087 = vpop.f32.mrb[0].mxu0
        %v4088 = vpop.f32.mrb[0].mxu0
        %v4089 = vadd.f32 0.0, %v4088
        %v4090 = vpop.f32.mrb[0].mxu0
        %4091 = vmatprep.mubr.bf16.mxu0 0
        %4092 = vmatmul.mubr.bf16.gmra.mrb[0].mxu0 %v3856
        %v4093 = vpop.f32.mrb[0].mxu0
        %v4094 = vadd.f32 0.0, %v4093
        %v4095 = vpop.f32.mrb[0].mxu0
        %v4096 = vpop.f32.mrb[0].mxu0
        %v4097 = vadd.f32 0.0, %v4096
        %v4098 = vpop.f32.mrb[0].mxu0
        %4099 = vmatprep.mubr.bf16.mxu0 0
        %4100 = vmatmul.mubr.bf16.gmra.mrb[0].mxu0 %v3864
        %v4101 = vpop.f32.mrb[0].mxu0
        %v4102 = vadd.f32 0.0, %v4101
        %v4103 = vpop.f32.mrb[0].mxu0
        %v4104 = vpop.f32.mrb[0].mxu0
        %v4105 = vadd.f32 0.0, %v4104
        %v4106 = vpop.f32.mrb[0].mxu0
        %4107 = vmatprep.mubr.bf16.mxu0 0
        %4108 = vmatmul.mubr.bf16.gmra.mrb[0].mxu0 %v3872
        %v4109 = vpop.f32.mrb[0].mxu0
        %v4110 = vadd.f32 0.0, %v4109
        %v4111 = vpop.f32.mrb[0].mxu0
        %v4112 = vpop.f32.mrb[0].mxu0
        %v4113 = vadd.f32 0.0, %v4112
        %v4114 = vpop.f32.mrb[0].mxu0
        %4115 = vmatprep.mubr.bf16.mxu0 0
        %4116 = vmatmul.mubr.bf16.gmra.mrb[0].mxu0 %v3880
        %v4117 = vpop.f32.mrb[0].mxu0
        %v4118 = vadd.f32 0.0, %v4117
        %v4119 = vpop.f32.mrb[0].mxu0
        %v4120 = vpop.f32.mrb[0].mxu0
        %v4121 = vadd.f32 0.0, %v4120
        %v4122 = vpop.f32.mrb[0].mxu0
        %4123 = vmatprep.mubr.bf16.mxu0 0
        %4124 = vmatmul.mubr.bf16.gmra.mrb[0].mxu0 %v3888
        %v4125 = vpop.f32.mrb[0].mxu0
        %v4126 = vadd.f32 0.0, %v4125
        %v4127 = vpop.f32.mrb[0].mxu0
        %v4128 = vpop.f32.mrb[0].mxu0
        %v4129 = vadd.f32 0.0, %v4128
        %v4130 = vpop.f32.mrb[0].mxu0
        %4131 = vmatprep.mubr.bf16.mxu0 0
        %4132 = vmatmul.mubr.bf16.gmra.mrb[0].mxu0 %v3896
        %v4133 = vpop.f32.mrb[0].mxu0
        %v4134 = vadd.f32 0.0, %v4133
        %v4135 = vpop.f32.mrb[0].mxu0
        %v4136 = vpop.f32.mrb[0].mxu0
        %v4137 = vadd.f32 0.0, %v4136
        %v4138 = vpop.f32.mrb[0].mxu0
        %4139 = vmatprep.mubr.bf16.mxu0 0
        %4140 = vmatmul.mubr.bf16.gmra.mrb[0].mxu0 %v3904
        %v4141 = vpop.f32.mrb[0].mxu0
        %v4142 = vadd.f32 0.0, %v4141
        %v4143 = vpop.f32.mrb[0].mxu0
        %v4144 = vpop.f32.mrb[0].mxu0
        %v4145 = vadd.f32 0.0, %v4144
        %v4146 = vpop.f32.mrb[0].mxu0
        %4147 = vmatprep.mubr.bf16.mxu0 0
        %4148 = vmatmul.mubr.bf16.gmra.mrb[0].mxu0 %v3912
        %v4149 = vpop.f32.mrb[0].mxu0
        %v4150 = vadd.f32 0.0, %v4149
        %v4151 = vpop.f32.mrb[0].mxu0
        %v4152 = vpop.f32.mrb[0].mxu0
        %v4153 = vadd.f32 0.0, %v4152
        %v4154 = vpop.f32.mrb[0].mxu0
        %4155 = vdwg.mxu0
        %v4156 = vadd.f32 %v3693, %v4014
        %v4157 = vadd.f32 %v3694, %v4017
        %v4158 = vadd.f32 %v3695, %v4022
        %v4159 = vadd.f32 %v3696, %v4025
        %v4160 = vadd.f32 %v3697, %v4030
        %v4161 = vadd.f32 %v3698, %v4033
        %v4162 = vadd.f32 %v3699, %v4038
        %v4163 = vadd.f32 %v3700, %v4041
        %v4164 = vadd.f32 %v3701, %v4046
        %v4165 = vadd.f32 %v3702, %v4049
        %v4166 = vadd.f32 %v3703, %v4054
        %v4167 = vadd.f32 %v3704, %v4057
        %v4168 = vadd.f32 %v3705, %v4062
        %v4169 = vadd.f32 %v3706, %v4065
        %v4170 = vadd.f32 %v3707, %v4070
        %v4171 = vadd.f32 %v3708, %v4073
        %v4172 = vadd.f32 %v3709, %v4078
        %v4173 = vadd.f32 %v3710, %v4081
        %v4174 = vadd.f32 %v3711, %v4086
        %v4175 = vadd.f32 %v3712, %v4089
        %v4176 = vadd.f32 %v3713, %v4094
        %v4177 = vadd.f32 %v3714, %v4097
        %v4178 = vadd.f32 %v3715, %v4102
        %v4179 = vadd.f32 %v3716, %v4105
        %v4180 = vadd.f32 %v3717, %v4110
        %v4181 = vadd.f32 %v3718, %v4113
        %v4182 = vadd.f32 %v3719, %v4118
        %v4183 = vadd.f32 %v3720, %v4121
        %v4184 = vadd.f32 %v3721, %v4126
        %v4185 = vadd.f32 %v3722, %v4129
        %v4186 = vadd.f32 %v3723, %v4134
        %v4187 = vadd.f32 %v3724, %v4137
        %v4188 = vadd.f32 %v3725, %v4142
        %v4189 = vadd.f32 %v3726, %v4145
        %v4190 = vadd.f32 %v3727, %v4150
        %v4191 = vadd.f32 %v3728, %v4153
        %v4192 = vld [vmem:[#allocation2 + $0x18] sm:$0xfe]
        %s4193 = scalar_lea.vmem [#allocation11], 448
        %v4194 = vld [vmem:[%s4193] sm:$0xf]
        %v4195 = vld [vmem:[%s4193 + $0x4] sm:$0xf]
        %v4196 = vld [vmem:[%s4193 + $0x8] sm:$0xf]
        %v4197 = vld [vmem:[%s4193 + $0xc] sm:$0xf]
        %v4198 = vld [vmem:[%s4193 + $0x10] sm:$0xf]
        %v4199 = vld [vmem:[%s4193 + $0x14] sm:$0xf]
        %v4200 = vld [vmem:[%s4193 + $0x18] sm:$0xf]
        %v4201 = vld [vmem:[%s4193 + $0x1c] sm:$0xf]
        %v4202 = vld [vmem:[%s4193 + $0x20] sm:$0xf]
        %v4203 = vld [vmem:[%s4193 + $0x24] sm:$0xf]
        %v4204 = vld [vmem:[%s4193 + $0x28] sm:$0xf]
        %v4205 = vld [vmem:[%s4193 + $0x2c] sm:$0xf]
        %v4206 = vld [vmem:[%s4193 + $0x30] sm:$0xf]
        %v4207 = vld [vmem:[%s4193 + $0x34] sm:$0xf]
        %v4208 = vld [vmem:[%s4193 + $0x38] sm:$0xf]
        %v4209 = vld [vmem:[%s4193 + $0x3c] sm:$0xf]
        %vm4229 = vcmask 1046528
        %v4230 = vrot.slane %v4192, 1
        %v4231 = vrot.slane %v3730, 1
        %v4232 = vsel %vm4229, %v4230, %v4231
        %v4233 = vrot.slane %v3731, 1
        %v4234 = vsel %vm4229, %v4231, %v4233
        %v4235 = vrot.slane %v3732, 1
        %v4236 = vsel %vm4229, %v4233, %v4235
        %v4237 = vrot.slane %v3733, 1
        %v4238 = vsel %vm4229, %v4235, %v4237
        %v4239 = vrot.slane %v3734, 1
        %v4240 = vsel %vm4229, %v4237, %v4239
        %v4241 = vrot.slane %v3735, 1
        %v4242 = vsel %vm4229, %v4239, %v4241
        %v4243 = vrot.slane %v3736, 1
        %v4244 = vsel %vm4229, %v4241, %v4243
        %v4245 = vrot.slane %v3737, 1
        %v4246 = vsel %vm4229, %v4243, %v4245
        %v4247 = vrot.slane %v3738, 1
        %v4248 = vsel %vm4229, %v4245, %v4247
        %v4249 = vrot.slane %v3739, 1
        %v4250 = vsel %vm4229, %v4247, %v4249
        %v4251 = vrot.slane %v3740, 1
        %v4252 = vsel %vm4229, %v4249, %v4251
        %v4253 = vrot.slane %v3741, 1
        %v4254 = vsel %vm4229, %v4251, %v4253
        %v4255 = vrot.slane %v3742, 1
        %v4256 = vsel %vm4229, %v4253, %v4255
        %v4257 = vrot.slane %v3743, 1
        %v4258 = vsel %vm4229, %v4255, %v4257
        %v4259 = vrot.slane %v3744, 1
        %v4260 = vsel %vm4229, %v4257, %v4259
        %v4261 = vrot.slane %v3745, 1
        %v4262 = vsel %vm4229, %v4259, %v4261
        %v4263 = vrot.slane %v3746, 1
        %v4264 = vsel %vm4229, %v4261, %v4263
        %v4265 = vrot.slane %v3747, 1
        %v4266 = vsel %vm4229, %v4263, %v4265
        %v4301 = vunpack.c.l.b16 %v4194
        %v4302 = vunpack.c.l.b16 %v4195
        %v4303 = vunpack.c.l.b16 %v4196
        %v4304 = vunpack.c.l.b16 %v4197
        %v4305 = vunpack.c.l.b16 %v4198
        %v4306 = vunpack.c.l.b16 %v4199
        %v4307 = vunpack.c.l.b16 %v4200
        %v4308 = vunpack.c.l.b16 %v4201
        %v4309 = vunpack.c.l.b16 %v4202
        %v4310 = vunpack.c.l.b16 %v4203
        %v4311 = vunpack.c.l.b16 %v4204
        %v4312 = vunpack.c.l.b16 %v4205
        %v4313 = vunpack.c.l.b16 %v4206
        %v4314 = vunpack.c.l.b16 %v4207
        %v4315 = vunpack.c.l.b16 %v4208
        %v4316 = vunpack.c.l.b16 %v4209
        %v4317 = vpack.c.b16 %v4302, %v4301
        %v4318 = vpack.c.b16 %v4304, %v4303
        %v4319 = vpack.c.b16 %v4306, %v4305
        %v4320 = vpack.c.b16 %v4308, %v4307
        %v4321 = vpack.c.b16 %v4310, %v4309
        %v4322 = vpack.c.b16 %v4312, %v4311
        %v4323 = vpack.c.b16 %v4314, %v4313
        %v4324 = vpack.c.b16 %v4316, %v4315
        %4333 = vmatprep.subr.bf16.mxu0 0
        %4334 = vmatpush1.bf16.msra.mxu0 %v4317
        %4335 = vmatprep.subr.bf16.mxu0 0
        %4336 = vmatpush1.bf16.msra.mxu0 %v4318
        %4337 = vmatprep.subr.bf16.mxu0 0
        %4338 = vmatpush1.bf16.msra.mxu0 %v4319
        %4339 = vmatprep.subr.bf16.mxu0 0
        %4340 = vmatpush1.bf16.msra.mxu0 %v4320
        %4341 = vmatprep.subr.bf16.mxu0 0
        %4342 = vmatpush1.bf16.msra.mxu0 %v4321
        %4343 = vmatprep.subr.bf16.mxu0 0
        %4344 = vmatpush1.bf16.msra.mxu0 %v4322
        %4345 = vmatprep.subr.bf16.mxu0 0
        %4346 = vmatpush1.bf16.msra.mxu0 %v4323
        %4347 = vmatprep.subr.bf16.mxu0 0
        %4348 = vmatpush1.bf16.msra.mxu0 %v4324
        %4349 = vmatprep.subr.bf16.mxu0 0
        %4350 = vmatpush1.bf16.msra.mxu0 0
        %4351 = vmatprep.subr.bf16.mxu0 0
        %4352 = vmatpush1.bf16.msra.mxu0 0
        %4353 = vmatprep.subr.bf16.mxu0 0
        %4354 = vmatpush1.bf16.msra.mxu0 0
        %4355 = vmatprep.subr.bf16.mxu0 0
        %4356 = vmatpush1.bf16.msra.mxu0 0
        %4357 = vmatprep.subr.bf16.mxu0 0
        %4358 = vmatpush1.bf16.msra.mxu0 0
        %4359 = vmatprep.subr.bf16.mxu0 0
        %4360 = vmatpush1.bf16.msra.mxu0 0
        %4361 = vmatprep.subr.bf16.mxu0 0
        %4362 = vmatpush1.bf16.msra.mxu0 0
        %4363 = vmatprep.subr.bf16.mxu0 0
        %4364 = vmatpush1.bf16.msra.mxu0 0
        %4365 = vmatprep.mubr.bf16.mxu0 0
        %4366 = vmatmul.mubr.bf16.gmra.mrb[0].mxu0 %v4232
        %v4367 = vpop.f32.mrb[0].mxu0
        %v4368 = vadd.f32 0.0, %v4367
        %v4369 = vpop.f32.mrb[0].mxu0
        %v4370 = vpop.f32.mrb[0].mxu0
        %v4371 = vadd.f32 0.0, %v4370
        %v4372 = vpop.f32.mrb[0].mxu0
        %4373 = vmatprep.mubr.bf16.mxu0 0
        %4374 = vmatmul.mubr.bf16.gmra.mrb[0].mxu0 %v4234
        %v4375 = vpop.f32.mrb[0].mxu0
        %v4376 = vadd.f32 0.0, %v4375
        %v4377 = vpop.f32.mrb[0].mxu0
        %v4378 = vpop.f32.mrb[0].mxu0
        %v4379 = vadd.f32 0.0, %v4378
        %v4380 = vpop.f32.mrb[0].mxu0
        %4381 = vmatprep.mubr.bf16.mxu0 0
        %4382 = vmatmul.mubr.bf16.gmra.mrb[0].mxu0 %v4236
        %v4383 = vpop.f32.mrb[0].mxu0
        %v4384 = vadd.f32 0.0, %v4383
        %v4385 = vpop.f32.mrb[0].mxu0
        %v4386 = vpop.f32.mrb[0].mxu0
        %v4387 = vadd.f32 0.0, %v4386
        %v4388 = vpop.f32.mrb[0].mxu0
        %4389 = vmatprep.mubr.bf16.mxu0 0
        %4390 = vmatmul.mubr.bf16.gmra.mrb[0].mxu0 %v4238
        %v4391 = vpop.f32.mrb[0].mxu0
        %v4392 = vadd.f32 0.0, %v4391
        %v4393 = vpop.f32.mrb[0].mxu0
        %v4394 = vpop.f32.mrb[0].mxu0
        %v4395 = vadd.f32 0.0, %v4394
        %v4396 = vpop.f32.mrb[0].mxu0
        %4397 = vmatprep.mubr.bf16.mxu0 0
        %4398 = vmatmul.mubr.bf16.gmra.mrb[0].mxu0 %v4240
        %v4399 = vpop.f32.mrb[0].mxu0
        %v4400 = vadd.f32 0.0, %v4399
        %v4401 = vpop.f32.mrb[0].mxu0
        %v4402 = vpop.f32.mrb[0].mxu0
        %v4403 = vadd.f32 0.0, %v4402
        %v4404 = vpop.f32.mrb[0].mxu0
        %4405 = vmatprep.mubr.bf16.mxu0 0
        %4406 = vmatmul.mubr.bf16.gmra.mrb[0].mxu0 %v4242
        %v4407 = vpop.f32.mrb[0].mxu0
        %v4408 = vadd.f32 0.0, %v4407
        %v4409 = vpop.f32.mrb[0].mxu0
        %v4410 = vpop.f32.mrb[0].mxu0
        %v4411 = vadd.f32 0.0, %v4410
        %v4412 = vpop.f32.mrb[0].mxu0
        %4413 = vmatprep.mubr.bf16.mxu0 0
        %4414 = vmatmul.mubr.bf16.gmra.mrb[0].mxu0 %v4244
        %v4415 = vpop.f32.mrb[0].mxu0
        %v4416 = vadd.f32 0.0, %v4415
        %v4417 = vpop.f32.mrb[0].mxu0
        %v4418 = vpop.f32.mrb[0].mxu0
        %v4419 = vadd.f32 0.0, %v4418
        %v4420 = vpop.f32.mrb[0].mxu0
        %4421 = vmatprep.mubr.bf16.mxu0 0
        %4422 = vmatmul.mubr.bf16.gmra.mrb[0].mxu0 %v4246
        %v4423 = vpop.f32.mrb[0].mxu0
        %v4424 = vadd.f32 0.0, %v4423
        %v4425 = vpop.f32.mrb[0].mxu0
        %v4426 = vpop.f32.mrb[0].mxu0
        %v4427 = vadd.f32 0.0, %v4426
        %v4428 = vpop.f32.mrb[0].mxu0
        %4429 = vmatprep.mubr.bf16.mxu0 0
        %4430 = vmatmul.mubr.bf16.gmra.mrb[0].mxu0 %v4248
        %v4431 = vpop.f32.mrb[0].mxu0
        %v4432 = vadd.f32 0.0, %v4431
        %v4433 = vpop.f32.mrb[0].mxu0
        %v4434 = vpop.f32.mrb[0].mxu0
        %v4435 = vadd.f32 0.0, %v4434
        %v4436 = vpop.f32.mrb[0].mxu0
        %4437 = vmatprep.mubr.bf16.mxu0 0
        %4438 = vmatmul.mubr.bf16.gmra.mrb[0].mxu0 %v4250
        %v4439 = vpop.f32.mrb[0].mxu0
        %v4440 = vadd.f32 0.0, %v4439
        %v4441 = vpop.f32.mrb[0].mxu0
        %v4442 = vpop.f32.mrb[0].mxu0
        %v4443 = vadd.f32 0.0, %v4442
        %v4444 = vpop.f32.mrb[0].mxu0
        %4445 = vmatprep.mubr.bf16.mxu0 0
        %4446 = vmatmul.mubr.bf16.gmra.mrb[0].mxu0 %v4252
        %v4447 = vpop.f32.mrb[0].mxu0
        %v4448 = vadd.f32 0.0, %v4447
        %v4449 = vpop.f32.mrb[0].mxu0
        %v4450 = vpop.f32.mrb[0].mxu0
        %v4451 = vadd.f32 0.0, %v4450
        %v4452 = vpop.f32.mrb[0].mxu0
        %4453 = vmatprep.mubr.bf16.mxu0 0
        %4454 = vmatmul.mubr.bf16.gmra.mrb[0].mxu0 %v4254
        %v4455 = vpop.f32.mrb[0].mxu0
        %v4456 = vadd.f32 0.0, %v4455
        %v4457 = vpop.f32.mrb[0].mxu0
        %v4458 = vpop.f32.mrb[0].mxu0
        %v4459 = vadd.f32 0.0, %v4458
        %v4460 = vpop.f32.mrb[0].mxu0
        %4461 = vmatprep.mubr.bf16.mxu0 0
        %4462 = vmatmul.mubr.bf16.gmra.mrb[0].mxu0 %v4256
        %v4463 = vpop.f32.mrb[0].mxu0
        %v4464 = vadd.f32 0.0, %v4463
        %v4465 = vpop.f32.mrb[0].mxu0
        %v4466 = vpop.f32.mrb[0].mxu0
        %v4467 = vadd.f32 0.0, %v4466
        %v4468 = vpop.f32.mrb[0].mxu0
        %4469 = vmatprep.mubr.bf16.mxu0 0
        %4470 = vmatmul.mubr.bf16.gmra.mrb[0].mxu0 %v4258
        %v4471 = vpop.f32.mrb[0].mxu0
        %v4472 = vadd.f32 0.0, %v4471
        %v4473 = vpop.f32.mrb[0].mxu0
        %v4474 = vpop.f32.mrb[0].mxu0
        %v4475 = vadd.f32 0.0, %v4474
        %v4476 = vpop.f32.mrb[0].mxu0
        %4477 = vmatprep.mubr.bf16.mxu0 0
        %4478 = vmatmul.mubr.bf16.gmra.mrb[0].mxu0 %v4260
        %v4479 = vpop.f32.mrb[0].mxu0
        %v4480 = vadd.f32 0.0, %v4479
        %v4481 = vpop.f32.mrb[0].mxu0
        %v4482 = vpop.f32.mrb[0].mxu0
        %v4483 = vadd.f32 0.0, %v4482
        %v4484 = vpop.f32.mrb[0].mxu0
        %4485 = vmatprep.mubr.bf16.mxu0 0
        %4486 = vmatmul.mubr.bf16.gmra.mrb[0].mxu0 %v4262
        %v4487 = vpop.f32.mrb[0].mxu0
        %v4488 = vadd.f32 0.0, %v4487
        %v4489 = vpop.f32.mrb[0].mxu0
        %v4490 = vpop.f32.mrb[0].mxu0
        %v4491 = vadd.f32 0.0, %v4490
        %v4492 = vpop.f32.mrb[0].mxu0
        %4493 = vmatprep.mubr.bf16.mxu0 0
        %4494 = vmatmul.mubr.bf16.gmra.mrb[0].mxu0 %v4264
        %v4495 = vpop.f32.mrb[0].mxu0
        %v4496 = vadd.f32 0.0, %v4495
        %v4497 = vpop.f32.mrb[0].mxu0
        %v4498 = vpop.f32.mrb[0].mxu0
        %v4499 = vadd.f32 0.0, %v4498
        %v4500 = vpop.f32.mrb[0].mxu0
        %4501 = vmatprep.mubr.bf16.mxu0 0
        %4502 = vmatmul.mubr.bf16.gmra.mrb[0].mxu0 %v4266
        %v4503 = vpop.f32.mrb[0].mxu0
        %v4504 = vadd.f32 0.0, %v4503
        %v4505 = vpop.f32.mrb[0].mxu0
        %v4506 = vpop.f32.mrb[0].mxu0
        %v4507 = vadd.f32 0.0, %v4506
        %v4508 = vpop.f32.mrb[0].mxu0
        %4509 = vdwg.mxu0
        %v4510 = vadd.f32 %v4156, %v4368
        %v4511 = vadd.f32 %v4157, %v4371
        %v4512 = vadd.f32 %v4158, %v4376
        %v4513 = vadd.f32 %v4159, %v4379
        %v4514 = vadd.f32 %v4160, %v4384
        %v4515 = vadd.f32 %v4161, %v4387
        %v4516 = vadd.f32 %v4162, %v4392
        %v4517 = vadd.f32 %v4163, %v4395
        %v4518 = vadd.f32 %v4164, %v4400
        %v4519 = vadd.f32 %v4165, %v4403
        %v4520 = vadd.f32 %v4166, %v4408
        %v4521 = vadd.f32 %v4167, %v4411
        %v4522 = vadd.f32 %v4168, %v4416
        %v4523 = vadd.f32 %v4169, %v4419
        %v4524 = vadd.f32 %v4170, %v4424
        %v4525 = vadd.f32 %v4171, %v4427
        %v4526 = vadd.f32 %v4172, %v4432
        %v4527 = vadd.f32 %v4173, %v4435
        %v4528 = vadd.f32 %v4174, %v4440
        %v4529 = vadd.f32 %v4175, %v4443
        %v4530 = vadd.f32 %v4176, %v4448
        %v4531 = vadd.f32 %v4177, %v4451
        %v4532 = vadd.f32 %v4178, %v4456
        %v4533 = vadd.f32 %v4179, %v4459
        %v4534 = vadd.f32 %v4180, %v4464
        %v4535 = vadd.f32 %v4181, %v4467
        %v4536 = vadd.f32 %v4182, %v4472
        %v4537 = vadd.f32 %v4183, %v4475
        %v4538 = vadd.f32 %v4184, %v4480
        %v4539 = vadd.f32 %v4185, %v4483
        %v4540 = vadd.f32 %v4186, %v4488
        %v4541 = vadd.f32 %v4187, %v4491
        %v4542 = vadd.f32 %v4188, %v4496
        %v4543 = vadd.f32 %v4189, %v4499
        %v4544 = vadd.f32 %v4190, %v4504
        %v4545 = vadd.f32 %v4191, %v4507
        %v4546 = vld [vmem:[#allocation2 + $0xa8] sm:$0x3]
        %s4547 = scalar_lea.vmem [#allocation11], 512
        %v4548 = vld [vmem:[%s4547] sm:$0xf]
        %v4549 = vld [vmem:[%s4547 + $0x4] sm:$0xf]
        %v4550 = vld [vmem:[%s4547 + $0x8] sm:$0xf]
        %v4551 = vld [vmem:[%s4547 + $0xc] sm:$0xf]
        %v4552 = vld [vmem:[%s4547 + $0x10] sm:$0xf]
        %v4553 = vld [vmem:[%s4547 + $0x14] sm:$0xf]
        %v4554 = vld [vmem:[%s4547 + $0x18] sm:$0xf]
        %v4555 = vld [vmem:[%s4547 + $0x1c] sm:$0xf]
        %v4556 = vld [vmem:[%s4547 + $0x20] sm:$0xf]
        %v4557 = vld [vmem:[%s4547 + $0x24] sm:$0xf]
        %v4558 = vld [vmem:[%s4547 + $0x28] sm:$0xf]
        %v4559 = vld [vmem:[%s4547 + $0x2c] sm:$0xf]
        %v4560 = vld [vmem:[%s4547 + $0x30] sm:$0xf]
        %v4561 = vld [vmem:[%s4547 + $0x34] sm:$0xf]
        %v4562 = vld [vmem:[%s4547 + $0x38] sm:$0xf]
        %v4563 = vld [vmem:[%s4547 + $0x3c] sm:$0xf]
        %vm4564 = vsmask.f32 6400
        %v4566 = vshrl.u32 %v4192, 16
        %v4568 = vrot.slane %v4566, 1
        %v4569 = vshll.u32 %v4192, 16
        %v4571 = vrot.slane %v4569, 2
        %v4572 = vor.u32 %v4568, %v4571
        %v4573 = vrot.slane %v3777, 1
        %v4574 = vrot.slane %v3773, 2
        %v4575 = vor.u32 %v4573, %v4574
        %v4576 = vsel %vm4564, %v4572, %v4575
        %v4577 = vrot.slane %v3785, 1
        %v4578 = vrot.slane %v3781, 2
        %v4579 = vor.u32 %v4577, %v4578
        %v4580 = vsel %vm4564, %v4575, %v4579
        %v4581 = vrot.slane %v3793, 1
        %v4582 = vrot.slane %v3789, 2
        %v4583 = vor.u32 %v4581, %v4582
        %v4584 = vsel %vm4564, %v4579, %v4583
        %v4585 = vrot.slane %v3801, 1
        %v4586 = vrot.slane %v3797, 2
        %v4587 = vor.u32 %v4585, %v4586
        %v4588 = vsel %vm4564, %v4583, %v4587
        %v4589 = vrot.slane %v3809, 1
        %v4590 = vrot.slane %v3805, 2
        %v4591 = vor.u32 %v4589, %v4590
        %v4592 = vsel %vm4564, %v4587, %v4591
        %v4593 = vrot.slane %v3817, 1
        %v4594 = vrot.slane %v3813, 2
        %v4595 = vor.u32 %v4593, %v4594
        %v4596 = vsel %vm4564, %v4591, %v4595
        %v4597 = vrot.slane %v3825, 1
        %v4598 = vrot.slane %v3821, 2
        %v4599 = vor.u32 %v4597, %v4598
        %v4600 = vsel %vm4564, %v4595, %v4599
        %v4601 = vrot.slane %v3833, 1
        %v4602 = vrot.slane %v3829, 2
        %v4603 = vor.u32 %v4601, %v4602
        %v4604 = vsel %vm4564, %v4599, %v4603
        %v4605 = vrot.slane %v3841, 1
        %v4606 = vrot.slane %v3837, 2
        %v4607 = vor.u32 %v4605, %v4606
        %v4608 = vsel %vm4564, %v4603, %v4607
        %v4609 = vrot.slane %v3849, 1
        %v4610 = vrot.slane %v3845, 2
        %v4611 = vor.u32 %v4609, %v4610
        %v4612 = vsel %vm4564, %v4607, %v4611
        %v4613 = vrot.slane %v3857, 1
        %v4614 = vrot.slane %v3853, 2
        %v4615 = vor.u32 %v4613, %v4614
        %v4616 = vsel %vm4564, %v4611, %v4615
        %v4617 = vrot.slane %v3865, 1
        %v4618 = vrot.slane %v3861, 2
        %v4619 = vor.u32 %v4617, %v4618
        %v4620 = vsel %vm4564, %v4615, %v4619
        %v4621 = vrot.slane %v3873, 1
        %v4622 = vrot.slane %v3869, 2
        %v4623 = vor.u32 %v4621, %v4622
        %v4624 = vsel %vm4564, %v4619, %v4623
        %v4625 = vrot.slane %v3881, 1
        %v4626 = vrot.slane %v3877, 2
        %v4627 = vor.u32 %v4625, %v4626
        %v4628 = vsel %vm4564, %v4623, %v4627
        %v4629 = vrot.slane %v3889, 1
        %v4630 = vrot.slane %v3885, 2
        %v4631 = vor.u32 %v4629, %v4630
        %v4632 = vsel %vm4564, %v4627, %v4631
        %v4633 = vrot.slane %v3897, 1
        %v4634 = vrot.slane %v3893, 2
        %v4635 = vor.u32 %v4633, %v4634
        %v4636 = vsel %vm4564, %v4631, %v4635
        %v4637 = vrot.slane %v3905, 1
        %v4638 = vrot.slane %v3901, 2
        %v4639 = vor.u32 %v4637, %v4638
        %v4640 = vsel %vm4564, %v4635, %v4639
        %v4642 = vshrl.u32 %v4546, 16
        %v4644 = vrot.slane %v4642, 1
        %v4645 = vshll.u32 %v4546, 16
        %v4647 = vrot.slane %v4645, 2
        %v4648 = vor.u32 %v4644, %v4647
        %v4649 = vsel %vm4564, %v4639, %v4648
        %v4684 = vunpack.c.l.b16 %v4548
        %v4685 = vunpack.c.l.b16 %v4549
        %v4686 = vunpack.c.l.b16 %v4550
        %v4687 = vunpack.c.l.b16 %v4551
        %v4688 = vunpack.c.l.b16 %v4552
        %v4689 = vunpack.c.l.b16 %v4553
        %v4690 = vunpack.c.l.b16 %v4554
        %v4691 = vunpack.c.l.b16 %v4555
        %v4692 = vunpack.c.l.b16 %v4556
        %v4693 = vunpack.c.l.b16 %v4557
        %v4694 = vunpack.c.l.b16 %v4558
        %v4695 = vunpack.c.l.b16 %v4559
        %v4696 = vunpack.c.l.b16 %v4560
        %v4697 = vunpack.c.l.b16 %v4561
        %v4698 = vunpack.c.l.b16 %v4562
        %v4699 = vunpack.c.l.b16 %v4563
        %v4700 = vpack.c.b16 %v4685, %v4684
        %v4701 = vpack.c.b16 %v4687, %v4686
        %v4702 = vpack.c.b16 %v4689, %v4688
        %v4703 = vpack.c.b16 %v4691, %v4690
        %v4704 = vpack.c.b16 %v4693, %v4692
        %v4705 = vpack.c.b16 %v4695, %v4694
        %v4706 = vpack.c.b16 %v4697, %v4696
        %v4707 = vpack.c.b16 %v4699, %v4698
        %4716 = vmatprep.subr.bf16.mxu0 0
        %4717 = vmatpush1.bf16.msra.mxu0 %v4700
        %4718 = vmatprep.subr.bf16.mxu0 0
        %4719 = vmatpush1.bf16.msra.mxu0 %v4701
        %4720 = vmatprep.subr.bf16.mxu0 0
        %4721 = vmatpush1.bf16.msra.mxu0 %v4702
        %4722 = vmatprep.subr.bf16.mxu0 0
        %4723 = vmatpush1.bf16.msra.mxu0 %v4703
        %4724 = vmatprep.subr.bf16.mxu0 0
        %4725 = vmatpush1.bf16.msra.mxu0 %v4704
        %4726 = vmatprep.subr.bf16.mxu0 0
        %4727 = vmatpush1.bf16.msra.mxu0 %v4705
        %4728 = vmatprep.subr.bf16.mxu0 0
        %4729 = vmatpush1.bf16.msra.mxu0 %v4706
        %4730 = vmatprep.subr.bf16.mxu0 0
        %4731 = vmatpush1.bf16.msra.mxu0 %v4707
        %4732 = vmatprep.subr.bf16.mxu0 0
        %4733 = vmatpush1.bf16.msra.mxu0 0
        %4734 = vmatprep.subr.bf16.mxu0 0
        %4735 = vmatpush1.bf16.msra.mxu0 0
        %4736 = vmatprep.subr.bf16.mxu0 0
        %4737 = vmatpush1.bf16.msra.mxu0 0
        %4738 = vmatprep.subr.bf16.mxu0 0
        %4739 = vmatpush1.bf16.msra.mxu0 0
        %4740 = vmatprep.subr.bf16.mxu0 0
        %4741 = vmatpush1.bf16.msra.mxu0 0
        %4742 = vmatprep.subr.bf16.mxu0 0
        %4743 = vmatpush1.bf16.msra.mxu0 0
        %4744 = vmatprep.subr.bf16.mxu0 0
        %4745 = vmatpush1.bf16.msra.mxu0 0
        %4746 = vmatprep.subr.bf16.mxu0 0
        %4747 = vmatpush1.bf16.msra.mxu0 0
        %4748 = vmatprep.mubr.bf16.mxu0 0
        %4749 = vmatmul.mubr.bf16.gmra.mrb[0].mxu0 %v4576
        %v4750 = vpop.f32.mrb[0].mxu0
        %v4751 = vadd.f32 0.0, %v4750
        %v4752 = vpop.f32.mrb[0].mxu0
        %v4753 = vpop.f32.mrb[0].mxu0
        %v4754 = vadd.f32 0.0, %v4753
        %v4755 = vpop.f32.mrb[0].mxu0
        %4756 = vmatprep.mubr.bf16.mxu0 0
        %4757 = vmatmul.mubr.bf16.gmra.mrb[0].mxu0 %v4580
        %v4758 = vpop.f32.mrb[0].mxu0
        %v4759 = vadd.f32 0.0, %v4758
        %v4760 = vpop.f32.mrb[0].mxu0
        %v4761 = vpop.f32.mrb[0].mxu0
        %v4762 = vadd.f32 0.0, %v4761
        %v4763 = vpop.f32.mrb[0].mxu0
        %4764 = vmatprep.mubr.bf16.mxu0 0
        %4765 = vmatmul.mubr.bf16.gmra.mrb[0].mxu0 %v4584
        %v4766 = vpop.f32.mrb[0].mxu0
        %v4767 = vadd.f32 0.0, %v4766
        %v4768 = vpop.f32.mrb[0].mxu0
        %v4769 = vpop.f32.mrb[0].mxu0
        %v4770 = vadd.f32 0.0, %v4769
        %v4771 = vpop.f32.mrb[0].mxu0
        %4772 = vmatprep.mubr.bf16.mxu0 0
        %4773 = vmatmul.mubr.bf16.gmra.mrb[0].mxu0 %v4588
        %v4774 = vpop.f32.mrb[0].mxu0
        %v4775 = vadd.f32 0.0, %v4774
        %v4776 = vpop.f32.mrb[0].mxu0
        %v4777 = vpop.f32.mrb[0].mxu0
        %v4778 = vadd.f32 0.0, %v4777
        %v4779 = vpop.f32.mrb[0].mxu0
        %4780 = vmatprep.mubr.bf16.mxu0 0
        %4781 = vmatmul.mubr.bf16.gmra.mrb[0].mxu0 %v4592
        %v4782 = vpop.f32.mrb[0].mxu0
        %v4783 = vadd.f32 0.0, %v4782
        %v4784 = vpop.f32.mrb[0].mxu0
        %v4785 = vpop.f32.mrb[0].mxu0
        %v4786 = vadd.f32 0.0, %v4785
        %v4787 = vpop.f32.mrb[0].mxu0
        %4788 = vmatprep.mubr.bf16.mxu0 0
        %4789 = vmatmul.mubr.bf16.gmra.mrb[0].mxu0 %v4596
        %v4790 = vpop.f32.mrb[0].mxu0
        %v4791 = vadd.f32 0.0, %v4790
        %v4792 = vpop.f32.mrb[0].mxu0
        %v4793 = vpop.f32.mrb[0].mxu0
        %v4794 = vadd.f32 0.0, %v4793
        %v4795 = vpop.f32.mrb[0].mxu0
        %4796 = vmatprep.mubr.bf16.mxu0 0
        %4797 = vmatmul.mubr.bf16.gmra.mrb[0].mxu0 %v4600
        %v4798 = vpop.f32.mrb[0].mxu0
        %v4799 = vadd.f32 0.0, %v4798
        %v4800 = vpop.f32.mrb[0].mxu0
        %v4801 = vpop.f32.mrb[0].mxu0
        %v4802 = vadd.f32 0.0, %v4801
        %v4803 = vpop.f32.mrb[0].mxu0
        %4804 = vmatprep.mubr.bf16.mxu0 0
        %4805 = vmatmul.mubr.bf16.gmra.mrb[0].mxu0 %v4604
        %v4806 = vpop.f32.mrb[0].mxu0
        %v4807 = vadd.f32 0.0, %v4806
        %v4808 = vpop.f32.mrb[0].mxu0
        %v4809 = vpop.f32.mrb[0].mxu0
        %v4810 = vadd.f32 0.0, %v4809
        %v4811 = vpop.f32.mrb[0].mxu0
        %4812 = vmatprep.mubr.bf16.mxu0 0
        %4813 = vmatmul.mubr.bf16.gmra.mrb[0].mxu0 %v4608
        %v4814 = vpop.f32.mrb[0].mxu0
        %v4815 = vadd.f32 0.0, %v4814
        %v4816 = vpop.f32.mrb[0].mxu0
        %v4817 = vpop.f32.mrb[0].mxu0
        %v4818 = vadd.f32 0.0, %v4817
        %v4819 = vpop.f32.mrb[0].mxu0
        %4820 = vmatprep.mubr.bf16.mxu0 0
        %4821 = vmatmul.mubr.bf16.gmra.mrb[0].mxu0 %v4612
        %v4822 = vpop.f32.mrb[0].mxu0
        %v4823 = vadd.f32 0.0, %v4822
        %v4824 = vpop.f32.mrb[0].mxu0
        %v4825 = vpop.f32.mrb[0].mxu0
        %v4826 = vadd.f32 0.0, %v4825
        %v4827 = vpop.f32.mrb[0].mxu0
        %4828 = vmatprep.mubr.bf16.mxu0 0
        %4829 = vmatmul.mubr.bf16.gmra.mrb[0].mxu0 %v4616
        %v4830 = vpop.f32.mrb[0].mxu0
        %v4831 = vadd.f32 0.0, %v4830
        %v4832 = vpop.f32.mrb[0].mxu0
        %v4833 = vpop.f32.mrb[0].mxu0
        %v4834 = vadd.f32 0.0, %v4833
        %v4835 = vpop.f32.mrb[0].mxu0
        %4836 = vmatprep.mubr.bf16.mxu0 0
        %4837 = vmatmul.mubr.bf16.gmra.mrb[0].mxu0 %v4620
        %v4838 = vpop.f32.mrb[0].mxu0
        %v4839 = vadd.f32 0.0, %v4838
        %v4840 = vpop.f32.mrb[0].mxu0
        %v4841 = vpop.f32.mrb[0].mxu0
        %v4842 = vadd.f32 0.0, %v4841
        %v4843 = vpop.f32.mrb[0].mxu0
        %4844 = vmatprep.mubr.bf16.mxu0 0
        %4845 = vmatmul.mubr.bf16.gmra.mrb[0].mxu0 %v4624
        %v4846 = vpop.f32.mrb[0].mxu0
        %v4847 = vadd.f32 0.0, %v4846
        %v4848 = vpop.f32.mrb[0].mxu0
        %v4849 = vpop.f32.mrb[0].mxu0
        %v4850 = vadd.f32 0.0, %v4849
        %v4851 = vpop.f32.mrb[0].mxu0
        %4852 = vmatprep.mubr.bf16.mxu0 0
        %4853 = vmatmul.mubr.bf16.gmra.mrb[0].mxu0 %v4628
        %v4854 = vpop.f32.mrb[0].mxu0
        %v4855 = vadd.f32 0.0, %v4854
        %v4856 = vpop.f32.mrb[0].mxu0
        %v4857 = vpop.f32.mrb[0].mxu0
        %v4858 = vadd.f32 0.0, %v4857
        %v4859 = vpop.f32.mrb[0].mxu0
        %4860 = vmatprep.mubr.bf16.mxu0 0
        %4861 = vmatmul.mubr.bf16.gmra.mrb[0].mxu0 %v4632
        %v4862 = vpop.f32.mrb[0].mxu0
        %v4863 = vadd.f32 0.0, %v4862
        %v4864 = vpop.f32.mrb[0].mxu0
        %v4865 = vpop.f32.mrb[0].mxu0
        %v4866 = vadd.f32 0.0, %v4865
        %v4867 = vpop.f32.mrb[0].mxu0
        %4868 = vmatprep.mubr.bf16.mxu0 0
        %4869 = vmatmul.mubr.bf16.gmra.mrb[0].mxu0 %v4636
        %v4870 = vpop.f32.mrb[0].mxu0
        %v4871 = vadd.f32 0.0, %v4870
        %v4872 = vpop.f32.mrb[0].mxu0
        %v4873 = vpop.f32.mrb[0].mxu0
        %v4874 = vadd.f32 0.0, %v4873
        %v4875 = vpop.f32.mrb[0].mxu0
        %4876 = vmatprep.mubr.bf16.mxu0 0
        %4877 = vmatmul.mubr.bf16.gmra.mrb[0].mxu0 %v4640
        %v4878 = vpop.f32.mrb[0].mxu0
        %v4879 = vadd.f32 0.0, %v4878
        %v4880 = vpop.f32.mrb[0].mxu0
        %v4881 = vpop.f32.mrb[0].mxu0
        %v4882 = vadd.f32 0.0, %v4881
        %v4883 = vpop.f32.mrb[0].mxu0
        %4884 = vmatprep.mubr.bf16.mxu0 0
        %4885 = vmatmul.mubr.bf16.gmra.mrb[0].mxu0 %v4649
        %v4886 = vpop.f32.mrb[0].mxu0
        %v4887 = vadd.f32 0.0, %v4886
        %v4888 = vpop.f32.mrb[0].mxu0
        %v4889 = vpop.f32.mrb[0].mxu0
        %v4890 = vadd.f32 0.0, %v4889
        %v4891 = vpop.f32.mrb[0].mxu0
        %4892 = vdwg.mxu0
        %v4893 = vadd.f32 %v4510, %v4751
        %v4894 = vadd.f32 %v4511, %v4754
        %v4895 = vadd.f32 %v4512, %v4759
        %v4896 = vadd.f32 %v4513, %v4762
        %v4897 = vadd.f32 %v4514, %v4767
        %v4898 = vadd.f32 %v4515, %v4770
        %v4899 = vadd.f32 %v4516, %v4775
        %v4900 = vadd.f32 %v4517, %v4778
        %v4901 = vadd.f32 %v4518, %v4783
        %v4902 = vadd.f32 %v4519, %v4786
        %v4903 = vadd.f32 %v4520, %v4791
        %v4904 = vadd.f32 %v4521, %v4794
        %v4905 = vadd.f32 %v4522, %v4799
        %v4906 = vadd.f32 %v4523, %v4802
        %v4907 = vadd.f32 %v4524, %v4807
        %v4908 = vadd.f32 %v4525, %v4810
        %v4909 = vadd.f32 %v4526, %v4815
        %v4910 = vadd.f32 %v4527, %v4818
        %v4911 = vadd.f32 %v4528, %v4823
        %v4912 = vadd.f32 %v4529, %v4826
        %v4913 = vadd.f32 %v4530, %v4831
        %v4914 = vadd.f32 %v4531, %v4834
        %v4915 = vadd.f32 %v4532, %v4839
        %v4916 = vadd.f32 %v4533, %v4842
        %v4917 = vadd.f32 %v4534, %v4847
        %v4918 = vadd.f32 %v4535, %v4850
        %v4919 = vadd.f32 %v4536, %v4855
        %v4920 = vadd.f32 %v4537, %v4858
        %v4921 = vadd.f32 %v4538, %v4863
        %v4922 = vadd.f32 %v4539, %v4866
        %v4923 = vadd.f32 %v4540, %v4871
        %v4924 = vadd.f32 %v4541, %v4874
        %v4925 = vadd.f32 %v4542, %v4879
        %v4926 = vadd.f32 %v4543, %v4882
        %v4927 = vadd.f32 %v4544, %v4887
        %v4928 = vadd.f32 %v4545, %v4890
        %v4929 = vmax.f32 %v4893, 0.0
        %v4930 = vmax.f32 %v4894, 0.0
        %v4931 = vmax.f32 %v4895, 0.0
        %v4932 = vmax.f32 %v4896, 0.0
        %v4933 = vmax.f32 %v4897, 0.0
        %v4934 = vmax.f32 %v4898, 0.0
        %v4935 = vmax.f32 %v4899, 0.0
        %v4936 = vmax.f32 %v4900, 0.0
        %v4937 = vmax.f32 %v4901, 0.0
        %v4938 = vmax.f32 %v4902, 0.0
        %v4939 = vmax.f32 %v4903, 0.0
        %v4940 = vmax.f32 %v4904, 0.0
        %v4941 = vmax.f32 %v4905, 0.0
        %v4942 = vmax.f32 %v4906, 0.0
        %v4943 = vmax.f32 %v4907, 0.0
        %v4944 = vmax.f32 %v4908, 0.0
        %v4945 = vmax.f32 %v4909, 0.0
        %v4946 = vmax.f32 %v4910, 0.0
        %v4947 = vmax.f32 %v4911, 0.0
        %v4948 = vmax.f32 %v4912, 0.0
        %v4949 = vmax.f32 %v4913, 0.0
        %v4950 = vmax.f32 %v4914, 0.0
        %v4951 = vmax.f32 %v4915, 0.0
        %v4952 = vmax.f32 %v4916, 0.0
        %v4953 = vmax.f32 %v4917, 0.0
        %v4954 = vmax.f32 %v4918, 0.0
        %v4955 = vmax.f32 %v4919, 0.0
        %v4956 = vmax.f32 %v4920, 0.0
        %v4957 = vmax.f32 %v4921, 0.0
        %v4958 = vmax.f32 %v4922, 0.0
        %v4959 = vmax.f32 %v4923, 0.0
        %v4960 = vmax.f32 %v4924, 0.0
        %v4961 = vmax.f32 %v4925, 0.0
        %v4962 = vmax.f32 %v4926, 0.0
        %v4963 = vmax.f32 %v4927, 0.0
        %v4964 = vmax.f32 %v4928, 0.0
        %4965 = vst [vmem:[%s361] sm:$0xff] %v4929
        %4966 = vst [vmem:[%s361 + $0x8] sm:$0xff] %v4930
        %4967 = vst [vmem:[%s361 + $0x10] sm:$0xff] %v4931
        %4968 = vst [vmem:[%s361 + $0x18] sm:$0xff] %v4932
        %4969 = vst [vmem:[%s361 + $0x20] sm:$0xff] %v4933
        %4970 = vst [vmem:[%s361 + $0x28] sm:$0xff] %v4934
        %4971 = vst [vmem:[%s361 + $0x30] sm:$0xff] %v4935
        %4972 = vst [vmem:[%s361 + $0x38] sm:$0xff] %v4936
        %4973 = vst [vmem:[%s361 + $0x40] sm:$0xff] %v4937
        %4974 = vst [vmem:[%s361 + $0x48] sm:$0xff] %v4938
        %4975 = vst [vmem:[%s361 + $0x50] sm:$0xff] %v4939
        %4976 = vst [vmem:[%s361 + $0x58] sm:$0xff] %v4940
        %4977 = vst [vmem:[%s361 + $0x60] sm:$0xff] %v4941
        %4978 = vst [vmem:[%s361 + $0x68] sm:$0xff] %v4942
        %4979 = vst [vmem:[%s361 + $0x70] sm:$0xff] %v4943
        %4980 = vst [vmem:[%s361 + $0x78] sm:$0xff] %v4944
        %4981 = vst [vmem:[%s361 + $0x80] sm:$0xff] %v4945
        %4982 = vst [vmem:[%s361 + $0x88] sm:$0xff] %v4946
        %4983 = vst [vmem:[%s361 + $0x90] sm:$0xff] %v4947
        %4984 = vst [vmem:[%s361 + $0x98] sm:$0xff] %v4948
        %4985 = vst [vmem:[%s361 + $0xa0] sm:$0xff] %v4949
        %4986 = vst [vmem:[%s361 + $0xa8] sm:$0xff] %v4950
        %4987 = vst [vmem:[%s361 + $0xb0] sm:$0xff] %v4951
        %4988 = vst [vmem:[%s361 + $0xb8] sm:$0xff] %v4952
        %4989 = vst [vmem:[%s361 + $0xc0] sm:$0xff] %v4953
        %4990 = vst [vmem:[%s361 + $0xc8] sm:$0xff] %v4954
        %4991 = vst [vmem:[%s361 + $0xd0] sm:$0xff] %v4955
        %4992 = vst [vmem:[%s361 + $0xd8] sm:$0xff] %v4956
        %4993 = vst [vmem:[%s361 + $0xe0] sm:$0xff] %v4957
        %4994 = vst [vmem:[%s361 + $0xe8] sm:$0xff] %v4958
        %4995 = vst [vmem:[%s361 + $0xf0] sm:$0xff] %v4959
        %4996 = vst [vmem:[%s361 + $0xf8] sm:$0xff] %v4960
        %4997 = vst [vmem:[%s361 + $0x100] sm:$0xff] %v4961
        %4998 = vst [vmem:[%s361 + $0x108] sm:$0xff] %v4962
        %4999 = vst [vmem:[%s361 + $0x110] sm:$0xff] %v4963
        %5000 = vst [vmem:[%s361 + $0x118] sm:$0xff] %v4964
        %s5001 = sand.u32 %s172, 1
        %s5002 = scalar_lea.sflag [#allocation5], %s5001
        %s5003 = sand.u32 %s172, 1
        %s5004 = smul.addr %s5003, 288
        %s5005 = scalar_lea.vmem [#allocation14], %s5004
        // Predicated region
        $region69: #{tpu_custom_call.1} parent=43 // pred_check
          %p5006 = pneg %p182
        $region70: #{tpu_custom_call.1} parent=43 // pred_check_branch
          %5008 = sbr.rel (%p5006) target = $region72
        $region71: #{tpu_custom_call.1} parent=43 // pred_region
          %s5010 = ssub.s32 4608, 4608
          %5011 = vsyncadd %s5002, %s5010
          %s5012 = smul.addr %s28, 36
          %s5013 = smul.addr %s5012, 128
          %s5014 = scalar_lea.hbm %s6, %s5013
          %s5015 = sshll.u32 %s5005, 4
          %s5016 = int_to_ptr.vmem [resolvable:$true] %s5015
          %5021 = dma.vmem_to_hbm [thread:$0]  %s5016, 4608, %s5014, %s5002, 128, 128, 8
        $region72: #{tpu_custom_call.1} parent=43 // pred_fallthru
          _
      $region44: #{tpu_custom_call.1} parent=5 // pred_fallthru
        _
      %p5022 = scmp.le.s32.totalorder 2, %s23
      // Predicated region
      $region73: #{tpu_custom_call.1} parent=5 // pred_check
        %p5023 = pneg %p5022
      $region74: #{tpu_custom_call.1} parent=5 // pred_check_branch
        %5025 = sbr.rel (%p5023) target = $region76
      $region75: #{tpu_custom_call.1} parent=5 // pred_region
        %s5026 = ssub.s32 %s23, 2
        // Predicated region
        $region77: #{tpu_custom_call.1} parent=75 // pred_check
          %p5027 = pneg %p188
        $region78: #{tpu_custom_call.1} parent=75 // pred_check_branch
          %5029 = sbr.rel (%p5027) target = $region80
        $region79: #{tpu_custom_call.1} parent=75 // pred_region
          %s5030 = sand.u32 %s173, 1
          %s5031 = scalar_lea.sflag [#allocation5], %s5030
          %s5032 = sand.u32 %s173, 1
          %s5033 = smul.addr %s5032, 288
          %s5034 = scalar_lea.vmem [#allocation14], %s5033
          %5035 = dma.done %s5031, 4608
        $region80: #{tpu_custom_call.1} parent=75 // pred_fallthru
          _
      $region76: #{tpu_custom_call.1} parent=5 // pred_fallthru
        _
    $region6: #{tpu_custom_call.1} parent=1 // loop_footer
      %s27 = sadd.s32 1, %s23
    $region7: #{tpu_custom_call.1} parent=1 // loop_footer_branch
      %22 = sbr.rel target = $region3
    $region8: #{tpu_custom_call.1} parent=1 // loop_exit
      _
    %5036 = vsyncpa [#allocation4], 1
    %s5037 = scalar_lea.sflag [#allocation4], 1
    %5038 = vsyncpa %s5037, 1
    %5039 = vsyncpa [#allocation7], 1
    %s5040 = scalar_lea.sflag [#allocation7], 1
    %5041 = vsyncpa %s5040, 1
    %5042 = vsyncpa [#allocation10], 1
    %5043 = vsyncpa [#allocation13], 1
    %5044 = vsyncpa [#allocation5], 1
    %s5045 = scalar_lea.sflag [#allocation5], 1
    %5046 = vsyncpa %s5045, 1

</llo_original>
